<compile_context>
chip_gen: v6e
topology: v6e:2x2x1
jax: 0.10.0
libtpu: 0.0.40
codegen_flags: <defaults>
</compile_context>

<pallas_src>
import jax
import jax.numpy as jnp
from jax import lax
from jax.experimental import pallas as pl
from jax.experimental.pallas import tpu as pltpu


def _round_up(x, m):
    return (x + m - 1) // m * m


def fold_convbn_params(weight_oihw, gamma, beta, running_mean, running_var,
                       eps=1e-5):
    """Fold eval-mode BatchNorm into the conv weights.

    Call ONCE outside the jitted forward and cache the result (pure function
    of the parameters).

    Returns:
      w_taps: (KH*KW, Cin, Cout) BN-scaled weights, tap-major.
      bias:   (Cout,) folded BN bias.
    """
    Cout, Cin, KH, KW = weight_oihw.shape
    scale = gamma / jnp.sqrt(running_var + eps)                 # (Cout,)
    bias = beta - running_mean * scale                          # (Cout,)
    w = jnp.transpose(weight_oihw, (2, 3, 1, 0)) * scale        # (KH,KW,Cin,Cout)
    return w.reshape(KH * KW, Cin, Cout), bias


def convbn_apply(x_nchw, w_taps, bias, *, k_size=3, padding=1, stride=1,
                 groups=1, compute_dtype=jnp.bfloat16):
    # TODO(synk): stride>1 / groups>1 not implemented (default ConvBN config).
    assert stride == 1 and groups == 1, "only stride=1, groups=1 supported"

    out_dtype = x_nchw.dtype
    N, Cin, H, W = x_nchw.shape
    taps, Cin_w, Cout = w_taps.shape
    assert Cin_w == Cin and taps == k_size * k_size
    KH = KW = k_size

    Hp, Wp = H + 2 * padding, W + 2 * padding
    H_out = Hp - KH + 1
    W_out = Wp - KW + 1

    # ---- padded sizes -------------------------------------------------------
    if Cin >= 128:
        Cin_pad = _round_up(Cin, 128)   # lane-dense contraction for big Cin
    else:
        Cin_pad = _round_up(Cin, 16)    # bf16 sublane-packed, low read inflation
    if Cout <= 128:
        Cout_pad, tn = 128, 128         # (v5e also prefers 128-wide N tiles)
    else:
        Cout_pad = _round_up(Cout, 256)  # 256-wide tiles feed 2x256^2 MXU (v6e/v7x)
        tn = 256

    # Flat-row conv trick: output row m' = h*Wp + w over (H_out, Wp); the tap
    # (kh,kw) is the input flat row m' + kh*Wp + kw.  Columns w >= W_out are
    # halo garbage and are sliced off afterwards.
    m_rows = _round_up(H_out * Wp, 16)          # flat output rows per image
    max_off = (KH - 1) * Wp + (KW - 1)
    Lp = _round_up(m_rows + max_off, 16)        # flat input rows (>= Hp*Wp)

    # ---- activations: pad once (spatial halo + Cin + flat tail), flatten ----
    # Single cheap pass over ~1.1x the input bytes; NO 9x im2col in HBM.
    x_nhwc = jnp.transpose(x_nchw, (0, 2, 3, 1))
    x_pad = jnp.pad(x_nhwc, ((0, 0), (padding, padding), (padding, padding),
                             (0, Cin_pad - Cin)))
    x_flat = x_pad.reshape(N, Hp * Wp, Cin_pad)
    x_flat = jnp.pad(x_flat, ((0, 0), (0, Lp - Hp * Wp), (0, 0)))
    x_flat = x_flat.astype(compute_dtype)

    # ---- folded weights / bias (tiny, resident per Cout tile) ---------------
    w_p = jnp.pad(w_taps, ((0, 0), (0, Cin_pad - Cin),
                           (0, Cout_pad - Cout))).astype(compute_dtype)
    b_row = jnp.pad(bias.astype(jnp.float32),
                    (0, Cout_pad - Cout)).reshape(1, Cout_pad)

    # ---- kernel: KH*KW shifted K=Cin matmuls, f32 accumulate, direct store --
    def kernel(a_ref, w_ref, b_ref, o_ref):
        acc = jnp.zeros((m_rows, tn), dtype=jnp.float32)
        for t in range(KH * KW):                 # static unroll, static offsets
            off = (t // KW) * Wp + (t % KW)
            a_t = a_ref[0, off:off + m_rows, :]  # (m_rows, Cin_pad) shifted tap
            acc = acc + jnp.dot(a_t, w_ref[t],
                                preferred_element_type=jnp.float32)
        o_ref[0, :, :] = (acc + b_ref[...]).astype(o_ref.dtype)

    in_b = jnp.dtype(compute_dtype).itemsize
    out_b = jnp.dtype(out_dtype).itemsize
    vmem_need = (2 * Lp * Cin_pad * in_b              # activation (double-buffered)
                 + 2 * taps * Cin_pad * tn * in_b     # resident folded weights
                 + 2 * tn * 4                         # folded bias
                 + 2 * m_rows * tn * out_b            # output tile
                 + m_rows * tn * 4)                   # f32 accumulator
    # Single margin; 48 MiB cap fits v7x's 64 MiB VMEM (and v5e/v6e's 128 MiB).
    vmem_limit = int(min(max(vmem_need * 3 // 2, 8 << 20), 48 << 20))

    out_flat = pl.pallas_call(
        kernel,
        out_shape=jax.ShapeDtypeStruct((N, m_rows, Cout_pad), out_dtype),
        grid_spec=pltpu.PrefetchScalarGridSpec(
            num_scalar_prefetch=0,
            # Cout tiles OUTERMOST: weight/bias block index depends only on j,
            # so they are DMA'd once per Cout tile and stay resident across
            # the whole image sweep.
            grid=(Cout_pad // tn, N),
            in_specs=[
                pl.BlockSpec((1, Lp, Cin_pad), lambda j, i: (i, 0, 0)),
                pl.BlockSpec((taps, Cin_pad, tn), lambda j, i: (0, 0, j)),
                pl.BlockSpec((1, tn), lambda j, i: (0, j)),
            ],
            out_specs=pl.BlockSpec((1, m_rows, tn), lambda j, i: (i, 0, j)),
        ),
        compiler_params=pltpu.CompilerParams(
            dimension_semantics=("parallel", "parallel"),
            vmem_limit_bytes=vmem_limit,
        ),
    )(x_flat, w_p, b_row)

    # ---- strip halo columns / padding, back to NCHW -------------------------
    out = out_flat[:, :H_out * Wp, :Cout].reshape(N, H_out, Wp, Cout)
    out = out[:, :, :W_out, :]
    return jnp.transpose(out, (0, 3, 1, 2))


def _reference(x_nchw, weight_oihw, gamma, beta, running_mean, running_var,
               eps=1e-5, padding=1, compute_dtype=jnp.float32):
    """Pure-JAX conv + eval-mode BN.  With compute_dtype=bf16 this mirrors the
    kernel's input quantization exactly (both accumulate in f32)."""
    x = jnp.transpose(x_nchw, (0, 2, 3, 1))
    scale = gamma / jnp.sqrt(running_var + eps)
    bias = beta - running_mean * scale
    w = jnp.transpose(weight_oihw, (2, 3, 1, 0)) * scale
    y = lax.conv_general_dilated(
        x.astype(compute_dtype), w.astype(compute_dtype),
        window_strides=(1, 1),
        padding=[(padding, padding), (padding, padding)],
        dimension_numbers=("NHWC", "HWIO", "NHWC"),
        preferred_element_type=jnp.float32)
    y = y + bias
    return jnp.transpose(y, (0, 3, 1, 2)).astype(x_nchw.dtype)


if __name__ == "__main__":
    # Shapes consistent with ConvBN(inp=4, oup=8, k=3, s=1, p=1, g=1).
    N, Cin, Cout, H, W = 2, 4, 8, 16, 16

    key = jax.random.PRNGKey(0)
    kx, kw, kg, kb, km, kv = jax.random.split(key, 6)

    x = jax.random.normal(kx, (N, Cin, H, W), dtype=jnp.float32)
    weight = jax.random.normal(kw, (Cout, Cin, 3, 3), dtype=jnp.float32) * 0.1
    gamma = 1.0 + 0.1 * jax.random.normal(kg, (Cout,), dtype=jnp.float32)
    beta = 0.1 * jax.random.normal(kb, (Cout,), dtype=jnp.float32)
    running_mean = 0.1 * jax.random.normal(km, (Cout,), dtype=jnp.float32)
    running_var = 1.0 + 0.1 * jax.random.uniform(kv, (Cout,), dtype=jnp.float32)

    # Fold BN once, outside the jitted forward (cache these for inference).
    w_taps, bias = fold_convbn_params(weight, gamma, beta,
                                      running_mean, running_var)

    fwd = jax.jit(convbn_apply)
    out = fwd(x, w_taps, bias)
    jax.block_until_ready(out)
    assert out.shape == (N, Cout, H, W)

    # Tight check vs a reference using the same bf16 input quantization
    # (isolates kernel / tiling correctness; both accumulate in f32).
    ref_bf16 = _reference(x, weight, gamma, beta, running_mean, running_var,
                          compute_dtype=jnp.bfloat16)
    assert jnp.allclose(out, ref_bf16, atol=2e-3, rtol=2e-3), \
        "mismatch vs bf16-consistent reference"

    # Loose sanity check vs the full-f32 semantic reference (difference is
    # only the bf16 rounding of inputs/weights).
    ref_f32 = _reference(x, weight, gamma, beta, running_mean, running_var)
    assert jnp.allclose(out, ref_f32, atol=1e-1, rtol=1e-1), \
        "mismatch vs f32 reference"

    print("KERNEL_OK")
</pallas_src>

<mosaic_0001>
module attributes {stable_mosaic.version = 11 : i64} {
  func.func @kernel(%arg0: i32, %arg1: i32, %arg2: memref<1x336x16xbf16, #tpu.memory_space<vmem>>, %arg3: memref<9x16x128xbf16, #tpu.memory_space<vmem>>, %arg4: memref<1x128xf32, #tpu.memory_space<vmem>>, %arg5: memref<1x288x128xf32, #tpu.memory_space<vmem>>) attributes {dimension_semantics = [#tpu.dimension_semantics<parallel>, #tpu.dimension_semantics<parallel>], iteration_bounds = array<i64: 1, 2>, scalar_prefetch = 0 : i64, scratch_operands = 0 : i64, tpu.core_type = #tpu.core_type<tc>, window_params = [{transform_indices = @transform_0, window_bounds = array<i64: 1, 336, 16>}, {transform_indices = @transform_1, window_bounds = array<i64: 9, 16, 128>}, {transform_indices = @transform_2, window_bounds = array<i64: 1, 128>}, {transform_indices = @transform_3, window_bounds = array<i64: 1, 288, 128>}]} {
    %cst = arith.constant 0.000000e+00 : f32
    %0 = vector.broadcast %cst : f32 to vector<288x128xf32>
    %c0 = arith.constant 0 : index
    %c0_0 = arith.constant 0 : index
    %c0_1 = arith.constant 0 : index
    %1 = vector.load %arg2[%c0, %c0_0, %c0_1] : memref<1x336x16xbf16, #tpu.memory_space<vmem>>, vector<1x288x16xbf16>
    %2 = vector.shape_cast %1 : vector<1x288x16xbf16> to vector<288x16xbf16>
    %c0_2 = arith.constant 0 : index
    %c0_3 = arith.constant 0 : index
    %c0_4 = arith.constant 0 : index
    %3 = vector.load %arg3[%c0_2, %c0_3, %c0_4] : memref<9x16x128xbf16, #tpu.memory_space<vmem>>, vector<1x16x128xbf16>
    %4 = vector.shape_cast %3 : vector<1x16x128xbf16> to vector<16x128xbf16>
    %cst_5 = arith.constant dense<0.000000e+00> : vector<288x128xf32>
    %5 = tpu.matmul %2, %4, %cst_5 {dimension_numbers = #tpu.dot_dimension_numbers<[1], [0], [0], [1], [0, 0, 1, 1], [], []>} : vector<288x16xbf16>, vector<16x128xbf16>, vector<288x128xf32> -> vector<288x128xf32>
    %6 = arith.addf %0, %5 : vector<288x128xf32>
    %c0_6 = arith.constant 0 : index
    %c1 = arith.constant 1 : index
    %c0_7 = arith.constant 0 : index
    %7 = vector.load %arg2[%c0_6, %c1, %c0_7] : memref<1x336x16xbf16, #tpu.memory_space<vmem>>, vector<1x288x16xbf16>
    %8 = vector.shape_cast %7 : vector<1x288x16xbf16> to vector<288x16xbf16>
    %c1_8 = arith.constant 1 : index
    %c0_9 = arith.constant 0 : index
    %c0_10 = arith.constant 0 : index
    %9 = vector.load %arg3[%c1_8, %c0_9, %c0_10] : memref<9x16x128xbf16, #tpu.memory_space<vmem>>, vector<1x16x128xbf16>
    %10 = vector.shape_cast %9 : vector<1x16x128xbf16> to vector<16x128xbf16>
    %cst_11 = arith.constant dense<0.000000e+00> : vector<288x128xf32>
    %11 = tpu.matmul %8, %10, %cst_11 {dimension_numbers = #tpu.dot_dimension_numbers<[1], [0], [0], [1], [0, 0, 1, 1], [], []>} : vector<288x16xbf16>, vector<16x128xbf16>, vector<288x128xf32> -> vector<288x128xf32>
    %12 = arith.addf %6, %11 : vector<288x128xf32>
    %c0_12 = arith.constant 0 : index
    %c2 = arith.constant 2 : index
    %c0_13 = arith.constant 0 : index
    %13 = vector.load %arg2[%c0_12, %c2, %c0_13] : memref<1x336x16xbf16, #tpu.memory_space<vmem>>, vector<1x288x16xbf16>
    %14 = vector.shape_cast %13 : vector<1x288x16xbf16> to vector<288x16xbf16>
    %c2_14 = arith.constant 2 : index
    %c0_15 = arith.constant 0 : index
    %c0_16 = arith.constant 0 : index
    %15 = vector.load %arg3[%c2_14, %c0_15, %c0_16] : memref<9x16x128xbf16, #tpu.memory_space<vmem>>, vector<1x16x128xbf16>
    %16 = vector.shape_cast %15 : vector<1x16x128xbf16> to vector<16x128xbf16>
    %cst_17 = arith.constant dense<0.000000e+00> : vector<288x128xf32>
    %17 = tpu.matmul %14, %16, %cst_17 {dimension_numbers = #tpu.dot_dimension_numbers<[1], [0], [0], [1], [0, 0, 1, 1], [], []>} : vector<288x16xbf16>, vector<16x128xbf16>, vector<288x128xf32> -> vector<288x128xf32>
    %18 = arith.addf %12, %17 : vector<288x128xf32>
    %c0_18 = arith.constant 0 : index
    %c18 = arith.constant 18 : index
    %c0_19 = arith.constant 0 : index
    %19 = vector.load %arg2[%c0_18, %c18, %c0_19] : memref<1x336x16xbf16, #tpu.memory_space<vmem>>, vector<1x288x16xbf16>
    %20 = vector.shape_cast %19 : vector<1x288x16xbf16> to vector<288x16xbf16>
    %c3 = arith.constant 3 : index
    %c0_20 = arith.constant 0 : index
    %c0_21 = arith.constant 0 : index
    %21 = vector.load %arg3[%c3, %c0_20, %c0_21] : memref<9x16x128xbf16, #tpu.memory_space<vmem>>, vector<1x16x128xbf16>
    %22 = vector.shape_cast %21 : vector<1x16x128xbf16> to vector<16x128xbf16>
    %cst_22 = arith.constant dense<0.000000e+00> : vector<288x128xf32>
    %23 = tpu.matmul %20, %22, %cst_22 {dimension_numbers = #tpu.dot_dimension_numbers<[1], [0], [0], [1], [0, 0, 1, 1], [], []>} : vector<288x16xbf16>, vector<16x128xbf16>, vector<288x128xf32> -> vector<288x128xf32>
    %24 = arith.addf %18, %23 : vector<288x128xf32>
    %c0_23 = arith.constant 0 : index
    %c19 = arith.constant 19 : index
    %c0_24 = arith.constant 0 : index
    %25 = vector.load %arg2[%c0_23, %c19, %c0_24] : memref<1x336x16xbf16, #tpu.memory_space<vmem>>, vector<1x288x16xbf16>
    %26 = vector.shape_cast %25 : vector<1x288x16xbf16> to vector<288x16xbf16>
    %c4 = arith.constant 4 : index
    %c0_25 = arith.constant 0 : index
    %c0_26 = arith.constant 0 : index
    %27 = vector.load %arg3[%c4, %c0_25, %c0_26] : memref<9x16x128xbf16, #tpu.memory_space<vmem>>, vector<1x16x128xbf16>
    %28 = vector.shape_cast %27 : vector<1x16x128xbf16> to vector<16x128xbf16>
    %cst_27 = arith.constant dense<0.000000e+00> : vector<288x128xf32>
    %29 = tpu.matmul %26, %28, %cst_27 {dimension_numbers = #tpu.dot_dimension_numbers<[1], [0], [0], [1], [0, 0, 1, 1], [], []>} : vector<288x16xbf16>, vector<16x128xbf16>, vector<288x128xf32> -> vector<288x128xf32>
    %30 = arith.addf %24, %29 : vector<288x128xf32>
    %c0_28 = arith.constant 0 : index
    %c20 = arith.constant 20 : index
    %c0_29 = arith.constant 0 : index
    %31 = vector.load %arg2[%c0_28, %c20, %c0_29] : memref<1x336x16xbf16, #tpu.memory_space<vmem>>, vector<1x288x16xbf16>
    %32 = vector.shape_cast %31 : vector<1x288x16xbf16> to vector<288x16xbf16>
    %c5 = arith.constant 5 : index
    %c0_30 = arith.constant 0 : index
    %c0_31 = arith.constant 0 : index
    %33 = vector.load %arg3[%c5, %c0_30, %c0_31] : memref<9x16x128xbf16, #tpu.memory_space<vmem>>, vector<1x16x128xbf16>
    %34 = vector.shape_cast %33 : vector<1x16x128xbf16> to vector<16x128xbf16>
    %cst_32 = arith.constant dense<0.000000e+00> : vector<288x128xf32>
    %35 = tpu.matmul %32, %34, %cst_32 {dimension_numbers = #tpu.dot_dimension_numbers<[1], [0], [0], [1], [0, 0, 1, 1], [], []>} : vector<288x16xbf16>, vector<16x128xbf16>, vector<288x128xf32> -> vector<288x128xf32>
    %36 = arith.addf %30, %35 : vector<288x128xf32>
    %c0_33 = arith.constant 0 : index
    %c36 = arith.constant 36 : index
    %c0_34 = arith.constant 0 : index
    %37 = vector.load %arg2[%c0_33, %c36, %c0_34] : memref<1x336x16xbf16, #tpu.memory_space<vmem>>, vector<1x288x16xbf16>
    %38 = vector.shape_cast %37 : vector<1x288x16xbf16> to vector<288x16xbf16>
    %c6 = arith.constant 6 : index
    %c0_35 = arith.constant 0 : index
    %c0_36 = arith.constant 0 : index
    %39 = vector.load %arg3[%c6, %c0_35, %c0_36] : memref<9x16x128xbf16, #tpu.memory_space<vmem>>, vector<1x16x128xbf16>
    %40 = vector.shape_cast %39 : vector<1x16x128xbf16> to vector<16x128xbf16>
    %cst_37 = arith.constant dense<0.000000e+00> : vector<288x128xf32>
    %41 = tpu.matmul %38, %40, %cst_37 {dimension_numbers = #tpu.dot_dimension_numbers<[1], [0], [0], [1], [0, 0, 1, 1], [], []>} : vector<288x16xbf16>, vector<16x128xbf16>, vector<288x128xf32> -> vector<288x128xf32>
    %42 = arith.addf %36, %41 : vector<288x128xf32>
    %c0_38 = arith.constant 0 : index
    %c37 = arith.constant 37 : index
    %c0_39 = arith.constant 0 : index
    %43 = vector.load %arg2[%c0_38, %c37, %c0_39] : memref<1x336x16xbf16, #tpu.memory_space<vmem>>, vector<1x288x16xbf16>
    %44 = vector.shape_cast %43 : vector<1x288x16xbf16> to vector<288x16xbf16>
    %c7 = arith.constant 7 : index
    %c0_40 = arith.constant 0 : index
    %c0_41 = arith.constant 0 : index
    %45 = vector.load %arg3[%c7, %c0_40, %c0_41] : memref<9x16x128xbf16, #tpu.memory_space<vmem>>, vector<1x16x128xbf16>
    %46 = vector.shape_cast %45 : vector<1x16x128xbf16> to vector<16x128xbf16>
    %cst_42 = arith.constant dense<0.000000e+00> : vector<288x128xf32>
    %47 = tpu.matmul %44, %46, %cst_42 {dimension_numbers = #tpu.dot_dimension_numbers<[1], [0], [0], [1], [0, 0, 1, 1], [], []>} : vector<288x16xbf16>, vector<16x128xbf16>, vector<288x128xf32> -> vector<288x128xf32>
    %48 = arith.addf %42, %47 : vector<288x128xf32>
    %c0_43 = arith.constant 0 : index
    %c38 = arith.constant 38 : index
    %c0_44 = arith.constant 0 : index
    %49 = vector.load %arg2[%c0_43, %c38, %c0_44] : memref<1x336x16xbf16, #tpu.memory_space<vmem>>, vector<1x288x16xbf16>
    %50 = vector.shape_cast %49 : vector<1x288x16xbf16> to vector<288x16xbf16>
    %c8 = arith.constant 8 : index
    %c0_45 = arith.constant 0 : index
    %c0_46 = arith.constant 0 : index
    %51 = vector.load %arg3[%c8, %c0_45, %c0_46] : memref<9x16x128xbf16, #tpu.memory_space<vmem>>, vector<1x16x128xbf16>
    %52 = vector.shape_cast %51 : vector<1x16x128xbf16> to vector<16x128xbf16>
    %cst_47 = arith.constant dense<0.000000e+00> : vector<288x128xf32>
    %53 = tpu.matmul %50, %52, %cst_47 {dimension_numbers = #tpu.dot_dimension_numbers<[1], [0], [0], [1], [0, 0, 1, 1], [], []>} : vector<288x16xbf16>, vector<16x128xbf16>, vector<288x128xf32> -> vector<288x128xf32>
    %54 = arith.addf %48, %53 : vector<288x128xf32>
    %c0_48 = arith.constant 0 : index
    %c0_49 = arith.constant 0 : index
    %55 = vector.load %arg4[%c0_48, %c0_49] : memref<1x128xf32, #tpu.memory_space<vmem>>, vector<1x128xf32>
    %56 = vector.broadcast %55 : vector<1x128xf32> to vector<288x128xf32>
    %57 = arith.addf %54, %56 : vector<288x128xf32>
    %c0_50 = arith.constant 0 : index
    %c0_51 = arith.constant 0 : index
    %c0_52 = arith.constant 0 : index
    %58 = vector.load %arg5[%c0_50, %c0_51, %c0_52] : memref<1x288x128xf32, #tpu.memory_space<vmem>>, vector<1x288x128xf32>
    %59 = vector.shape_cast %58 : vector<1x288x128xf32> to vector<288x128xf32>
    %60 = vector.shape_cast %57 : vector<288x128xf32> to vector<1x288x128xf32>
    tpu.vector_store %arg5[%c0_50, %c0_51, %c0_52], %60 {strides = array<i32>} : memref<1x288x128xf32, #tpu.memory_space<vmem>>, vector<1x288x128xf32>,
    return
  }
  func.func @transform_0(%arg0: i32, %arg1: i32) -> (i32, i32, i32) {
    %c0_i32 = arith.constant 0 : i32
    %c0_i32_0 = arith.constant 0 : i32
    %c0_i32_1 = arith.constant 0 : i32
    return %arg1, %c0_i32, %c0_i32_0 : i32, i32, i32
  }
  func.func @transform_1(%arg0: i32, %arg1: i32) -> (i32, i32, i32) {
    %c0_i32 = arith.constant 0 : i32
    %c0_i32_0 = arith.constant 0 : i32
    %c0_i32_1 = arith.constant 0 : i32
    return %c0_i32, %c0_i32_0, %arg0 : i32, i32, i32
  }
  func.func @transform_2(%arg0: i32, %arg1: i32) -> (i32, i32) {
    %c0_i32 = arith.constant 0 : i32
    %c0_i32_0 = arith.constant 0 : i32
    return %c0_i32, %arg0 : i32, i32
  }
  func.func @transform_3(%arg0: i32, %arg1: i32) -> (i32, i32, i32) {
    %c0_i32 = arith.constant 0 : i32
    %c0_i32_0 = arith.constant 0 : i32
    return %arg1, %c0_i32, %arg0 : i32, i32, i32
  }
}

</mosaic_0001>

<llo_original>
// kernel: convbn_apply.1
$region0: #{convbn_apply.1}
  #allocation0 [shape = 'u32[]', space=smem, size = 0x4, offset = 0x4, fixed_abs, tag = 'smem constant byte address 0x4 - core index']
  #allocation1 [shape = 'u32[144,128]{1,0:T(1,128)}', space=vmem, size = 0x12000, scoped, tag = 'internal scratch']
  %s0 = inlined_call_operand.vmem [shape: bf16[2,336,16], index: 0, kind: input, shape index: {}]
  %s1 = inlined_call_operand.vmem [shape: bf16[9,16,128], index: 1, kind: input, shape index: {}]
  %s2 = inlined_call_operand.vmem [shape: f32[1,128], index: 2, kind: input, shape index: {}]
  %s3 = inlined_call_operand.vmem [shape: f32[2,288,128], index: 3, kind: output, shape index: {}]
  %s4 = sld [smem:[#allocation0]]
  $region45: #{convbn_apply.1} parent=0
    _
  %s6 = ssub.s32 1, %s4
  %s7 = scalar_select 0, %s6, %s4
  loop: start=0, step=1, limit=4
  $region2: #{convbn_apply.1} parent=0 // loop_pre_header
    _
  $region3: #{convbn_apply.1} parent=0 // loop_header
    %s9 = sphi 0, %s13
    %p10 = scmp.ge.s32.totalorder %s9, 4
    %s16 = sphi 0, %s28
    %s17 = sphi 0, %s24
    %s18 = sphi 0, %s16
    %s19 = sphi 0, %s17
    %s20 = sphi 0, %s18
    %s21 = sphi 0, %s19
    %s31 = sphi 0, %s33
    %s34 = sphi 0, %s31
    %s35 = sphi 0, %s34
    %s51 = sphi 0, %s35
    %s57 = sphi 0, %s59
    %s60 = sphi 0, %s57
    %s61 = sphi 0, %s60
    %s77 = sphi 0, %s61
    %s83 = sphi 0, %s85
    %s86 = sphi 0, %s83
    %s87 = sphi 0, %s86
    %s103 = sphi 0, %s87
    %s111 = sphi 0, %s113
    %s114 = sphi 0, %s111
    %s115 = sphi 0, %s114
    %s131 = sphi 0, %s115
  $region4: #{convbn_apply.1} parent=0 // loop_header_branch
    %12 = sbr.rel (%p10) target = $region8
  $region5: #{convbn_apply.1} parent=0 // loop_body
    %s14 = ssub.s32 %s9, 1
    %s15 = ssub.s32 %s9, 2
    %s22 = sadd.s32 1, %s17
    %p23 = scmp.ge.s32.totalorder %s22, 2
    %s24 = scalar_select %p23, 0, %s22
    %s25 = sadd.s32 1, %s16
    %s26 = scalar_select %p23, %s25, %s16
    %p27 = scmp.ge.s32.totalorder %s26, 1
    %s28 = scalar_select %p27, 0, %s26
    %s29 = ssub.s32 %s17, %s24
    %p30 = scmp.eq.s32.totalorder %s29, 0
    %s32 = sadd.s32 %s31, 1
    %s33 = scalar_select %p30, %s31, %s32
    %p36 = pneg %p30
    %p37 = scmp.eq.s32.totalorder %s9, 1
    %p38 = por %p36, %p37
    %p39 = scmp.ne.s32.totalorder %s31, %s34
    %p40 = scmp.eq.s32.totalorder %s9, 0
    %p41 = por %p39, %p40
    %p42 = scmp.ne.s32.totalorder %s31, %s34
    %p43 = scmp.eq.s32.totalorder %s14, 1
    %p44 = por %p42, %p43
    %p45 = scmp.ne.s32.totalorder %s34, %s35
    %p46 = scmp.eq.s32.totalorder %s14, 0
    %p47 = por %p45, %p46
    %p48 = scmp.ne.s32.totalorder %s34, %s35
    %p49 = scmp.eq.s32.totalorder %s15, 1
    %p50 = por %p48, %p49
    %p52 = scmp.ne.s32.totalorder %s35, %s51
    %p53 = scmp.eq.s32.totalorder %s15, 0
    %p54 = por %p52, %p53
    %s55 = ssub.s32 %s16, %s28
    %p56 = scmp.eq.s32.totalorder %s55, 0
    %s58 = sadd.s32 %s57, 1
    %s59 = scalar_select %p56, %s57, %s58
    %p62 = pneg %p56
    %p63 = scmp.eq.s32.totalorder %s9, 1
    %p64 = por %p62, %p63
    %p65 = scmp.ne.s32.totalorder %s57, %s60
    %p66 = scmp.eq.s32.totalorder %s9, 0
    %p67 = por %p65, %p66
    %p68 = scmp.ne.s32.totalorder %s57, %s60
    %p69 = scmp.eq.s32.totalorder %s14, 1
    %p70 = por %p68, %p69
    %p71 = scmp.ne.s32.totalorder %s60, %s61
    %p72 = scmp.eq.s32.totalorder %s14, 0
    %p73 = por %p71, %p72
    %p74 = scmp.ne.s32.totalorder %s60, %s61
    %p75 = scmp.eq.s32.totalorder %s15, 1
    %p76 = por %p74, %p75
    %p78 = scmp.ne.s32.totalorder %s61, %s77
    %p79 = scmp.eq.s32.totalorder %s15, 0
    %p80 = por %p78, %p79
    %s81 = ssub.s32 %s16, %s28
    %p82 = scmp.eq.s32.totalorder %s81, 0
    %s84 = sadd.s32 %s83, 1
    %s85 = scalar_select %p82, %s83, %s84
    %p88 = pneg %p82
    %p89 = scmp.eq.s32.totalorder %s9, 1
    %p90 = por %p88, %p89
    %p91 = scmp.ne.s32.totalorder %s83, %s86
    %p92 = scmp.eq.s32.totalorder %s9, 0
    %p93 = por %p91, %p92
    %p94 = scmp.ne.s32.totalorder %s83, %s86
    %p95 = scmp.eq.s32.totalorder %s14, 1
    %p96 = por %p94, %p95
    %p97 = scmp.ne.s32.totalorder %s86, %s87
    %p98 = scmp.eq.s32.totalorder %s14, 0
    %p99 = por %p97, %p98
    %p100 = scmp.ne.s32.totalorder %s86, %s87
    %p101 = scmp.eq.s32.totalorder %s15, 1
    %p102 = por %p100, %p101
    %p104 = scmp.ne.s32.totalorder %s87, %s103
    %p105 = scmp.eq.s32.totalorder %s15, 0
    %p106 = por %p104, %p105
    %s107 = ssub.s32 %s17, %s24
    %s108 = ssub.s32 %s16, %s28
    %s109 = sor.u32 %s107, %s108
    %p110 = scmp.eq.s32.totalorder %s109, 0
    %s112 = sadd.s32 %s111, 1
    %s113 = scalar_select %p110, %s111, %s112
    %p116 = pneg %p110
    %p117 = scmp.eq.s32.totalorder %s9, 1
    %p118 = por %p116, %p117
    %p119 = scmp.ne.s32.totalorder %s111, %s114
    %p120 = scmp.eq.s32.totalorder %s9, 0
    %p121 = por %p119, %p120
    %p122 = scmp.ne.s32.totalorder %s111, %s114
    %p123 = scmp.eq.s32.totalorder %s14, 1
    %p124 = por %p122, %p123
    %p125 = scmp.ne.s32.totalorder %s114, %s115
    %p126 = scmp.eq.s32.totalorder %s14, 0
    %p127 = por %p125, %p126
    %p128 = scmp.ne.s32.totalorder %s114, %s115
    %p129 = scmp.eq.s32.totalorder %s15, 1
    %p130 = por %p128, %p129
    %p132 = scmp.ne.s32.totalorder %s115, %s131
    %p133 = scmp.eq.s32.totalorder %s15, 0
    %p134 = por %p132, %p133
    %p135 = scmp.le.s32.totalorder 1, %s9
    %p136 = scmp.lt.s32.totalorder %s9, 3
    %p137 = pnand %p135, %p136
    %p138 = pneg %p137
    // Predicated region
    $region9: #{convbn_apply.1} parent=5 // pred_check
      _
    $region10: #{convbn_apply.1} parent=5 // pred_check_branch
      %140 = sbr.rel (%p137) target = $region12
    $region11: #{convbn_apply.1} parent=5 // pred_region
      %s141 = ssub.s32 %s9, 1
      // Predicated region
      $region13: #{convbn_apply.1} parent=11 // pred_check
        %p142 = pneg %p73
      $region14: #{convbn_apply.1} parent=11 // pred_check_branch
        %144 = sbr.rel (%p142) target = $region16
      $region15: #{convbn_apply.1} parent=11 // pred_region
        %p145 = scmp.lt.s32.totalorder %s18, 0
        %s146 = scalar_select %p145, %s18, 0
        %s147 = smul.addr %s146, 4
        %s148 = scalar_lea.vmem %s1, %s147
      $region16: #{convbn_apply.1} parent=11 // pred_fallthru
        _
      // Predicated region
      $region17: #{convbn_apply.1} parent=11 // pred_check
        %p149 = pneg %p99
      $region18: #{convbn_apply.1} parent=11 // pred_check_branch
        %151 = sbr.rel (%p149) target = $region20
      $region19: #{convbn_apply.1} parent=11 // pred_region
        %p152 = scmp.lt.s32.totalorder %s18, 0
        %s153 = scalar_select %p152, %s18, 0
        %s154 = scalar_lea.vmem %s2, %s153
      $region20: #{convbn_apply.1} parent=11 // pred_fallthru
        _
    $region12: #{convbn_apply.1} parent=5 // pred_fallthru
      _
    %p155 = scmp.lt.s32.totalorder %s9, 2
    // Predicated region
    $region21: #{convbn_apply.1} parent=5 // pred_check
      %p156 = pneg %p155
    $region22: #{convbn_apply.1} parent=5 // pred_check_branch
      %158 = sbr.rel (%p156) target = $region24
    $region23: #{convbn_apply.1} parent=5 // pred_region
      // Predicated region
      $region25: #{convbn_apply.1} parent=23 // pred_check
        %p159 = pneg %p41
      $region26: #{convbn_apply.1} parent=23 // pred_check_branch
        %161 = sbr.rel (%p159) target = $region28
      $region27: #{convbn_apply.1} parent=23 // pred_region
        %p162 = scmp.lt.s32.totalorder %s17, 1
        %s163 = scalar_select %p162, %s17, 1
        %s164 = smul.addr %s163, 42
        %s165 = smul.addr %s164, 4
        %s166 = scalar_lea.vmem %s0, %s165
      $region28: #{convbn_apply.1} parent=23 // pred_fallthru
        _
    $region24: #{convbn_apply.1} parent=5 // pred_fallthru
      _
    %p167 = scmp.le.s32.totalorder 1, %s9
    %p168 = scmp.lt.s32.totalorder %s9, 3
    %p169 = pnand %p167, %p168
    %p170 = pneg %p169
    // Predicated region
    $region29: #{convbn_apply.1} parent=5 // pred_check
      _
    $region30: #{convbn_apply.1} parent=5 // pred_check_branch
      %172 = sbr.rel (%p169) target = $region32
    $region31: #{convbn_apply.1} parent=5 // pred_region
      %s173 = ssub.s32 %s9, 1
      %p174 = scmp.lt.s32.totalorder %s19, 1
      %s175 = scalar_select %p174, %s19, 1
      %s176 = smul.addr %s175, 42
      %s177 = smul.addr %s176, 4
      %s178 = scalar_lea.vmem %s0, %s177
      %p179 = pneg %p47
      %p180 = pneg %p44
      %p181 = scmp.lt.s32.totalorder %s18, 0
      %s182 = scalar_select %p181, %s18, 0
      %s183 = smul.addr %s182, 4
      %s184 = scalar_lea.vmem %s1, %s183
      %p185 = pneg %p73
      %p186 = pneg %p70
      %p187 = scmp.lt.s32.totalorder %s18, 0
      %s188 = scalar_select %p187, %s18, 0
      %s189 = scalar_lea.vmem %s2, %s188
      %p190 = pneg %p99
      %p191 = pneg %p96
      %p192 = pneg %p127
      %p193 = pneg %p124
      %p194 = scmp.lt.s32.totalorder %s19, 1
      %s195 = scalar_select %p194, %s19, 1
      %p196 = scmp.lt.s32.totalorder %s18, 0
      %s197 = scalar_select %p196, %s18, 0
      %s198 = smul.addr %s195, 36
      %s199 = sadd.s32 %s197, %s198
      %s200 = smul.addr %s199, 8
      %s201 = scalar_lea.vmem %s3, %s200
      %p202 = scmp.lt.s32.totalorder %s19, 1
      %s203 = scalar_select %p202, %s19, 1
      %s204 = smul.addr %s203, 42
      %s205 = smul.addr %s204, 4
      %s206 = scalar_lea.vmem %s0, %s205
      %p207 = scmp.lt.s32.totalorder %s18, 0
      %s208 = scalar_select %p207, %s18, 0
      %s209 = smul.addr %s208, 4
      %s210 = scalar_lea.vmem %s1, %s209
      %p211 = scmp.lt.s32.totalorder %s18, 0
      %s212 = scalar_select %p211, %s18, 0
      %s213 = scalar_lea.vmem %s2, %s212
      %p214 = scmp.lt.s32.totalorder %s19, 1
      %s215 = scalar_select %p214, %s19, 1
      %p216 = scmp.lt.s32.totalorder %s18, 0
      %s217 = scalar_select %p216, %s18, 0
      %s218 = smul.addr %s215, 36
      %s219 = sadd.s32 %s217, %s218
      %s220 = smul.addr %s219, 8
      %s221 = scalar_lea.vmem %s3, %s220
      %v223 = vld [vmem:[%s206] sm:$0xf]
      %v224 = vld [vmem:[%s206 + $0x4] sm:$0xf]
      %v225 = vld [vmem:[%s206 + $0x8] sm:$0xf]
      %v226 = vld [vmem:[%s206 + $0xc] sm:$0xf]
      %v227 = vld [vmem:[%s206 + $0x10] sm:$0xf]
      %v228 = vld [vmem:[%s206 + $0x14] sm:$0xf]
      %v229 = vld [vmem:[%s206 + $0x18] sm:$0xf]
      %v230 = vld [vmem:[%s206 + $0x1c] sm:$0xf]
      %v231 = vld [vmem:[%s206 + $0x20] sm:$0xf]
      %v232 = vld [vmem:[%s206 + $0x24] sm:$0xf]
      %v233 = vld [vmem:[%s206 + $0x28] sm:$0xf]
      %v234 = vld [vmem:[%s206 + $0x2c] sm:$0xf]
      %v235 = vld [vmem:[%s206 + $0x30] sm:$0xf]
      %v236 = vld [vmem:[%s206 + $0x34] sm:$0xf]
      %v237 = vld [vmem:[%s206 + $0x38] sm:$0xf]
      %v238 = vld [vmem:[%s206 + $0x3c] sm:$0xf]
      %v239 = vld [vmem:[%s206 + $0x40] sm:$0xf]
      %v240 = vld [vmem:[%s206 + $0x44] sm:$0xf]
      %v241 = vld [vmem:[%s206 + $0x48] sm:$0xf]
      %v242 = vld [vmem:[%s206 + $0x4c] sm:$0xf]
      %v243 = vld [vmem:[%s206 + $0x50] sm:$0xf]
      %v244 = vld [vmem:[%s206 + $0x54] sm:$0xf]
      %v245 = vld [vmem:[%s206 + $0x58] sm:$0xf]
      %v246 = vld [vmem:[%s206 + $0x5c] sm:$0xf]
      %v247 = vld [vmem:[%s206 + $0x60] sm:$0xf]
      %v248 = vld [vmem:[%s206 + $0x64] sm:$0xf]
      %v249 = vld [vmem:[%s206 + $0x68] sm:$0xf]
      %v250 = vld [vmem:[%s206 + $0x6c] sm:$0xf]
      %v251 = vld [vmem:[%s206 + $0x70] sm:$0xf]
      %v252 = vld [vmem:[%s206 + $0x74] sm:$0xf]
      %v253 = vld [vmem:[%s206 + $0x78] sm:$0xf]
      %v254 = vld [vmem:[%s206 + $0x7c] sm:$0xf]
      %v255 = vld [vmem:[%s206 + $0x80] sm:$0xf]
      %v256 = vld [vmem:[%s206 + $0x84] sm:$0xf]
      %v257 = vld [vmem:[%s206 + $0x88] sm:$0xf]
      %v258 = vld [vmem:[%s206 + $0x8c] sm:$0xf]
      %v259 = vld [vmem:[%s210] sm:$0xf]
      %v260 = vld [vmem:[%s210 + $0x4] sm:$0xf]
      %v261 = vld [vmem:[%s206 + $0x90] sm:$0x1]
      %s262 = scalar_lea.vmem %s210, 8
      %v263 = vld [vmem:[%s262] sm:$0xf]
      %v264 = vld [vmem:[%s262 + $0x4] sm:$0xf]
      %v302 = vunpack.c.l.b16 %v223
      %v303 = vunpack.c.l.b16 %v224
      %v304 = vunpack.c.l.b16 %v225
      %v305 = vunpack.c.l.b16 %v226
      %v306 = vunpack.c.l.b16 %v227
      %v307 = vunpack.c.l.b16 %v228
      %v308 = vunpack.c.l.b16 %v229
      %v309 = vunpack.c.l.b16 %v230
      %v310 = vunpack.c.l.b16 %v231
      %v311 = vunpack.c.l.b16 %v232
      %v312 = vunpack.c.l.b16 %v233
      %v313 = vunpack.c.l.b16 %v234
      %v314 = vunpack.c.l.b16 %v235
      %v315 = vunpack.c.l.b16 %v236
      %v316 = vunpack.c.l.b16 %v237
      %v317 = vunpack.c.l.b16 %v238
      %v318 = vunpack.c.l.b16 %v239
      %v319 = vunpack.c.l.b16 %v240
      %v320 = vunpack.c.l.b16 %v241
      %v321 = vunpack.c.l.b16 %v242
      %v322 = vunpack.c.l.b16 %v243
      %v323 = vunpack.c.l.b16 %v244
      %v324 = vunpack.c.l.b16 %v245
      %v325 = vunpack.c.l.b16 %v246
      %v326 = vunpack.c.l.b16 %v247
      %v327 = vunpack.c.l.b16 %v248
      %v328 = vunpack.c.l.b16 %v249
      %v329 = vunpack.c.l.b16 %v250
      %v330 = vunpack.c.l.b16 %v251
      %v331 = vunpack.c.l.b16 %v252
      %v332 = vunpack.c.l.b16 %v253
      %v333 = vunpack.c.l.b16 %v254
      %v334 = vunpack.c.l.b16 %v255
      %v335 = vunpack.c.l.b16 %v256
      %v336 = vunpack.c.l.b16 %v257
      %v337 = vunpack.c.l.b16 %v258
      %v338 = vunpack.c.l.b16 %v261
      %v339 = vpack.c.b16 %v303, %v302
      %v340 = vpack.c.b16 %v305, %v304
      %v341 = vpack.c.b16 %v307, %v306
      %v342 = vpack.c.b16 %v309, %v308
      %v343 = vpack.c.b16 %v311, %v310
      %v344 = vpack.c.b16 %v313, %v312
      %v345 = vpack.c.b16 %v315, %v314
      %v346 = vpack.c.b16 %v317, %v316
      %v347 = vpack.c.b16 %v319, %v318
      %v348 = vpack.c.b16 %v321, %v320
      %v349 = vpack.c.b16 %v323, %v322
      %v350 = vpack.c.b16 %v325, %v324
      %v351 = vpack.c.b16 %v327, %v326
      %v352 = vpack.c.b16 %v329, %v328
      %v353 = vpack.c.b16 %v331, %v330
      %v354 = vpack.c.b16 %v333, %v332
      %v355 = vpack.c.b16 %v335, %v334
      %v356 = vpack.c.b16 %v337, %v336
      %v357 = vpack.c.b16 %v338, %v338
      %vm358 = vsmask.f32 7424
      %v360 = vshrl.u32 %v339, 16
      %v362 = vshll.u32 %v339, 16
      %v364 = vrot.slane %v362, 1
      %v365 = vor.u32 %v360, %v364
      %v367 = vshll.u32 %v340, 16
      %v369 = vrot.slane %v367, 1
      %v370 = vsel %vm358, %v365, %v369
      %v371 = vshrl.u32 %v340, 16
      %v373 = vor.u32 %v371, %v369
      %v375 = vshll.u32 %v341, 16
      %v377 = vrot.slane %v375, 1
      %v378 = vsel %vm358, %v373, %v377
      %v379 = vshrl.u32 %v341, 16
      %v381 = vor.u32 %v379, %v377
      %v383 = vshll.u32 %v342, 16
      %v385 = vrot.slane %v383, 1
      %v386 = vsel %vm358, %v381, %v385
      %v387 = vshrl.u32 %v342, 16
      %v389 = vor.u32 %v387, %v385
      %v391 = vshll.u32 %v343, 16
      %v393 = vrot.slane %v391, 1
      %v394 = vsel %vm358, %v389, %v393
      %v395 = vshrl.u32 %v343, 16
      %v397 = vor.u32 %v395, %v393
      %v399 = vshll.u32 %v344, 16
      %v401 = vrot.slane %v399, 1
      %v402 = vsel %vm358, %v397, %v401
      %v403 = vshrl.u32 %v344, 16
      %v405 = vor.u32 %v403, %v401
      %v407 = vshll.u32 %v345, 16
      %v409 = vrot.slane %v407, 1
      %v410 = vsel %vm358, %v405, %v409
      %v411 = vshrl.u32 %v345, 16
      %v413 = vor.u32 %v411, %v409
      %v415 = vshll.u32 %v346, 16
      %v417 = vrot.slane %v415, 1
      %v418 = vsel %vm358, %v413, %v417
      %v419 = vshrl.u32 %v346, 16
      %v421 = vor.u32 %v419, %v417
      %v423 = vshll.u32 %v347, 16
      %v425 = vrot.slane %v423, 1
      %v426 = vsel %vm358, %v421, %v425
      %v427 = vshrl.u32 %v347, 16
      %v429 = vor.u32 %v427, %v425
      %v431 = vshll.u32 %v348, 16
      %v433 = vrot.slane %v431, 1
      %v434 = vsel %vm358, %v429, %v433
      %v435 = vshrl.u32 %v348, 16
      %v437 = vor.u32 %v435, %v433
      %v439 = vshll.u32 %v349, 16
      %v441 = vrot.slane %v439, 1
      %v442 = vsel %vm358, %v437, %v441
      %v443 = vshrl.u32 %v349, 16
      %v445 = vor.u32 %v443, %v441
      %v447 = vshll.u32 %v350, 16
      %v449 = vrot.slane %v447, 1
      %v450 = vsel %vm358, %v445, %v449
      %v451 = vshrl.u32 %v350, 16
      %v453 = vor.u32 %v451, %v449
      %v455 = vshll.u32 %v351, 16
      %v457 = vrot.slane %v455, 1
      %v458 = vsel %vm358, %v453, %v457
      %v459 = vshrl.u32 %v351, 16
      %v461 = vor.u32 %v459, %v457
      %v463 = vshll.u32 %v352, 16
      %v465 = vrot.slane %v463, 1
      %v466 = vsel %vm358, %v461, %v465
      %v467 = vshrl.u32 %v352, 16
      %v469 = vor.u32 %v467, %v465
      %v471 = vshll.u32 %v353, 16
      %v473 = vrot.slane %v471, 1
      %v474 = vsel %vm358, %v469, %v473
      %v475 = vshrl.u32 %v353, 16
      %v477 = vor.u32 %v475, %v473
      %v479 = vshll.u32 %v354, 16
      %v481 = vrot.slane %v479, 1
      %v482 = vsel %vm358, %v477, %v481
      %v483 = vshrl.u32 %v354, 16
      %v485 = vor.u32 %v483, %v481
      %v487 = vshll.u32 %v355, 16
      %v489 = vrot.slane %v487, 1
      %v490 = vsel %vm358, %v485, %v489
      %v491 = vshrl.u32 %v355, 16
      %v493 = vor.u32 %v491, %v489
      %v495 = vshll.u32 %v356, 16
      %v497 = vrot.slane %v495, 1
      %v498 = vsel %vm358, %v493, %v497
      %v499 = vshrl.u32 %v356, 16
      %v501 = vor.u32 %v499, %v497
      %v503 = vshll.u32 %v357, 16
      %v505 = vrot.slane %v503, 1
      %v506 = vsel %vm358, %v501, %v505
      %v509 = vunpack.c.l.b16 %v263
      %v510 = vunpack.c.l.b16 %v264
      %v511 = vpack.c.b16 %v510, %v509
      %vm513 = vcmask 130048
      %v515 = vsel %vm513, %v370, 0
      %v518 = vsel %vm513, %v378, 0
      %v521 = vsel %vm513, %v386, 0
      %v524 = vsel %vm513, %v394, 0
      %v527 = vsel %vm513, %v402, 0
      %v530 = vsel %vm513, %v410, 0
      %v533 = vsel %vm513, %v418, 0
      %v536 = vsel %vm513, %v426, 0
      %v539 = vsel %vm513, %v434, 0
      %v542 = vsel %vm513, %v442, 0
      %v545 = vsel %vm513, %v450, 0
      %v548 = vsel %vm513, %v458, 0
      %v551 = vsel %vm513, %v466, 0
      %v554 = vsel %vm513, %v474, 0
      %v557 = vsel %vm513, %v482, 0
      %v560 = vsel %vm513, %v490, 0
      %v563 = vsel %vm513, %v498, 0
      %v566 = vsel %vm513, %v506, 0
      %568 = vmatprep.subr.bf16.mxu0 0
      %569 = vmatpush1.bf16.msra.mxu0 0
      %570 = vmatprep.subr.bf16.mxu0 0
      %571 = vmatpush1.bf16.msra.mxu0 0
      %572 = vmatprep.subr.bf16.mxu0 0
      %573 = vmatpush1.bf16.msra.mxu0 0
      %574 = vmatprep.subr.bf16.mxu0 0
      %575 = vmatpush1.bf16.msra.mxu0 0
      %576 = vmatprep.subr.bf16.mxu0 0
      %577 = vmatpush1.bf16.msra.mxu0 0
      %578 = vmatprep.subr.bf16.mxu0 0
      %579 = vmatpush1.bf16.msra.mxu0 0
      %580 = vmatprep.subr.bf16.mxu0 0
      %581 = vmatpush1.bf16.msra.mxu0 0
      %582 = vmatprep.subr.bf16.mxu0 0
      %583 = vmatpush1.bf16.msra.mxu0 %v511
      %584 = vmatprep.subr.bf16.mxu0 0
      %585 = vmatpush2.bf16.msra.mxu0 0
      %586 = vmatprep.subr.bf16.mxu0 0
      %587 = vmatpush2.bf16.msra.mxu0 0
      %588 = vmatprep.subr.bf16.mxu0 0
      %589 = vmatpush2.bf16.msra.mxu0 0
      %590 = vmatprep.subr.bf16.mxu0 0
      %591 = vmatpush2.bf16.msra.mxu0 0
      %592 = vmatprep.subr.bf16.mxu0 0
      %593 = vmatpush2.bf16.msra.mxu0 0
      %594 = vmatprep.subr.bf16.mxu0 0
      %595 = vmatpush2.bf16.msra.mxu0 0
      %596 = vmatprep.subr.bf16.mxu0 0
      %597 = vmatpush2.bf16.msra.mxu0 0
      %598 = vmatprep.subr.bf16.mxu0 0
      %599 = vmatpush2.bf16.msra.mxu0 0
      %600 = vmatprep.mubr.bf16.mxu0 0
      %601 = vmatmul.mubr.bf16.gmra.mxu0 %v515
      %v602 = vpop.f32.mrf.mxu0
      %v603 = vadd.f32 0.0, %v602
      %v604 = vpop.f32.mrf.mxu0
      %v605 = vpop.f32.mrf.mxu0
      %v606 = vadd.f32 0.0, %v605
      %v607 = vpop.f32.mrf.mxu0
      %608 = vmatprep.mubr.bf16.mxu0 0
      %609 = vmatmul.mubr.bf16.gmra.mxu0 %v518
      %v610 = vpop.f32.mrf.mxu0
      %v611 = vadd.f32 0.0, %v610
      %v612 = vpop.f32.mrf.mxu0
      %v613 = vpop.f32.mrf.mxu0
      %v614 = vadd.f32 0.0, %v613
      %v615 = vpop.f32.mrf.mxu0
      %616 = vmatprep.mubr.bf16.mxu0 0
      %617 = vmatmul.mubr.bf16.gmra.mxu0 %v521
      %v618 = vpop.f32.mrf.mxu0
      %v619 = vadd.f32 0.0, %v618
      %v620 = vpop.f32.mrf.mxu0
      %v621 = vpop.f32.mrf.mxu0
      %v622 = vadd.f32 0.0, %v621
      %v623 = vpop.f32.mrf.mxu0
      %624 = vmatprep.mubr.bf16.mxu0 0
      %625 = vmatmul.mubr.bf16.gmra.mxu0 %v524
      %v626 = vpop.f32.mrf.mxu0
      %v627 = vadd.f32 0.0, %v626
      %v628 = vpop.f32.mrf.mxu0
      %v629 = vpop.f32.mrf.mxu0
      %v630 = vadd.f32 0.0, %v629
      %v631 = vpop.f32.mrf.mxu0
      %632 = vmatprep.mubr.bf16.mxu0 0
      %633 = vmatmul.mubr.bf16.gmra.mxu0 %v527
      %v634 = vpop.f32.mrf.mxu0
      %v635 = vadd.f32 0.0, %v634
      %v636 = vpop.f32.mrf.mxu0
      %v637 = vpop.f32.mrf.mxu0
      %v638 = vadd.f32 0.0, %v637
      %v639 = vpop.f32.mrf.mxu0
      %640 = vmatprep.mubr.bf16.mxu0 0
      %641 = vmatmul.mubr.bf16.gmra.mxu0 %v530
      %v642 = vpop.f32.mrf.mxu0
      %v643 = vadd.f32 0.0, %v642
      %v644 = vpop.f32.mrf.mxu0
      %v645 = vpop.f32.mrf.mxu0
      %v646 = vadd.f32 0.0, %v645
      %v647 = vpop.f32.mrf.mxu0
      %648 = vmatprep.mubr.bf16.mxu0 0
      %649 = vmatmul.mubr.bf16.gmra.mxu0 %v533
      %v650 = vpop.f32.mrf.mxu0
      %v651 = vadd.f32 0.0, %v650
      %v652 = vpop.f32.mrf.mxu0
      %v653 = vpop.f32.mrf.mxu0
      %v654 = vadd.f32 0.0, %v653
      %v655 = vpop.f32.mrf.mxu0
      %656 = vmatprep.mubr.bf16.mxu0 0
      %657 = vmatmul.mubr.bf16.gmra.mxu0 %v536
      %v658 = vpop.f32.mrf.mxu0
      %v659 = vadd.f32 0.0, %v658
      %v660 = vpop.f32.mrf.mxu0
      %v661 = vpop.f32.mrf.mxu0
      %v662 = vadd.f32 0.0, %v661
      %v663 = vpop.f32.mrf.mxu0
      %664 = vmatprep.mubr.bf16.mxu0 0
      %665 = vmatmul.mubr.bf16.gmra.mxu0 %v539
      %v666 = vpop.f32.mrf.mxu0
      %v667 = vadd.f32 0.0, %v666
      %v668 = vpop.f32.mrf.mxu0
      %v669 = vpop.f32.mrf.mxu0
      %v670 = vadd.f32 0.0, %v669
      %v671 = vpop.f32.mrf.mxu0
      %672 = vmatprep.mubr.bf16.mxu0 0
      %673 = vmatmul.mubr.bf16.gmra.mxu0 %v542
      %v674 = vpop.f32.mrf.mxu0
      %v675 = vadd.f32 0.0, %v674
      %v676 = vpop.f32.mrf.mxu0
      %v677 = vpop.f32.mrf.mxu0
      %v678 = vadd.f32 0.0, %v677
      %v679 = vpop.f32.mrf.mxu0
      %680 = vmatprep.mubr.bf16.mxu0 0
      %681 = vmatmul.mubr.bf16.gmra.mxu0 %v545
      %v682 = vpop.f32.mrf.mxu0
      %v683 = vadd.f32 0.0, %v682
      %v684 = vpop.f32.mrf.mxu0
      %v685 = vpop.f32.mrf.mxu0
      %v686 = vadd.f32 0.0, %v685
      %v687 = vpop.f32.mrf.mxu0
      %688 = vmatprep.mubr.bf16.mxu0 0
      %689 = vmatmul.mubr.bf16.gmra.mxu0 %v548
      %v690 = vpop.f32.mrf.mxu0
      %v691 = vadd.f32 0.0, %v690
      %v692 = vpop.f32.mrf.mxu0
      %v693 = vpop.f32.mrf.mxu0
      %v694 = vadd.f32 0.0, %v693
      %v695 = vpop.f32.mrf.mxu0
      %696 = vmatprep.mubr.bf16.mxu0 0
      %697 = vmatmul.mubr.bf16.gmra.mxu0 %v551
      %v698 = vpop.f32.mrf.mxu0
      %v699 = vadd.f32 0.0, %v698
      %v700 = vpop.f32.mrf.mxu0
      %v701 = vpop.f32.mrf.mxu0
      %v702 = vadd.f32 0.0, %v701
      %v703 = vpop.f32.mrf.mxu0
      %704 = vmatprep.mubr.bf16.mxu0 0
      %705 = vmatmul.mubr.bf16.gmra.mxu0 %v554
      %v706 = vpop.f32.mrf.mxu0
      %v707 = vadd.f32 0.0, %v706
      %v708 = vpop.f32.mrf.mxu0
      %v709 = vpop.f32.mrf.mxu0
      %v710 = vadd.f32 0.0, %v709
      %v711 = vpop.f32.mrf.mxu0
      %712 = vmatprep.mubr.bf16.mxu0 0
      %713 = vmatmul.mubr.bf16.gmra.mxu0 %v557
      %v714 = vpop.f32.mrf.mxu0
      %v715 = vadd.f32 0.0, %v714
      %v716 = vpop.f32.mrf.mxu0
      %v717 = vpop.f32.mrf.mxu0
      %v718 = vadd.f32 0.0, %v717
      %v719 = vpop.f32.mrf.mxu0
      %720 = vmatprep.mubr.bf16.mxu0 0
      %721 = vmatmul.mubr.bf16.gmra.mxu0 %v560
      %v722 = vpop.f32.mrf.mxu0
      %v723 = vadd.f32 0.0, %v722
      %v724 = vpop.f32.mrf.mxu0
      %v725 = vpop.f32.mrf.mxu0
      %v726 = vadd.f32 0.0, %v725
      %v727 = vpop.f32.mrf.mxu0
      %728 = vmatprep.mubr.bf16.mxu0 0
      %729 = vmatmul.mubr.bf16.gmra.mxu0 %v563
      %v730 = vpop.f32.mrf.mxu0
      %v731 = vadd.f32 0.0, %v730
      %v732 = vpop.f32.mrf.mxu0
      %v733 = vpop.f32.mrf.mxu0
      %v734 = vadd.f32 0.0, %v733
      %v735 = vpop.f32.mrf.mxu0
      %736 = vmatprep.mubr.bf16.mxu0 0
      %737 = vmatmul.mubr.bf16.gmra.mxu0 %v566
      %v738 = vpop.f32.mrf.mxu0
      %v739 = vadd.f32 0.0, %v738
      %v740 = vpop.f32.mrf.mxu0
      %v741 = vpop.f32.mrf.mxu0
      %v742 = vadd.f32 0.0, %v741
      %v743 = vpop.f32.mrf.mxu0
      %744 = vdwg.mxu0
      %v747 = vunpack.c.l.b16 %v259
      %v748 = vunpack.c.l.b16 %v260
      %v749 = vpack.c.b16 %v748, %v747
      %v751 = vsel %vm513, %v339, 0
      %v753 = vsel %vm513, %v340, 0
      %v755 = vsel %vm513, %v341, 0
      %v757 = vsel %vm513, %v342, 0
      %v759 = vsel %vm513, %v343, 0
      %v761 = vsel %vm513, %v344, 0
      %v763 = vsel %vm513, %v345, 0
      %v765 = vsel %vm513, %v346, 0
      %v767 = vsel %vm513, %v347, 0
      %v769 = vsel %vm513, %v348, 0
      %v771 = vsel %vm513, %v349, 0
      %v773 = vsel %vm513, %v350, 0
      %v775 = vsel %vm513, %v351, 0
      %v777 = vsel %vm513, %v352, 0
      %v779 = vsel %vm513, %v353, 0
      %v781 = vsel %vm513, %v354, 0
      %v783 = vsel %vm513, %v355, 0
      %v785 = vsel %vm513, %v356, 0
      %787 = vmatprep.subr.bf16.mxu0 0
      %788 = vmatpush1.bf16.msra.mxu0 0
      %789 = vmatprep.subr.bf16.mxu0 0
      %790 = vmatpush1.bf16.msra.mxu0 0
      %791 = vmatprep.subr.bf16.mxu0 0
      %792 = vmatpush1.bf16.msra.mxu0 0
      %793 = vmatprep.subr.bf16.mxu0 0
      %794 = vmatpush1.bf16.msra.mxu0 0
      %795 = vmatprep.subr.bf16.mxu0 0
      %796 = vmatpush1.bf16.msra.mxu0 0
      %797 = vmatprep.subr.bf16.mxu0 0
      %798 = vmatpush1.bf16.msra.mxu0 0
      %799 = vmatprep.subr.bf16.mxu0 0
      %800 = vmatpush1.bf16.msra.mxu0 0
      %801 = vmatprep.subr.bf16.mxu0 0
      %802 = vmatpush1.bf16.msra.mxu0 %v749
      %803 = vmatprep.subr.bf16.mxu0 0
      %804 = vmatpush2.bf16.msra.mxu0 0
      %805 = vmatprep.subr.bf16.mxu0 0
      %806 = vmatpush2.bf16.msra.mxu0 0
      %807 = vmatprep.subr.bf16.mxu0 0
      %808 = vmatpush2.bf16.msra.mxu0 0
      %809 = vmatprep.subr.bf16.mxu0 0
      %810 = vmatpush2.bf16.msra.mxu0 0
      %811 = vmatprep.subr.bf16.mxu0 0
      %812 = vmatpush2.bf16.msra.mxu0 0
      %813 = vmatprep.subr.bf16.mxu0 0
      %814 = vmatpush2.bf16.msra.mxu0 0
      %815 = vmatprep.subr.bf16.mxu0 0
      %816 = vmatpush2.bf16.msra.mxu0 0
      %817 = vmatprep.subr.bf16.mxu0 0
      %818 = vmatpush2.bf16.msra.mxu0 0
      %819 = vmatprep.mubr.bf16.mxu0 0
      %820 = vmatmul.mubr.bf16.gmra.mxu0 %v751
      %v821 = vpop.f32.mrf.mxu0
      %v822 = vadd.f32 %v603, %v821
      %v823 = vpop.f32.mrf.mxu0
      %v824 = vpop.f32.mrf.mxu0
      %v825 = vadd.f32 %v606, %v824
      %v826 = vpop.f32.mrf.mxu0
      %827 = vmatprep.mubr.bf16.mxu0 0
      %828 = vmatmul.mubr.bf16.gmra.mxu0 %v753
      %v829 = vpop.f32.mrf.mxu0
      %v830 = vadd.f32 %v611, %v829
      %v831 = vpop.f32.mrf.mxu0
      %v832 = vpop.f32.mrf.mxu0
      %v833 = vadd.f32 %v614, %v832
      %v834 = vpop.f32.mrf.mxu0
      %835 = vmatprep.mubr.bf16.mxu0 0
      %836 = vmatmul.mubr.bf16.gmra.mxu0 %v755
      %v837 = vpop.f32.mrf.mxu0
      %v838 = vadd.f32 %v619, %v837
      %v839 = vpop.f32.mrf.mxu0
      %v840 = vpop.f32.mrf.mxu0
      %v841 = vadd.f32 %v622, %v840
      %v842 = vpop.f32.mrf.mxu0
      %843 = vmatprep.mubr.bf16.mxu0 0
      %844 = vmatmul.mubr.bf16.gmra.mxu0 %v757
      %v845 = vpop.f32.mrf.mxu0
      %v846 = vadd.f32 %v627, %v845
      %v847 = vpop.f32.mrf.mxu0
      %v848 = vpop.f32.mrf.mxu0
      %v849 = vadd.f32 %v630, %v848
      %v850 = vpop.f32.mrf.mxu0
      %851 = vmatprep.mubr.bf16.mxu0 0
      %852 = vmatmul.mubr.bf16.gmra.mxu0 %v759
      %v853 = vpop.f32.mrf.mxu0
      %v854 = vadd.f32 %v635, %v853
      %v855 = vpop.f32.mrf.mxu0
      %v856 = vpop.f32.mrf.mxu0
      %v857 = vadd.f32 %v638, %v856
      %v858 = vpop.f32.mrf.mxu0
      %859 = vmatprep.mubr.bf16.mxu0 0
      %860 = vmatmul.mubr.bf16.gmra.mxu0 %v761
      %v861 = vpop.f32.mrf.mxu0
      %v862 = vadd.f32 %v643, %v861
      %v863 = vpop.f32.mrf.mxu0
      %v864 = vpop.f32.mrf.mxu0
      %v865 = vadd.f32 %v646, %v864
      %v866 = vpop.f32.mrf.mxu0
      %867 = vmatprep.mubr.bf16.mxu0 0
      %868 = vmatmul.mubr.bf16.gmra.mxu0 %v763
      %v869 = vpop.f32.mrf.mxu0
      %v870 = vadd.f32 %v651, %v869
      %v871 = vpop.f32.mrf.mxu0
      %v872 = vpop.f32.mrf.mxu0
      %v873 = vadd.f32 %v654, %v872
      %v874 = vpop.f32.mrf.mxu0
      %875 = vmatprep.mubr.bf16.mxu0 0
      %876 = vmatmul.mubr.bf16.gmra.mxu0 %v765
      %v877 = vpop.f32.mrf.mxu0
      %v878 = vadd.f32 %v659, %v877
      %v879 = vpop.f32.mrf.mxu0
      %v880 = vpop.f32.mrf.mxu0
      %v881 = vadd.f32 %v662, %v880
      %v882 = vpop.f32.mrf.mxu0
      %883 = vmatprep.mubr.bf16.mxu0 0
      %884 = vmatmul.mubr.bf16.gmra.mxu0 %v767
      %v885 = vpop.f32.mrf.mxu0
      %v886 = vadd.f32 %v667, %v885
      %v887 = vpop.f32.mrf.mxu0
      %v888 = vpop.f32.mrf.mxu0
      %v889 = vadd.f32 %v670, %v888
      %v890 = vpop.f32.mrf.mxu0
      %891 = vmatprep.mubr.bf16.mxu0 0
      %892 = vmatmul.mubr.bf16.gmra.mxu0 %v769
      %v893 = vpop.f32.mrf.mxu0
      %v894 = vadd.f32 %v675, %v893
      %v895 = vpop.f32.mrf.mxu0
      %v896 = vpop.f32.mrf.mxu0
      %v897 = vadd.f32 %v678, %v896
      %v898 = vpop.f32.mrf.mxu0
      %899 = vmatprep.mubr.bf16.mxu0 0
      %900 = vmatmul.mubr.bf16.gmra.mxu0 %v771
      %v901 = vpop.f32.mrf.mxu0
      %v902 = vadd.f32 %v683, %v901
      %v903 = vpop.f32.mrf.mxu0
      %v904 = vpop.f32.mrf.mxu0
      %v905 = vadd.f32 %v686, %v904
      %v906 = vpop.f32.mrf.mxu0
      %907 = vmatprep.mubr.bf16.mxu0 0
      %908 = vmatmul.mubr.bf16.gmra.mxu0 %v773
      %v909 = vpop.f32.mrf.mxu0
      %v910 = vadd.f32 %v691, %v909
      %v911 = vpop.f32.mrf.mxu0
      %v912 = vpop.f32.mrf.mxu0
      %v913 = vadd.f32 %v694, %v912
      %v914 = vpop.f32.mrf.mxu0
      %915 = vmatprep.mubr.bf16.mxu0 0
      %916 = vmatmul.mubr.bf16.gmra.mxu0 %v775
      %v917 = vpop.f32.mrf.mxu0
      %v918 = vadd.f32 %v699, %v917
      %v919 = vpop.f32.mrf.mxu0
      %v920 = vpop.f32.mrf.mxu0
      %v921 = vadd.f32 %v702, %v920
      %v922 = vpop.f32.mrf.mxu0
      %923 = vmatprep.mubr.bf16.mxu0 0
      %924 = vmatmul.mubr.bf16.gmra.mxu0 %v777
      %v925 = vpop.f32.mrf.mxu0
      %v926 = vadd.f32 %v707, %v925
      %v927 = vpop.f32.mrf.mxu0
      %v928 = vpop.f32.mrf.mxu0
      %v929 = vadd.f32 %v710, %v928
      %v930 = vpop.f32.mrf.mxu0
      %931 = vmatprep.mubr.bf16.mxu0 0
      %932 = vmatmul.mubr.bf16.gmra.mxu0 %v779
      %v933 = vpop.f32.mrf.mxu0
      %v934 = vadd.f32 %v715, %v933
      %v935 = vpop.f32.mrf.mxu0
      %v936 = vpop.f32.mrf.mxu0
      %v937 = vadd.f32 %v718, %v936
      %v938 = vpop.f32.mrf.mxu0
      %939 = vmatprep.mubr.bf16.mxu0 0
      %940 = vmatmul.mubr.bf16.gmra.mxu0 %v781
      %v941 = vpop.f32.mrf.mxu0
      %v942 = vadd.f32 %v723, %v941
      %v943 = vpop.f32.mrf.mxu0
      %v944 = vpop.f32.mrf.mxu0
      %v945 = vadd.f32 %v726, %v944
      %v946 = vpop.f32.mrf.mxu0
      %947 = vmatprep.mubr.bf16.mxu0 0
      %948 = vmatmul.mubr.bf16.gmra.mxu0 %v783
      %v949 = vpop.f32.mrf.mxu0
      %v950 = vadd.f32 %v731, %v949
      %v951 = vpop.f32.mrf.mxu0
      %v952 = vpop.f32.mrf.mxu0
      %v953 = vadd.f32 %v734, %v952
      %v954 = vpop.f32.mrf.mxu0
      %955 = vmatprep.mubr.bf16.mxu0 0
      %956 = vmatmul.mubr.bf16.gmra.mxu0 %v785
      %v957 = vpop.f32.mrf.mxu0
      %v958 = vadd.f32 %v739, %v957
      %v959 = vpop.f32.mrf.mxu0
      %v960 = vpop.f32.mrf.mxu0
      %v961 = vadd.f32 %v742, %v960
      %v962 = vpop.f32.mrf.mxu0
      %963 = vdwg.mxu0
      %v964 = vld [vmem:[%s206] sm:$0xe]
      %s965 = scalar_lea.vmem %s210, 16
      %v966 = vld [vmem:[%s965] sm:$0xf]
      %v967 = vld [vmem:[%s965 + $0x4] sm:$0xf]
      %v969 = vunpack.c.l.b16 %v964
      %v970 = vpack.c.b16 %v303, %v969
      %vm971 = vcmask 1046528
      %v972 = vrot.slane %v970, 1
      %v973 = vrot.slane %v340, 1
      %v974 = vsel %vm971, %v972, %v973
      %v975 = vrot.slane %v341, 1
      %v976 = vsel %vm971, %v973, %v975
      %v977 = vrot.slane %v342, 1
      %v978 = vsel %vm971, %v975, %v977
      %v979 = vrot.slane %v343, 1
      %v980 = vsel %vm971, %v977, %v979
      %v981 = vrot.slane %v344, 1
      %v982 = vsel %vm971, %v979, %v981
      %v983 = vrot.slane %v345, 1
      %v984 = vsel %vm971, %v981, %v983
      %v985 = vrot.slane %v346, 1
      %v986 = vsel %vm971, %v983, %v985
      %v987 = vrot.slane %v347, 1
      %v988 = vsel %vm971, %v985, %v987
      %v989 = vrot.slane %v348, 1
      %v990 = vsel %vm971, %v987, %v989
      %v991 = vrot.slane %v349, 1
      %v992 = vsel %vm971, %v989, %v991
      %v993 = vrot.slane %v350, 1
      %v994 = vsel %vm971, %v991, %v993
      %v995 = vrot.slane %v351, 1
      %v996 = vsel %vm971, %v993, %v995
      %v997 = vrot.slane %v352, 1
      %v998 = vsel %vm971, %v995, %v997
      %v999 = vrot.slane %v353, 1
      %v1000 = vsel %vm971, %v997, %v999
      %v1001 = vrot.slane %v354, 1
      %v1002 = vsel %vm971, %v999, %v1001
      %v1003 = vrot.slane %v355, 1
      %v1004 = vsel %vm971, %v1001, %v1003
      %v1005 = vrot.slane %v356, 1
      %v1006 = vsel %vm971, %v1003, %v1005
      %v1007 = vrot.slane %v357, 1
      %v1008 = vsel %vm971, %v1005, %v1007
      %v1011 = vunpack.c.l.b16 %v966
      %v1012 = vunpack.c.l.b16 %v967
      %v1013 = vpack.c.b16 %v1012, %v1011
      %v1016 = vsel %vm513, %v974, 0
      %v1019 = vsel %vm513, %v976, 0
      %v1022 = vsel %vm513, %v978, 0
      %v1025 = vsel %vm513, %v980, 0
      %v1028 = vsel %vm513, %v982, 0
      %v1031 = vsel %vm513, %v984, 0
      %v1034 = vsel %vm513, %v986, 0
      %v1037 = vsel %vm513, %v988, 0
      %v1040 = vsel %vm513, %v990, 0
      %v1043 = vsel %vm513, %v992, 0
      %v1046 = vsel %vm513, %v994, 0
      %v1049 = vsel %vm513, %v996, 0
      %v1052 = vsel %vm513, %v998, 0
      %v1055 = vsel %vm513, %v1000, 0
      %v1058 = vsel %vm513, %v1002, 0
      %v1061 = vsel %vm513, %v1004, 0
      %v1064 = vsel %vm513, %v1006, 0
      %v1067 = vsel %vm513, %v1008, 0
      %1069 = vmatprep.subr.bf16.mxu0 0
      %1070 = vmatpush1.bf16.msra.mxu0 0
      %1071 = vmatprep.subr.bf16.mxu0 0
      %1072 = vmatpush1.bf16.msra.mxu0 0
      %1073 = vmatprep.subr.bf16.mxu0 0
      %1074 = vmatpush1.bf16.msra.mxu0 0
      %1075 = vmatprep.subr.bf16.mxu0 0
      %1076 = vmatpush1.bf16.msra.mxu0 0
      %1077 = vmatprep.subr.bf16.mxu0 0
      %1078 = vmatpush1.bf16.msra.mxu0 0
      %1079 = vmatprep.subr.bf16.mxu0 0
      %1080 = vmatpush1.bf16.msra.mxu0 0
      %1081 = vmatprep.subr.bf16.mxu0 0
      %1082 = vmatpush1.bf16.msra.mxu0 0
      %1083 = vmatprep.subr.bf16.mxu0 0
      %1084 = vmatpush1.bf16.msra.mxu0 %v1013
      %1085 = vmatprep.subr.bf16.mxu0 0
      %1086 = vmatpush2.bf16.msra.mxu0 0
      %1087 = vmatprep.subr.bf16.mxu0 0
      %1088 = vmatpush2.bf16.msra.mxu0 0
      %1089 = vmatprep.subr.bf16.mxu0 0
      %1090 = vmatpush2.bf16.msra.mxu0 0
      %1091 = vmatprep.subr.bf16.mxu0 0
      %1092 = vmatpush2.bf16.msra.mxu0 0
      %1093 = vmatprep.subr.bf16.mxu0 0
      %1094 = vmatpush2.bf16.msra.mxu0 0
      %1095 = vmatprep.subr.bf16.mxu0 0
      %1096 = vmatpush2.bf16.msra.mxu0 0
      %1097 = vmatprep.subr.bf16.mxu0 0
      %1098 = vmatpush2.bf16.msra.mxu0 0
      %1099 = vmatprep.subr.bf16.mxu0 0
      %1100 = vmatpush2.bf16.msra.mxu0 0
      %1101 = vmatprep.mubr.bf16.mxu0 0
      %1102 = vmatmul.mubr.bf16.gmra.mxu0 %v1016
      %v1103 = vpop.f32.mrf.mxu0
      %v1104 = vadd.f32 0.0, %v1103
      %v1105 = vpop.f32.mrf.mxu0
      %v1106 = vpop.f32.mrf.mxu0
      %v1107 = vadd.f32 0.0, %v1106
      %v1108 = vpop.f32.mrf.mxu0
      %1109 = vmatprep.mubr.bf16.mxu0 0
      %1110 = vmatmul.mubr.bf16.gmra.mxu0 %v1019
      %v1111 = vpop.f32.mrf.mxu0
      %v1112 = vadd.f32 0.0, %v1111
      %v1113 = vpop.f32.mrf.mxu0
      %v1114 = vpop.f32.mrf.mxu0
      %v1115 = vadd.f32 0.0, %v1114
      %v1116 = vpop.f32.mrf.mxu0
      %1117 = vmatprep.mubr.bf16.mxu0 0
      %1118 = vmatmul.mubr.bf16.gmra.mxu0 %v1022
      %v1119 = vpop.f32.mrf.mxu0
      %v1120 = vadd.f32 0.0, %v1119
      %v1121 = vpop.f32.mrf.mxu0
      %v1122 = vpop.f32.mrf.mxu0
      %v1123 = vadd.f32 0.0, %v1122
      %v1124 = vpop.f32.mrf.mxu0
      %1125 = vmatprep.mubr.bf16.mxu0 0
      %1126 = vmatmul.mubr.bf16.gmra.mxu0 %v1025
      %v1127 = vpop.f32.mrf.mxu0
      %v1128 = vadd.f32 0.0, %v1127
      %v1129 = vpop.f32.mrf.mxu0
      %v1130 = vpop.f32.mrf.mxu0
      %v1131 = vadd.f32 0.0, %v1130
      %v1132 = vpop.f32.mrf.mxu0
      %1133 = vmatprep.mubr.bf16.mxu0 0
      %1134 = vmatmul.mubr.bf16.gmra.mxu0 %v1028
      %v1135 = vpop.f32.mrf.mxu0
      %v1136 = vadd.f32 0.0, %v1135
      %v1137 = vpop.f32.mrf.mxu0
      %v1138 = vpop.f32.mrf.mxu0
      %v1139 = vadd.f32 0.0, %v1138
      %v1140 = vpop.f32.mrf.mxu0
      %1141 = vmatprep.mubr.bf16.mxu0 0
      %1142 = vmatmul.mubr.bf16.gmra.mxu0 %v1031
      %v1143 = vpop.f32.mrf.mxu0
      %v1144 = vadd.f32 0.0, %v1143
      %v1145 = vpop.f32.mrf.mxu0
      %v1146 = vpop.f32.mrf.mxu0
      %v1147 = vadd.f32 0.0, %v1146
      %v1148 = vpop.f32.mrf.mxu0
      %1149 = vmatprep.mubr.bf16.mxu0 0
      %1150 = vmatmul.mubr.bf16.gmra.mxu0 %v1034
      %v1151 = vpop.f32.mrf.mxu0
      %v1152 = vadd.f32 0.0, %v1151
      %v1153 = vpop.f32.mrf.mxu0
      %v1154 = vpop.f32.mrf.mxu0
      %v1155 = vadd.f32 0.0, %v1154
      %v1156 = vpop.f32.mrf.mxu0
      %1157 = vmatprep.mubr.bf16.mxu0 0
      %1158 = vmatmul.mubr.bf16.gmra.mxu0 %v1037
      %v1159 = vpop.f32.mrf.mxu0
      %v1160 = vadd.f32 0.0, %v1159
      %v1161 = vpop.f32.mrf.mxu0
      %v1162 = vpop.f32.mrf.mxu0
      %v1163 = vadd.f32 0.0, %v1162
      %v1164 = vpop.f32.mrf.mxu0
      %1165 = vmatprep.mubr.bf16.mxu0 0
      %1166 = vmatmul.mubr.bf16.gmra.mxu0 %v1040
      %v1167 = vpop.f32.mrf.mxu0
      %v1168 = vadd.f32 0.0, %v1167
      %v1169 = vpop.f32.mrf.mxu0
      %v1170 = vpop.f32.mrf.mxu0
      %v1171 = vadd.f32 0.0, %v1170
      %v1172 = vpop.f32.mrf.mxu0
      %1173 = vmatprep.mubr.bf16.mxu0 0
      %1174 = vmatmul.mubr.bf16.gmra.mxu0 %v1043
      %v1175 = vpop.f32.mrf.mxu0
      %v1176 = vadd.f32 0.0, %v1175
      %v1177 = vpop.f32.mrf.mxu0
      %v1178 = vpop.f32.mrf.mxu0
      %v1179 = vadd.f32 0.0, %v1178
      %v1180 = vpop.f32.mrf.mxu0
      %1181 = vmatprep.mubr.bf16.mxu0 0
      %1182 = vmatmul.mubr.bf16.gmra.mxu0 %v1046
      %v1183 = vpop.f32.mrf.mxu0
      %v1184 = vadd.f32 0.0, %v1183
      %v1185 = vpop.f32.mrf.mxu0
      %v1186 = vpop.f32.mrf.mxu0
      %v1187 = vadd.f32 0.0, %v1186
      %v1188 = vpop.f32.mrf.mxu0
      %1189 = vmatprep.mubr.bf16.mxu0 0
      %1190 = vmatmul.mubr.bf16.gmra.mxu0 %v1049
      %v1191 = vpop.f32.mrf.mxu0
      %v1192 = vadd.f32 0.0, %v1191
      %v1193 = vpop.f32.mrf.mxu0
      %v1194 = vpop.f32.mrf.mxu0
      %v1195 = vadd.f32 0.0, %v1194
      %v1196 = vpop.f32.mrf.mxu0
      %1197 = vmatprep.mubr.bf16.mxu0 0
      %1198 = vmatmul.mubr.bf16.gmra.mxu0 %v1052
      %v1199 = vpop.f32.mrf.mxu0
      %v1200 = vadd.f32 0.0, %v1199
      %v1201 = vpop.f32.mrf.mxu0
      %v1202 = vpop.f32.mrf.mxu0
      %v1203 = vadd.f32 0.0, %v1202
      %v1204 = vpop.f32.mrf.mxu0
      %1205 = vmatprep.mubr.bf16.mxu0 0
      %1206 = vmatmul.mubr.bf16.gmra.mxu0 %v1055
      %v1207 = vpop.f32.mrf.mxu0
      %v1208 = vadd.f32 0.0, %v1207
      %v1209 = vpop.f32.mrf.mxu0
      %v1210 = vpop.f32.mrf.mxu0
      %v1211 = vadd.f32 0.0, %v1210
      %v1212 = vpop.f32.mrf.mxu0
      %1213 = vmatprep.mubr.bf16.mxu0 0
      %1214 = vmatmul.mubr.bf16.gmra.mxu0 %v1058
      %v1215 = vpop.f32.mrf.mxu0
      %v1216 = vadd.f32 0.0, %v1215
      %v1217 = vpop.f32.mrf.mxu0
      %v1218 = vpop.f32.mrf.mxu0
      %v1219 = vadd.f32 0.0, %v1218
      %v1220 = vpop.f32.mrf.mxu0
      %1221 = vmatprep.mubr.bf16.mxu0 0
      %1222 = vmatmul.mubr.bf16.gmra.mxu0 %v1061
      %v1223 = vpop.f32.mrf.mxu0
      %v1224 = vadd.f32 0.0, %v1223
      %v1225 = vpop.f32.mrf.mxu0
      %v1226 = vpop.f32.mrf.mxu0
      %v1227 = vadd.f32 0.0, %v1226
      %v1228 = vpop.f32.mrf.mxu0
      %1229 = vmatprep.mubr.bf16.mxu0 0
      %1230 = vmatmul.mubr.bf16.gmra.mxu0 %v1064
      %v1231 = vpop.f32.mrf.mxu0
      %v1232 = vadd.f32 0.0, %v1231
      %v1233 = vpop.f32.mrf.mxu0
      %v1234 = vpop.f32.mrf.mxu0
      %v1235 = vadd.f32 0.0, %v1234
      %v1236 = vpop.f32.mrf.mxu0
      %1237 = vmatprep.mubr.bf16.mxu0 0
      %1238 = vmatmul.mubr.bf16.gmra.mxu0 %v1067
      %v1239 = vpop.f32.mrf.mxu0
      %v1240 = vadd.f32 0.0, %v1239
      %v1241 = vpop.f32.mrf.mxu0
      %v1242 = vpop.f32.mrf.mxu0
      %v1243 = vadd.f32 0.0, %v1242
      %v1244 = vpop.f32.mrf.mxu0
      %1245 = vdwg.mxu0
      %v1246 = vadd.f32 %v822, %v1104
      %v1247 = vadd.f32 %v825, %v1107
      %v1248 = vadd.f32 %v830, %v1112
      %v1249 = vadd.f32 %v833, %v1115
      %v1250 = vadd.f32 %v838, %v1120
      %v1251 = vadd.f32 %v841, %v1123
      %v1252 = vadd.f32 %v846, %v1128
      %v1253 = vadd.f32 %v849, %v1131
      %v1254 = vadd.f32 %v854, %v1136
      %v1255 = vadd.f32 %v857, %v1139
      %v1256 = vadd.f32 %v862, %v1144
      %v1257 = vadd.f32 %v865, %v1147
      %v1258 = vadd.f32 %v870, %v1152
      %v1259 = vadd.f32 %v873, %v1155
      %v1260 = vadd.f32 %v878, %v1160
      %v1261 = vadd.f32 %v881, %v1163
      %v1262 = vadd.f32 %v886, %v1168
      %v1263 = vadd.f32 %v889, %v1171
      %v1264 = vadd.f32 %v894, %v1176
      %v1265 = vadd.f32 %v897, %v1179
      %v1266 = vadd.f32 %v902, %v1184
      %v1267 = vadd.f32 %v905, %v1187
      %v1268 = vadd.f32 %v910, %v1192
      %v1269 = vadd.f32 %v913, %v1195
      %v1270 = vadd.f32 %v918, %v1200
      %v1271 = vadd.f32 %v921, %v1203
      %v1272 = vadd.f32 %v926, %v1208
      %v1273 = vadd.f32 %v929, %v1211
      %v1274 = vadd.f32 %v934, %v1216
      %v1275 = vadd.f32 %v937, %v1219
      %v1276 = vadd.f32 %v942, %v1224
      %v1277 = vadd.f32 %v945, %v1227
      %v1278 = vadd.f32 %v950, %v1232
      %v1279 = vadd.f32 %v953, %v1235
      %v1280 = vadd.f32 %v958, %v1240
      %v1281 = vadd.f32 %v961, %v1243
      %v1282 = vld [vmem:[%s206 + $0x8] sm:$0xe]
      %v1283 = vld [vmem:[%s206 + $0xc] sm:$0xf]
      %v1284 = vld [vmem:[%s206 + $0x10] sm:$0xf]
      %v1285 = vld [vmem:[%s206 + $0x14] sm:$0xf]
      %v1286 = vld [vmem:[%s206 + $0x18] sm:$0xf]
      %v1287 = vld [vmem:[%s206 + $0x1c] sm:$0xf]
      %v1288 = vld [vmem:[%s206 + $0x20] sm:$0xf]
      %v1289 = vld [vmem:[%s206 + $0x24] sm:$0xf]
      %v1290 = vld [vmem:[%s206 + $0x28] sm:$0xf]
      %v1291 = vld [vmem:[%s206 + $0x2c] sm:$0xf]
      %v1292 = vld [vmem:[%s206 + $0x30] sm:$0xf]
      %v1293 = vld [vmem:[%s206 + $0x34] sm:$0xf]
      %v1294 = vld [vmem:[%s206 + $0x38] sm:$0xf]
      %v1295 = vld [vmem:[%s206 + $0x3c] sm:$0xf]
      %v1296 = vld [vmem:[%s206 + $0x40] sm:$0xf]
      %v1297 = vld [vmem:[%s206 + $0x44] sm:$0xf]
      %v1298 = vld [vmem:[%s206 + $0x48] sm:$0xf]
      %v1299 = vld [vmem:[%s206 + $0x4c] sm:$0xf]
      %v1300 = vld [vmem:[%s206 + $0x50] sm:$0xf]
      %v1301 = vld [vmem:[%s206 + $0x54] sm:$0xf]
      %v1302 = vld [vmem:[%s206 + $0x58] sm:$0xf]
      %v1303 = vld [vmem:[%s206 + $0x5c] sm:$0xf]
      %v1304 = vld [vmem:[%s206 + $0x60] sm:$0xf]
      %v1305 = vld [vmem:[%s206 + $0x64] sm:$0xf]
      %v1306 = vld [vmem:[%s206 + $0x68] sm:$0xf]
      %v1307 = vld [vmem:[%s206 + $0x6c] sm:$0xf]
      %v1308 = vld [vmem:[%s206 + $0x70] sm:$0xf]
      %v1309 = vld [vmem:[%s206 + $0x74] sm:$0xf]
      %v1310 = vld [vmem:[%s206 + $0x78] sm:$0xf]
      %v1311 = vld [vmem:[%s206 + $0x7c] sm:$0xf]
      %v1312 = vld [vmem:[%s206 + $0x80] sm:$0xf]
      %v1313 = vld [vmem:[%s206 + $0x84] sm:$0xf]
      %v1314 = vld [vmem:[%s206 + $0x88] sm:$0xf]
      %v1315 = vld [vmem:[%s206 + $0x8c] sm:$0xf]
      %v1316 = vld [vmem:[%s206 + $0x90] sm:$0xf]
      %v1317 = vld [vmem:[%s206 + $0x94] sm:$0xf]
      %v1318 = vld [vmem:[%s206 + $0x98] sm:$0x1]
      %s1319 = scalar_lea.vmem %s210, 24
      %v1320 = vld [vmem:[%s1319] sm:$0xf]
      %v1321 = vld [vmem:[%s1319 + $0x4] sm:$0xf]
      %v1359 = vunpack.c.l.b16 %v1282
      %v1360 = vunpack.c.l.b16 %v1283
      %v1361 = vunpack.c.l.b16 %v1284
      %v1362 = vunpack.c.l.b16 %v1285
      %v1363 = vunpack.c.l.b16 %v1286
      %v1364 = vunpack.c.l.b16 %v1287
      %v1365 = vunpack.c.l.b16 %v1288
      %v1366 = vunpack.c.l.b16 %v1289
      %v1367 = vunpack.c.l.b16 %v1290
      %v1368 = vunpack.c.l.b16 %v1291
      %v1369 = vunpack.c.l.b16 %v1292
      %v1370 = vunpack.c.l.b16 %v1293
      %v1371 = vunpack.c.l.b16 %v1294
      %v1372 = vunpack.c.l.b16 %v1295
      %v1373 = vunpack.c.l.b16 %v1296
      %v1374 = vunpack.c.l.b16 %v1297
      %v1375 = vunpack.c.l.b16 %v1298
      %v1376 = vunpack.c.l.b16 %v1299
      %v1377 = vunpack.c.l.b16 %v1300
      %v1378 = vunpack.c.l.b16 %v1301
      %v1379 = vunpack.c.l.b16 %v1302
      %v1380 = vunpack.c.l.b16 %v1303
      %v1381 = vunpack.c.l.b16 %v1304
      %v1382 = vunpack.c.l.b16 %v1305
      %v1383 = vunpack.c.l.b16 %v1306
      %v1384 = vunpack.c.l.b16 %v1307
      %v1385 = vunpack.c.l.b16 %v1308
      %v1386 = vunpack.c.l.b16 %v1309
      %v1387 = vunpack.c.l.b16 %v1310
      %v1388 = vunpack.c.l.b16 %v1311
      %v1389 = vunpack.c.l.b16 %v1312
      %v1390 = vunpack.c.l.b16 %v1313
      %v1391 = vunpack.c.l.b16 %v1314
      %v1392 = vunpack.c.l.b16 %v1315
      %v1393 = vunpack.c.l.b16 %v1316
      %v1394 = vunpack.c.l.b16 %v1317
      %v1395 = vunpack.c.l.b16 %v1318
      %v1396 = vpack.c.b16 %v1360, %v1359
      %v1397 = vpack.c.b16 %v1362, %v1361
      %v1398 = vpack.c.b16 %v1364, %v1363
      %v1399 = vpack.c.b16 %v1366, %v1365
      %v1400 = vpack.c.b16 %v1368, %v1367
      %v1401 = vpack.c.b16 %v1370, %v1369
      %v1402 = vpack.c.b16 %v1372, %v1371
      %v1403 = vpack.c.b16 %v1374, %v1373
      %v1404 = vpack.c.b16 %v1376, %v1375
      %v1405 = vpack.c.b16 %v1378, %v1377
      %v1406 = vpack.c.b16 %v1380, %v1379
      %v1407 = vpack.c.b16 %v1382, %v1381
      %v1408 = vpack.c.b16 %v1384, %v1383
      %v1409 = vpack.c.b16 %v1386, %v1385
      %v1410 = vpack.c.b16 %v1388, %v1387
      %v1411 = vpack.c.b16 %v1390, %v1389
      %v1412 = vpack.c.b16 %v1392, %v1391
      %v1413 = vpack.c.b16 %v1394, %v1393
      %v1414 = vpack.c.b16 %v1395, %v1395
      %v1415 = vrot.slane %v1396, 1
      %v1416 = vrot.slane %v1397, 1
      %v1417 = vsel %vm971, %v1415, %v1416
      %v1418 = vrot.slane %v1398, 1
      %v1419 = vsel %vm971, %v1416, %v1418
      %v1420 = vrot.slane %v1399, 1
      %v1421 = vsel %vm971, %v1418, %v1420
      %v1422 = vrot.slane %v1400, 1
      %v1423 = vsel %vm971, %v1420, %v1422
      %v1424 = vrot.slane %v1401, 1
      %v1425 = vsel %vm971, %v1422, %v1424
      %v1426 = vrot.slane %v1402, 1
      %v1427 = vsel %vm971, %v1424, %v1426
      %v1428 = vrot.slane %v1403, 1
      %v1429 = vsel %vm971, %v1426, %v1428
      %v1430 = vrot.slane %v1404, 1
      %v1431 = vsel %vm971, %v1428, %v1430
      %v1432 = vrot.slane %v1405, 1
      %v1433 = vsel %vm971, %v1430, %v1432
      %v1434 = vrot.slane %v1406, 1
      %v1435 = vsel %vm971, %v1432, %v1434
      %v1436 = vrot.slane %v1407, 1
      %v1437 = vsel %vm971, %v1434, %v1436
      %v1438 = vrot.slane %v1408, 1
      %v1439 = vsel %vm971, %v1436, %v1438
      %v1440 = vrot.slane %v1409, 1
      %v1441 = vsel %vm971, %v1438, %v1440
      %v1442 = vrot.slane %v1410, 1
      %v1443 = vsel %vm971, %v1440, %v1442
      %v1444 = vrot.slane %v1411, 1
      %v1445 = vsel %vm971, %v1442, %v1444
      %v1446 = vrot.slane %v1412, 1
      %v1447 = vsel %vm971, %v1444, %v1446
      %v1448 = vrot.slane %v1413, 1
      %v1449 = vsel %vm971, %v1446, %v1448
      %v1450 = vrot.slane %v1414, 1
      %v1451 = vsel %vm971, %v1448, %v1450
      %v1454 = vunpack.c.l.b16 %v1320
      %v1455 = vunpack.c.l.b16 %v1321
      %v1456 = vpack.c.b16 %v1455, %v1454
      %v1459 = vsel %vm513, %v1417, 0
      %v1462 = vsel %vm513, %v1419, 0
      %v1465 = vsel %vm513, %v1421, 0
      %v1468 = vsel %vm513, %v1423, 0
      %v1471 = vsel %vm513, %v1425, 0
      %v1474 = vsel %vm513, %v1427, 0
      %v1477 = vsel %vm513, %v1429, 0
      %v1480 = vsel %vm513, %v1431, 0
      %v1483 = vsel %vm513, %v1433, 0
      %v1486 = vsel %vm513, %v1435, 0
      %v1489 = vsel %vm513, %v1437, 0
      %v1492 = vsel %vm513, %v1439, 0
      %v1495 = vsel %vm513, %v1441, 0
      %v1498 = vsel %vm513, %v1443, 0
      %v1501 = vsel %vm513, %v1445, 0
      %v1504 = vsel %vm513, %v1447, 0
      %v1507 = vsel %vm513, %v1449, 0
      %v1510 = vsel %vm513, %v1451, 0
      %1512 = vmatprep.subr.bf16.mxu0 0
      %1513 = vmatpush1.bf16.msra.mxu0 0
      %1514 = vmatprep.subr.bf16.mxu0 0
      %1515 = vmatpush1.bf16.msra.mxu0 0
      %1516 = vmatprep.subr.bf16.mxu0 0
      %1517 = vmatpush1.bf16.msra.mxu0 0
      %1518 = vmatprep.subr.bf16.mxu0 0
      %1519 = vmatpush1.bf16.msra.mxu0 0
      %1520 = vmatprep.subr.bf16.mxu0 0
      %1521 = vmatpush1.bf16.msra.mxu0 0
      %1522 = vmatprep.subr.bf16.mxu0 0
      %1523 = vmatpush1.bf16.msra.mxu0 0
      %1524 = vmatprep.subr.bf16.mxu0 0
      %1525 = vmatpush1.bf16.msra.mxu0 0
      %1526 = vmatprep.subr.bf16.mxu0 0
      %1527 = vmatpush1.bf16.msra.mxu0 %v1456
      %1528 = vmatprep.subr.bf16.mxu0 0
      %1529 = vmatpush2.bf16.msra.mxu0 0
      %1530 = vmatprep.subr.bf16.mxu0 0
      %1531 = vmatpush2.bf16.msra.mxu0 0
      %1532 = vmatprep.subr.bf16.mxu0 0
      %1533 = vmatpush2.bf16.msra.mxu0 0
      %1534 = vmatprep.subr.bf16.mxu0 0
      %1535 = vmatpush2.bf16.msra.mxu0 0
      %1536 = vmatprep.subr.bf16.mxu0 0
      %1537 = vmatpush2.bf16.msra.mxu0 0
      %1538 = vmatprep.subr.bf16.mxu0 0
      %1539 = vmatpush2.bf16.msra.mxu0 0
      %1540 = vmatprep.subr.bf16.mxu0 0
      %1541 = vmatpush2.bf16.msra.mxu0 0
      %1542 = vmatprep.subr.bf16.mxu0 0
      %1543 = vmatpush2.bf16.msra.mxu0 0
      %1544 = vmatprep.mubr.bf16.mxu0 0
      %1545 = vmatmul.mubr.bf16.gmra.mxu0 %v1459
      %v1546 = vpop.f32.mrf.mxu0
      %v1547 = vadd.f32 0.0, %v1546
      %v1548 = vpop.f32.mrf.mxu0
      %v1549 = vpop.f32.mrf.mxu0
      %v1550 = vadd.f32 0.0, %v1549
      %v1551 = vpop.f32.mrf.mxu0
      %1552 = vmatprep.mubr.bf16.mxu0 0
      %1553 = vmatmul.mubr.bf16.gmra.mxu0 %v1462
      %v1554 = vpop.f32.mrf.mxu0
      %v1555 = vadd.f32 0.0, %v1554
      %v1556 = vpop.f32.mrf.mxu0
      %v1557 = vpop.f32.mrf.mxu0
      %v1558 = vadd.f32 0.0, %v1557
      %v1559 = vpop.f32.mrf.mxu0
      %1560 = vmatprep.mubr.bf16.mxu0 0
      %1561 = vmatmul.mubr.bf16.gmra.mxu0 %v1465
      %v1562 = vpop.f32.mrf.mxu0
      %v1563 = vadd.f32 0.0, %v1562
      %v1564 = vpop.f32.mrf.mxu0
      %v1565 = vpop.f32.mrf.mxu0
      %v1566 = vadd.f32 0.0, %v1565
      %v1567 = vpop.f32.mrf.mxu0
      %1568 = vmatprep.mubr.bf16.mxu0 0
      %1569 = vmatmul.mubr.bf16.gmra.mxu0 %v1468
      %v1570 = vpop.f32.mrf.mxu0
      %v1571 = vadd.f32 0.0, %v1570
      %v1572 = vpop.f32.mrf.mxu0
      %v1573 = vpop.f32.mrf.mxu0
      %v1574 = vadd.f32 0.0, %v1573
      %v1575 = vpop.f32.mrf.mxu0
      %1576 = vmatprep.mubr.bf16.mxu0 0
      %1577 = vmatmul.mubr.bf16.gmra.mxu0 %v1471
      %v1578 = vpop.f32.mrf.mxu0
      %v1579 = vadd.f32 0.0, %v1578
      %v1580 = vpop.f32.mrf.mxu0
      %v1581 = vpop.f32.mrf.mxu0
      %v1582 = vadd.f32 0.0, %v1581
      %v1583 = vpop.f32.mrf.mxu0
      %1584 = vmatprep.mubr.bf16.mxu0 0
      %1585 = vmatmul.mubr.bf16.gmra.mxu0 %v1474
      %v1586 = vpop.f32.mrf.mxu0
      %v1587 = vadd.f32 0.0, %v1586
      %v1588 = vpop.f32.mrf.mxu0
      %v1589 = vpop.f32.mrf.mxu0
      %v1590 = vadd.f32 0.0, %v1589
      %v1591 = vpop.f32.mrf.mxu0
      %1592 = vmatprep.mubr.bf16.mxu0 0
      %1593 = vmatmul.mubr.bf16.gmra.mxu0 %v1477
      %v1594 = vpop.f32.mrf.mxu0
      %v1595 = vadd.f32 0.0, %v1594
      %v1596 = vpop.f32.mrf.mxu0
      %v1597 = vpop.f32.mrf.mxu0
      %v1598 = vadd.f32 0.0, %v1597
      %v1599 = vpop.f32.mrf.mxu0
      %1600 = vmatprep.mubr.bf16.mxu0 0
      %1601 = vmatmul.mubr.bf16.gmra.mxu0 %v1480
      %v1602 = vpop.f32.mrf.mxu0
      %v1603 = vadd.f32 0.0, %v1602
      %v1604 = vpop.f32.mrf.mxu0
      %v1605 = vpop.f32.mrf.mxu0
      %v1606 = vadd.f32 0.0, %v1605
      %v1607 = vpop.f32.mrf.mxu0
      %1608 = vmatprep.mubr.bf16.mxu0 0
      %1609 = vmatmul.mubr.bf16.gmra.mxu0 %v1483
      %v1610 = vpop.f32.mrf.mxu0
      %v1611 = vadd.f32 0.0, %v1610
      %v1612 = vpop.f32.mrf.mxu0
      %v1613 = vpop.f32.mrf.mxu0
      %v1614 = vadd.f32 0.0, %v1613
      %v1615 = vpop.f32.mrf.mxu0
      %1616 = vmatprep.mubr.bf16.mxu0 0
      %1617 = vmatmul.mubr.bf16.gmra.mxu0 %v1486
      %v1618 = vpop.f32.mrf.mxu0
      %v1619 = vadd.f32 0.0, %v1618
      %v1620 = vpop.f32.mrf.mxu0
      %v1621 = vpop.f32.mrf.mxu0
      %v1622 = vadd.f32 0.0, %v1621
      %v1623 = vpop.f32.mrf.mxu0
      %1624 = vmatprep.mubr.bf16.mxu0 0
      %1625 = vmatmul.mubr.bf16.gmra.mxu0 %v1489
      %v1626 = vpop.f32.mrf.mxu0
      %v1627 = vadd.f32 0.0, %v1626
      %v1628 = vpop.f32.mrf.mxu0
      %v1629 = vpop.f32.mrf.mxu0
      %v1630 = vadd.f32 0.0, %v1629
      %v1631 = vpop.f32.mrf.mxu0
      %1632 = vmatprep.mubr.bf16.mxu0 0
      %1633 = vmatmul.mubr.bf16.gmra.mxu0 %v1492
      %v1634 = vpop.f32.mrf.mxu0
      %v1635 = vadd.f32 0.0, %v1634
      %v1636 = vpop.f32.mrf.mxu0
      %v1637 = vpop.f32.mrf.mxu0
      %v1638 = vadd.f32 0.0, %v1637
      %v1639 = vpop.f32.mrf.mxu0
      %1640 = vmatprep.mubr.bf16.mxu0 0
      %1641 = vmatmul.mubr.bf16.gmra.mxu0 %v1495
      %v1642 = vpop.f32.mrf.mxu0
      %v1643 = vadd.f32 0.0, %v1642
      %v1644 = vpop.f32.mrf.mxu0
      %v1645 = vpop.f32.mrf.mxu0
      %v1646 = vadd.f32 0.0, %v1645
      %v1647 = vpop.f32.mrf.mxu0
      %1648 = vmatprep.mubr.bf16.mxu0 0
      %1649 = vmatmul.mubr.bf16.gmra.mxu0 %v1498
      %v1650 = vpop.f32.mrf.mxu0
      %v1651 = vadd.f32 0.0, %v1650
      %v1652 = vpop.f32.mrf.mxu0
      %v1653 = vpop.f32.mrf.mxu0
      %v1654 = vadd.f32 0.0, %v1653
      %v1655 = vpop.f32.mrf.mxu0
      %1656 = vmatprep.mubr.bf16.mxu0 0
      %1657 = vmatmul.mubr.bf16.gmra.mxu0 %v1501
      %v1658 = vpop.f32.mrf.mxu0
      %v1659 = vadd.f32 0.0, %v1658
      %v1660 = vpop.f32.mrf.mxu0
      %v1661 = vpop.f32.mrf.mxu0
      %v1662 = vadd.f32 0.0, %v1661
      %v1663 = vpop.f32.mrf.mxu0
      %1664 = vmatprep.mubr.bf16.mxu0 0
      %1665 = vmatmul.mubr.bf16.gmra.mxu0 %v1504
      %v1666 = vpop.f32.mrf.mxu0
      %v1667 = vadd.f32 0.0, %v1666
      %v1668 = vpop.f32.mrf.mxu0
      %v1669 = vpop.f32.mrf.mxu0
      %v1670 = vadd.f32 0.0, %v1669
      %v1671 = vpop.f32.mrf.mxu0
      %1672 = vmatprep.mubr.bf16.mxu0 0
      %1673 = vmatmul.mubr.bf16.gmra.mxu0 %v1507
      %v1674 = vpop.f32.mrf.mxu0
      %v1675 = vadd.f32 0.0, %v1674
      %v1676 = vpop.f32.mrf.mxu0
      %v1677 = vpop.f32.mrf.mxu0
      %v1678 = vadd.f32 0.0, %v1677
      %v1679 = vpop.f32.mrf.mxu0
      %1680 = vmatprep.mubr.bf16.mxu0 0
      %1681 = vmatmul.mubr.bf16.gmra.mxu0 %v1510
      %v1682 = vpop.f32.mrf.mxu0
      %v1683 = vadd.f32 0.0, %v1682
      %v1684 = vpop.f32.mrf.mxu0
      %v1685 = vpop.f32.mrf.mxu0
      %v1686 = vadd.f32 0.0, %v1685
      %v1687 = vpop.f32.mrf.mxu0
      %1688 = vdwg.mxu0
      %v1689 = vadd.f32 %v1246, %v1547
      %v1690 = vadd.f32 %v1247, %v1550
      %v1691 = vadd.f32 %v1248, %v1555
      %v1692 = vadd.f32 %v1249, %v1558
      %v1693 = vadd.f32 %v1250, %v1563
      %v1694 = vadd.f32 %v1251, %v1566
      %v1695 = vadd.f32 %v1252, %v1571
      %v1696 = vadd.f32 %v1253, %v1574
      %v1697 = vadd.f32 %v1254, %v1579
      %v1698 = vadd.f32 %v1255, %v1582
      %v1699 = vadd.f32 %v1256, %v1587
      %v1700 = vadd.f32 %v1257, %v1590
      %v1701 = vadd.f32 %v1258, %v1595
      %v1702 = vadd.f32 %v1259, %v1598
      %v1703 = vadd.f32 %v1260, %v1603
      %v1704 = vadd.f32 %v1261, %v1606
      %v1705 = vadd.f32 %v1262, %v1611
      %v1706 = vadd.f32 %v1263, %v1614
      %v1707 = vadd.f32 %v1264, %v1619
      %v1708 = vadd.f32 %v1265, %v1622
      %v1709 = vadd.f32 %v1266, %v1627
      %v1710 = vadd.f32 %v1267, %v1630
      %v1711 = vadd.f32 %v1268, %v1635
      %v1712 = vadd.f32 %v1269, %v1638
      %v1713 = vadd.f32 %v1270, %v1643
      %v1714 = vadd.f32 %v1271, %v1646
      %v1715 = vadd.f32 %v1272, %v1651
      %v1716 = vadd.f32 %v1273, %v1654
      %v1717 = vadd.f32 %v1274, %v1659
      %v1718 = vadd.f32 %v1275, %v1662
      %v1719 = vadd.f32 %v1276, %v1667
      %v1720 = vadd.f32 %v1277, %v1670
      %v1721 = vadd.f32 %v1278, %v1675
      %v1722 = vadd.f32 %v1279, %v1678
      %v1723 = vadd.f32 %v1280, %v1683
      %v1724 = vadd.f32 %v1281, %v1686
      %v1725 = vld [vmem:[%s206 + $0x98] sm:$0x3]
      %s1726 = scalar_lea.vmem %s210, 32
      %v1727 = vld [vmem:[%s1726] sm:$0xf]
      %v1728 = vld [vmem:[%s1726 + $0x4] sm:$0xf]
      %v1730 = vunpack.c.l.b16 %v1725
      %v1731 = vpack.c.b16 %v1730, %v1730
      %vm1732 = vsmask.f32 6400
      %v1734 = vshrl.u32 %v1396, 16
      %v1736 = vrot.slane %v1734, 1
      %v1737 = vshll.u32 %v1396, 16
      %v1739 = vrot.slane %v1737, 2
      %v1740 = vor.u32 %v1736, %v1739
      %v1742 = vshrl.u32 %v1397, 16
      %v1744 = vrot.slane %v1742, 1
      %v1745 = vshll.u32 %v1397, 16
      %v1747 = vrot.slane %v1745, 2
      %v1748 = vor.u32 %v1744, %v1747
      %v1749 = vsel %vm1732, %v1740, %v1748
      %v1751 = vshrl.u32 %v1398, 16
      %v1753 = vrot.slane %v1751, 1
      %v1754 = vshll.u32 %v1398, 16
      %v1756 = vrot.slane %v1754, 2
      %v1757 = vor.u32 %v1753, %v1756
      %v1758 = vsel %vm1732, %v1748, %v1757
      %v1760 = vshrl.u32 %v1399, 16
      %v1762 = vrot.slane %v1760, 1
      %v1763 = vshll.u32 %v1399, 16
      %v1765 = vrot.slane %v1763, 2
      %v1766 = vor.u32 %v1762, %v1765
      %v1767 = vsel %vm1732, %v1757, %v1766
      %v1769 = vshrl.u32 %v1400, 16
      %v1771 = vrot.slane %v1769, 1
      %v1772 = vshll.u32 %v1400, 16
      %v1774 = vrot.slane %v1772, 2
      %v1775 = vor.u32 %v1771, %v1774
      %v1776 = vsel %vm1732, %v1766, %v1775
      %v1778 = vshrl.u32 %v1401, 16
      %v1780 = vrot.slane %v1778, 1
      %v1781 = vshll.u32 %v1401, 16
      %v1783 = vrot.slane %v1781, 2
      %v1784 = vor.u32 %v1780, %v1783
      %v1785 = vsel %vm1732, %v1775, %v1784
      %v1787 = vshrl.u32 %v1402, 16
      %v1789 = vrot.slane %v1787, 1
      %v1790 = vshll.u32 %v1402, 16
      %v1792 = vrot.slane %v1790, 2
      %v1793 = vor.u32 %v1789, %v1792
      %v1794 = vsel %vm1732, %v1784, %v1793
      %v1796 = vshrl.u32 %v1403, 16
      %v1798 = vrot.slane %v1796, 1
      %v1799 = vshll.u32 %v1403, 16
      %v1801 = vrot.slane %v1799, 2
      %v1802 = vor.u32 %v1798, %v1801
      %v1803 = vsel %vm1732, %v1793, %v1802
      %v1805 = vshrl.u32 %v1404, 16
      %v1807 = vrot.slane %v1805, 1
      %v1808 = vshll.u32 %v1404, 16
      %v1810 = vrot.slane %v1808, 2
      %v1811 = vor.u32 %v1807, %v1810
      %v1812 = vsel %vm1732, %v1802, %v1811
      %v1814 = vshrl.u32 %v1405, 16
      %v1816 = vrot.slane %v1814, 1
      %v1817 = vshll.u32 %v1405, 16
      %v1819 = vrot.slane %v1817, 2
      %v1820 = vor.u32 %v1816, %v1819
      %v1821 = vsel %vm1732, %v1811, %v1820
      %v1823 = vshrl.u32 %v1406, 16
      %v1825 = vrot.slane %v1823, 1
      %v1826 = vshll.u32 %v1406, 16
      %v1828 = vrot.slane %v1826, 2
      %v1829 = vor.u32 %v1825, %v1828
      %v1830 = vsel %vm1732, %v1820, %v1829
      %v1832 = vshrl.u32 %v1407, 16
      %v1834 = vrot.slane %v1832, 1
      %v1835 = vshll.u32 %v1407, 16
      %v1837 = vrot.slane %v1835, 2
      %v1838 = vor.u32 %v1834, %v1837
      %v1839 = vsel %vm1732, %v1829, %v1838
      %v1841 = vshrl.u32 %v1408, 16
      %v1843 = vrot.slane %v1841, 1
      %v1844 = vshll.u32 %v1408, 16
      %v1846 = vrot.slane %v1844, 2
      %v1847 = vor.u32 %v1843, %v1846
      %v1848 = vsel %vm1732, %v1838, %v1847
      %v1850 = vshrl.u32 %v1409, 16
      %v1852 = vrot.slane %v1850, 1
      %v1853 = vshll.u32 %v1409, 16
      %v1855 = vrot.slane %v1853, 2
      %v1856 = vor.u32 %v1852, %v1855
      %v1857 = vsel %vm1732, %v1847, %v1856
      %v1859 = vshrl.u32 %v1410, 16
      %v1861 = vrot.slane %v1859, 1
      %v1862 = vshll.u32 %v1410, 16
      %v1864 = vrot.slane %v1862, 2
      %v1865 = vor.u32 %v1861, %v1864
      %v1866 = vsel %vm1732, %v1856, %v1865
      %v1868 = vshrl.u32 %v1411, 16
      %v1870 = vrot.slane %v1868, 1
      %v1871 = vshll.u32 %v1411, 16
      %v1873 = vrot.slane %v1871, 2
      %v1874 = vor.u32 %v1870, %v1873
      %v1875 = vsel %vm1732, %v1865, %v1874
      %v1877 = vshrl.u32 %v1412, 16
      %v1879 = vrot.slane %v1877, 1
      %v1880 = vshll.u32 %v1412, 16
      %v1882 = vrot.slane %v1880, 2
      %v1883 = vor.u32 %v1879, %v1882
      %v1884 = vsel %vm1732, %v1874, %v1883
      %v1886 = vshrl.u32 %v1413, 16
      %v1888 = vrot.slane %v1886, 1
      %v1889 = vshll.u32 %v1413, 16
      %v1891 = vrot.slane %v1889, 2
      %v1892 = vor.u32 %v1888, %v1891
      %v1893 = vsel %vm1732, %v1883, %v1892
      %v1895 = vshrl.u32 %v1731, 16
      %v1897 = vrot.slane %v1895, 1
      %v1898 = vshll.u32 %v1731, 16
      %v1900 = vrot.slane %v1898, 2
      %v1901 = vor.u32 %v1897, %v1900
      %v1902 = vsel %vm1732, %v1892, %v1901
      %v1905 = vunpack.c.l.b16 %v1727
      %v1906 = vunpack.c.l.b16 %v1728
      %v1907 = vpack.c.b16 %v1906, %v1905
      %v1910 = vsel %vm513, %v1749, 0
      %v1913 = vsel %vm513, %v1758, 0
      %v1916 = vsel %vm513, %v1767, 0
      %v1919 = vsel %vm513, %v1776, 0
      %v1922 = vsel %vm513, %v1785, 0
      %v1925 = vsel %vm513, %v1794, 0
      %v1928 = vsel %vm513, %v1803, 0
      %v1931 = vsel %vm513, %v1812, 0
      %v1934 = vsel %vm513, %v1821, 0
      %v1937 = vsel %vm513, %v1830, 0
      %v1940 = vsel %vm513, %v1839, 0
      %v1943 = vsel %vm513, %v1848, 0
      %v1946 = vsel %vm513, %v1857, 0
      %v1949 = vsel %vm513, %v1866, 0
      %v1952 = vsel %vm513, %v1875, 0
      %v1955 = vsel %vm513, %v1884, 0
      %v1958 = vsel %vm513, %v1893, 0
      %v1961 = vsel %vm513, %v1902, 0
      %1963 = vmatprep.subr.bf16.mxu0 0
      %1964 = vmatpush1.bf16.msra.mxu0 0
      %1965 = vmatprep.subr.bf16.mxu0 0
      %1966 = vmatpush1.bf16.msra.mxu0 0
      %1967 = vmatprep.subr.bf16.mxu0 0
      %1968 = vmatpush1.bf16.msra.mxu0 0
      %1969 = vmatprep.subr.bf16.mxu0 0
      %1970 = vmatpush1.bf16.msra.mxu0 0
      %1971 = vmatprep.subr.bf16.mxu0 0
      %1972 = vmatpush1.bf16.msra.mxu0 0
      %1973 = vmatprep.subr.bf16.mxu0 0
      %1974 = vmatpush1.bf16.msra.mxu0 0
      %1975 = vmatprep.subr.bf16.mxu0 0
      %1976 = vmatpush1.bf16.msra.mxu0 0
      %1977 = vmatprep.subr.bf16.mxu0 0
      %1978 = vmatpush1.bf16.msra.mxu0 %v1907
      %1979 = vmatprep.subr.bf16.mxu0 0
      %1980 = vmatpush2.bf16.msra.mxu0 0
      %1981 = vmatprep.subr.bf16.mxu0 0
      %1982 = vmatpush2.bf16.msra.mxu0 0
      %1983 = vmatprep.subr.bf16.mxu0 0
      %1984 = vmatpush2.bf16.msra.mxu0 0
      %1985 = vmatprep.subr.bf16.mxu0 0
      %1986 = vmatpush2.bf16.msra.mxu0 0
      %1987 = vmatprep.subr.bf16.mxu0 0
      %1988 = vmatpush2.bf16.msra.mxu0 0
      %1989 = vmatprep.subr.bf16.mxu0 0
      %1990 = vmatpush2.bf16.msra.mxu0 0
      %1991 = vmatprep.subr.bf16.mxu0 0
      %1992 = vmatpush2.bf16.msra.mxu0 0
      %1993 = vmatprep.subr.bf16.mxu0 0
      %1994 = vmatpush2.bf16.msra.mxu0 0
      %1995 = vmatprep.mubr.bf16.mxu0 0
      %1996 = vmatmul.mubr.bf16.gmra.mxu0 %v1910
      %v1997 = vpop.f32.mrf.mxu0
      %v1998 = vadd.f32 0.0, %v1997
      %v1999 = vpop.f32.mrf.mxu0
      %v2000 = vpop.f32.mrf.mxu0
      %v2001 = vadd.f32 0.0, %v2000
      %v2002 = vpop.f32.mrf.mxu0
      %2003 = vmatprep.mubr.bf16.mxu0 0
      %2004 = vmatmul.mubr.bf16.gmra.mxu0 %v1913
      %v2005 = vpop.f32.mrf.mxu0
      %v2006 = vadd.f32 0.0, %v2005
      %v2007 = vpop.f32.mrf.mxu0
      %v2008 = vpop.f32.mrf.mxu0
      %v2009 = vadd.f32 0.0, %v2008
      %v2010 = vpop.f32.mrf.mxu0
      %2011 = vmatprep.mubr.bf16.mxu0 0
      %2012 = vmatmul.mubr.bf16.gmra.mxu0 %v1916
      %v2013 = vpop.f32.mrf.mxu0
      %v2014 = vadd.f32 0.0, %v2013
      %v2015 = vpop.f32.mrf.mxu0
      %v2016 = vpop.f32.mrf.mxu0
      %v2017 = vadd.f32 0.0, %v2016
      %v2018 = vpop.f32.mrf.mxu0
      %2019 = vmatprep.mubr.bf16.mxu0 0
      %2020 = vmatmul.mubr.bf16.gmra.mxu0 %v1919
      %v2021 = vpop.f32.mrf.mxu0
      %v2022 = vadd.f32 0.0, %v2021
      %v2023 = vpop.f32.mrf.mxu0
      %v2024 = vpop.f32.mrf.mxu0
      %v2025 = vadd.f32 0.0, %v2024
      %v2026 = vpop.f32.mrf.mxu0
      %2027 = vmatprep.mubr.bf16.mxu0 0
      %2028 = vmatmul.mubr.bf16.gmra.mxu0 %v1922
      %v2029 = vpop.f32.mrf.mxu0
      %v2030 = vadd.f32 0.0, %v2029
      %v2031 = vpop.f32.mrf.mxu0
      %v2032 = vpop.f32.mrf.mxu0
      %v2033 = vadd.f32 0.0, %v2032
      %v2034 = vpop.f32.mrf.mxu0
      %2035 = vmatprep.mubr.bf16.mxu0 0
      %2036 = vmatmul.mubr.bf16.gmra.mxu0 %v1925
      %v2037 = vpop.f32.mrf.mxu0
      %v2038 = vadd.f32 0.0, %v2037
      %v2039 = vpop.f32.mrf.mxu0
      %v2040 = vpop.f32.mrf.mxu0
      %v2041 = vadd.f32 0.0, %v2040
      %v2042 = vpop.f32.mrf.mxu0
      %2043 = vmatprep.mubr.bf16.mxu0 0
      %2044 = vmatmul.mubr.bf16.gmra.mxu0 %v1928
      %v2045 = vpop.f32.mrf.mxu0
      %v2046 = vadd.f32 0.0, %v2045
      %v2047 = vpop.f32.mrf.mxu0
      %v2048 = vpop.f32.mrf.mxu0
      %v2049 = vadd.f32 0.0, %v2048
      %v2050 = vpop.f32.mrf.mxu0
      %2051 = vmatprep.mubr.bf16.mxu0 0
      %2052 = vmatmul.mubr.bf16.gmra.mxu0 %v1931
      %v2053 = vpop.f32.mrf.mxu0
      %v2054 = vadd.f32 0.0, %v2053
      %v2055 = vpop.f32.mrf.mxu0
      %v2056 = vpop.f32.mrf.mxu0
      %v2057 = vadd.f32 0.0, %v2056
      %v2058 = vpop.f32.mrf.mxu0
      %2059 = vmatprep.mubr.bf16.mxu0 0
      %2060 = vmatmul.mubr.bf16.gmra.mxu0 %v1934
      %v2061 = vpop.f32.mrf.mxu0
      %v2062 = vadd.f32 0.0, %v2061
      %v2063 = vpop.f32.mrf.mxu0
      %v2064 = vpop.f32.mrf.mxu0
      %v2065 = vadd.f32 0.0, %v2064
      %v2066 = vpop.f32.mrf.mxu0
      %2067 = vmatprep.mubr.bf16.mxu0 0
      %2068 = vmatmul.mubr.bf16.gmra.mxu0 %v1937
      %v2069 = vpop.f32.mrf.mxu0
      %v2070 = vadd.f32 0.0, %v2069
      %v2071 = vpop.f32.mrf.mxu0
      %v2072 = vpop.f32.mrf.mxu0
      %v2073 = vadd.f32 0.0, %v2072
      %v2074 = vpop.f32.mrf.mxu0
      %2075 = vmatprep.mubr.bf16.mxu0 0
      %2076 = vmatmul.mubr.bf16.gmra.mxu0 %v1940
      %v2077 = vpop.f32.mrf.mxu0
      %v2078 = vadd.f32 0.0, %v2077
      %v2079 = vpop.f32.mrf.mxu0
      %v2080 = vpop.f32.mrf.mxu0
      %v2081 = vadd.f32 0.0, %v2080
      %v2082 = vpop.f32.mrf.mxu0
      %2083 = vmatprep.mubr.bf16.mxu0 0
      %2084 = vmatmul.mubr.bf16.gmra.mxu0 %v1943
      %v2085 = vpop.f32.mrf.mxu0
      %v2086 = vadd.f32 0.0, %v2085
      %v2087 = vpop.f32.mrf.mxu0
      %v2088 = vpop.f32.mrf.mxu0
      %v2089 = vadd.f32 0.0, %v2088
      %v2090 = vpop.f32.mrf.mxu0
      %2091 = vmatprep.mubr.bf16.mxu0 0
      %2092 = vmatmul.mubr.bf16.gmra.mxu0 %v1946
      %v2093 = vpop.f32.mrf.mxu0
      %v2094 = vadd.f32 0.0, %v2093
      %v2095 = vpop.f32.mrf.mxu0
      %v2096 = vpop.f32.mrf.mxu0
      %v2097 = vadd.f32 0.0, %v2096
      %v2098 = vpop.f32.mrf.mxu0
      %2099 = vmatprep.mubr.bf16.mxu0 0
      %2100 = vmatmul.mubr.bf16.gmra.mxu0 %v1949
      %v2101 = vpop.f32.mrf.mxu0
      %v2102 = vadd.f32 0.0, %v2101
      %v2103 = vpop.f32.mrf.mxu0
      %v2104 = vpop.f32.mrf.mxu0
      %v2105 = vadd.f32 0.0, %v2104
      %v2106 = vpop.f32.mrf.mxu0
      %2107 = vmatprep.mubr.bf16.mxu0 0
      %2108 = vmatmul.mubr.bf16.gmra.mxu0 %v1952
      %v2109 = vpop.f32.mrf.mxu0
      %v2110 = vadd.f32 0.0, %v2109
      %v2111 = vpop.f32.mrf.mxu0
      %v2112 = vpop.f32.mrf.mxu0
      %v2113 = vadd.f32 0.0, %v2112
      %v2114 = vpop.f32.mrf.mxu0
      %2115 = vmatprep.mubr.bf16.mxu0 0
      %2116 = vmatmul.mubr.bf16.gmra.mxu0 %v1955
      %v2117 = vpop.f32.mrf.mxu0
      %v2118 = vadd.f32 0.0, %v2117
      %v2119 = vpop.f32.mrf.mxu0
      %v2120 = vpop.f32.mrf.mxu0
      %v2121 = vadd.f32 0.0, %v2120
      %v2122 = vpop.f32.mrf.mxu0
      %2123 = vmatprep.mubr.bf16.mxu0 0
      %2124 = vmatmul.mubr.bf16.gmra.mxu0 %v1958
      %v2125 = vpop.f32.mrf.mxu0
      %v2126 = vadd.f32 0.0, %v2125
      %v2127 = vpop.f32.mrf.mxu0
      %v2128 = vpop.f32.mrf.mxu0
      %v2129 = vadd.f32 0.0, %v2128
      %v2130 = vpop.f32.mrf.mxu0
      %2131 = vmatprep.mubr.bf16.mxu0 0
      %2132 = vmatmul.mubr.bf16.gmra.mxu0 %v1961
      %v2133 = vpop.f32.mrf.mxu0
      %v2134 = vadd.f32 0.0, %v2133
      %v2135 = vpop.f32.mrf.mxu0
      %v2136 = vpop.f32.mrf.mxu0
      %v2137 = vadd.f32 0.0, %v2136
      %v2138 = vpop.f32.mrf.mxu0
      %2139 = vdwg.mxu0
      %v2140 = vadd.f32 %v1689, %v1998
      %v2141 = vadd.f32 %v1690, %v2001
      %v2142 = vadd.f32 %v1691, %v2006
      %v2143 = vadd.f32 %v1692, %v2009
      %v2144 = vadd.f32 %v1693, %v2014
      %v2145 = vadd.f32 %v1694, %v2017
      %v2146 = vadd.f32 %v1695, %v2022
      %v2147 = vadd.f32 %v1696, %v2025
      %v2148 = vadd.f32 %v1697, %v2030
      %v2149 = vadd.f32 %v1698, %v2033
      %v2150 = vadd.f32 %v1699, %v2038
      %v2151 = vadd.f32 %v1700, %v2041
      %v2152 = vadd.f32 %v1701, %v2046
      %v2153 = vadd.f32 %v1702, %v2049
      %v2154 = vadd.f32 %v1703, %v2054
      %v2155 = vadd.f32 %v1704, %v2057
      %v2156 = vadd.f32 %v1705, %v2062
      %v2157 = vadd.f32 %v1706, %v2065
      %v2158 = vadd.f32 %v1707, %v2070
      %v2159 = vadd.f32 %v1708, %v2073
      %v2160 = vadd.f32 %v1709, %v2078
      %v2161 = vadd.f32 %v1710, %v2081
      %v2162 = vadd.f32 %v1711, %v2086
      %v2163 = vadd.f32 %v1712, %v2089
      %v2164 = vadd.f32 %v1713, %v2094
      %v2165 = vadd.f32 %v1714, %v2097
      %v2166 = vadd.f32 %v1715, %v2102
      %v2167 = vadd.f32 %v1716, %v2105
      %v2168 = vadd.f32 %v1717, %v2110
      %v2169 = vadd.f32 %v1718, %v2113
      %v2170 = vadd.f32 %v1719, %v2118
      %v2171 = vadd.f32 %v1720, %v2121
      %v2172 = vadd.f32 %v1721, %v2126
      %v2173 = vadd.f32 %v1722, %v2129
      %v2174 = vadd.f32 %v1723, %v2134
      %v2175 = vadd.f32 %v1724, %v2137
      %v2176 = vld [vmem:[%s206 + $0x8] sm:$0xc]
      %s2177 = scalar_lea.vmem %s210, 40
      %v2178 = vld [vmem:[%s2177] sm:$0xf]
      %v2179 = vld [vmem:[%s2177 + $0x4] sm:$0xf]
      %v2181 = vunpack.c.l.b16 %v2176
      %v2182 = vpack.c.b16 %v1360, %v2181
      %vm2183 = vcmask 1045504
      %v2184 = vrot.slane %v2182, 2
      %v2185 = vrot.slane %v1397, 2
      %v2186 = vsel %vm2183, %v2184, %v2185
      %v2187 = vrot.slane %v1398, 2
      %v2188 = vsel %vm2183, %v2185, %v2187
      %v2189 = vrot.slane %v1399, 2
      %v2190 = vsel %vm2183, %v2187, %v2189
      %v2191 = vrot.slane %v1400, 2
      %v2192 = vsel %vm2183, %v2189, %v2191
      %v2193 = vrot.slane %v1401, 2
      %v2194 = vsel %vm2183, %v2191, %v2193
      %v2195 = vrot.slane %v1402, 2
      %v2196 = vsel %vm2183, %v2193, %v2195
      %v2197 = vrot.slane %v1403, 2
      %v2198 = vsel %vm2183, %v2195, %v2197
      %v2199 = vrot.slane %v1404, 2
      %v2200 = vsel %vm2183, %v2197, %v2199
      %v2201 = vrot.slane %v1405, 2
      %v2202 = vsel %vm2183, %v2199, %v2201
      %v2203 = vrot.slane %v1406, 2
      %v2204 = vsel %vm2183, %v2201, %v2203
      %v2205 = vrot.slane %v1407, 2
      %v2206 = vsel %vm2183, %v2203, %v2205
      %v2207 = vrot.slane %v1408, 2
      %v2208 = vsel %vm2183, %v2205, %v2207
      %v2209 = vrot.slane %v1409, 2
      %v2210 = vsel %vm2183, %v2207, %v2209
      %v2211 = vrot.slane %v1410, 2
      %v2212 = vsel %vm2183, %v2209, %v2211
      %v2213 = vrot.slane %v1411, 2
      %v2214 = vsel %vm2183, %v2211, %v2213
      %v2215 = vrot.slane %v1412, 2
      %v2216 = vsel %vm2183, %v2213, %v2215
      %v2217 = vrot.slane %v1413, 2
      %v2218 = vsel %vm2183, %v2215, %v2217
      %v2219 = vrot.slane %v1731, 2
      %v2220 = vsel %vm2183, %v2217, %v2219
      %v2223 = vunpack.c.l.b16 %v2178
      %v2224 = vunpack.c.l.b16 %v2179
      %v2225 = vpack.c.b16 %v2224, %v2223
      %v2228 = vsel %vm513, %v2186, 0
      %v2231 = vsel %vm513, %v2188, 0
      %v2234 = vsel %vm513, %v2190, 0
      %v2237 = vsel %vm513, %v2192, 0
      %v2240 = vsel %vm513, %v2194, 0
      %v2243 = vsel %vm513, %v2196, 0
      %v2246 = vsel %vm513, %v2198, 0
      %v2249 = vsel %vm513, %v2200, 0
      %v2252 = vsel %vm513, %v2202, 0
      %v2255 = vsel %vm513, %v2204, 0
      %v2258 = vsel %vm513, %v2206, 0
      %v2261 = vsel %vm513, %v2208, 0
      %v2264 = vsel %vm513, %v2210, 0
      %v2267 = vsel %vm513, %v2212, 0
      %v2270 = vsel %vm513, %v2214, 0
      %v2273 = vsel %vm513, %v2216, 0
      %v2276 = vsel %vm513, %v2218, 0
      %v2279 = vsel %vm513, %v2220, 0
      %2281 = vmatprep.subr.bf16.mxu0 0
      %2282 = vmatpush1.bf16.msra.mxu0 0
      %2283 = vmatprep.subr.bf16.mxu0 0
      %2284 = vmatpush1.bf16.msra.mxu0 0
      %2285 = vmatprep.subr.bf16.mxu0 0
      %2286 = vmatpush1.bf16.msra.mxu0 0
      %2287 = vmatprep.subr.bf16.mxu0 0
      %2288 = vmatpush1.bf16.msra.mxu0 0
      %2289 = vmatprep.subr.bf16.mxu0 0
      %2290 = vmatpush1.bf16.msra.mxu0 0
      %2291 = vmatprep.subr.bf16.mxu0 0
      %2292 = vmatpush1.bf16.msra.mxu0 0
      %2293 = vmatprep.subr.bf16.mxu0 0
      %2294 = vmatpush1.bf16.msra.mxu0 0
      %2295 = vmatprep.subr.bf16.mxu0 0
      %2296 = vmatpush1.bf16.msra.mxu0 %v2225
      %2297 = vmatprep.subr.bf16.mxu0 0
      %2298 = vmatpush2.bf16.msra.mxu0 0
      %2299 = vmatprep.subr.bf16.mxu0 0
      %2300 = vmatpush2.bf16.msra.mxu0 0
      %2301 = vmatprep.subr.bf16.mxu0 0
      %2302 = vmatpush2.bf16.msra.mxu0 0
      %2303 = vmatprep.subr.bf16.mxu0 0
      %2304 = vmatpush2.bf16.msra.mxu0 0
      %2305 = vmatprep.subr.bf16.mxu0 0
      %2306 = vmatpush2.bf16.msra.mxu0 0
      %2307 = vmatprep.subr.bf16.mxu0 0
      %2308 = vmatpush2.bf16.msra.mxu0 0
      %2309 = vmatprep.subr.bf16.mxu0 0
      %2310 = vmatpush2.bf16.msra.mxu0 0
      %2311 = vmatprep.subr.bf16.mxu0 0
      %2312 = vmatpush2.bf16.msra.mxu0 0
      %2313 = vmatprep.mubr.bf16.mxu0 0
      %2314 = vmatmul.mubr.bf16.gmra.mxu0 %v2228
      %v2315 = vpop.f32.mrf.mxu0
      %v2316 = vadd.f32 0.0, %v2315
      %v2317 = vpop.f32.mrf.mxu0
      %v2318 = vpop.f32.mrf.mxu0
      %v2319 = vadd.f32 0.0, %v2318
      %v2320 = vpop.f32.mrf.mxu0
      %2321 = vmatprep.mubr.bf16.mxu0 0
      %2322 = vmatmul.mubr.bf16.gmra.mxu0 %v2231
      %v2323 = vpop.f32.mrf.mxu0
      %v2324 = vadd.f32 0.0, %v2323
      %v2325 = vpop.f32.mrf.mxu0
      %v2326 = vpop.f32.mrf.mxu0
      %v2327 = vadd.f32 0.0, %v2326
      %v2328 = vpop.f32.mrf.mxu0
      %2329 = vmatprep.mubr.bf16.mxu0 0
      %2330 = vmatmul.mubr.bf16.gmra.mxu0 %v2234
      %v2331 = vpop.f32.mrf.mxu0
      %v2332 = vadd.f32 0.0, %v2331
      %v2333 = vpop.f32.mrf.mxu0
      %v2334 = vpop.f32.mrf.mxu0
      %v2335 = vadd.f32 0.0, %v2334
      %v2336 = vpop.f32.mrf.mxu0
      %2337 = vmatprep.mubr.bf16.mxu0 0
      %2338 = vmatmul.mubr.bf16.gmra.mxu0 %v2237
      %v2339 = vpop.f32.mrf.mxu0
      %v2340 = vadd.f32 0.0, %v2339
      %v2341 = vpop.f32.mrf.mxu0
      %v2342 = vpop.f32.mrf.mxu0
      %v2343 = vadd.f32 0.0, %v2342
      %v2344 = vpop.f32.mrf.mxu0
      %2345 = vmatprep.mubr.bf16.mxu0 0
      %2346 = vmatmul.mubr.bf16.gmra.mxu0 %v2240
      %v2347 = vpop.f32.mrf.mxu0
      %v2348 = vadd.f32 0.0, %v2347
      %v2349 = vpop.f32.mrf.mxu0
      %v2350 = vpop.f32.mrf.mxu0
      %v2351 = vadd.f32 0.0, %v2350
      %v2352 = vpop.f32.mrf.mxu0
      %2353 = vmatprep.mubr.bf16.mxu0 0
      %2354 = vmatmul.mubr.bf16.gmra.mxu0 %v2243
      %v2355 = vpop.f32.mrf.mxu0
      %v2356 = vadd.f32 0.0, %v2355
      %v2357 = vpop.f32.mrf.mxu0
      %v2358 = vpop.f32.mrf.mxu0
      %v2359 = vadd.f32 0.0, %v2358
      %v2360 = vpop.f32.mrf.mxu0
      %2361 = vmatprep.mubr.bf16.mxu0 0
      %2362 = vmatmul.mubr.bf16.gmra.mxu0 %v2246
      %v2363 = vpop.f32.mrf.mxu0
      %v2364 = vadd.f32 0.0, %v2363
      %v2365 = vpop.f32.mrf.mxu0
      %v2366 = vpop.f32.mrf.mxu0
      %v2367 = vadd.f32 0.0, %v2366
      %v2368 = vpop.f32.mrf.mxu0
      %2369 = vmatprep.mubr.bf16.mxu0 0
      %2370 = vmatmul.mubr.bf16.gmra.mxu0 %v2249
      %v2371 = vpop.f32.mrf.mxu0
      %v2372 = vadd.f32 0.0, %v2371
      %v2373 = vpop.f32.mrf.mxu0
      %v2374 = vpop.f32.mrf.mxu0
      %v2375 = vadd.f32 0.0, %v2374
      %v2376 = vpop.f32.mrf.mxu0
      %2377 = vmatprep.mubr.bf16.mxu0 0
      %2378 = vmatmul.mubr.bf16.gmra.mxu0 %v2252
      %v2379 = vpop.f32.mrf.mxu0
      %v2380 = vadd.f32 0.0, %v2379
      %v2381 = vpop.f32.mrf.mxu0
      %v2382 = vpop.f32.mrf.mxu0
      %v2383 = vadd.f32 0.0, %v2382
      %v2384 = vpop.f32.mrf.mxu0
      %2385 = vmatprep.mubr.bf16.mxu0 0
      %2386 = vmatmul.mubr.bf16.gmra.mxu0 %v2255
      %v2387 = vpop.f32.mrf.mxu0
      %v2388 = vadd.f32 0.0, %v2387
      %v2389 = vpop.f32.mrf.mxu0
      %v2390 = vpop.f32.mrf.mxu0
      %v2391 = vadd.f32 0.0, %v2390
      %v2392 = vpop.f32.mrf.mxu0
      %2393 = vmatprep.mubr.bf16.mxu0 0
      %2394 = vmatmul.mubr.bf16.gmra.mxu0 %v2258
      %v2395 = vpop.f32.mrf.mxu0
      %v2396 = vadd.f32 0.0, %v2395
      %v2397 = vpop.f32.mrf.mxu0
      %v2398 = vpop.f32.mrf.mxu0
      %v2399 = vadd.f32 0.0, %v2398
      %v2400 = vpop.f32.mrf.mxu0
      %2401 = vmatprep.mubr.bf16.mxu0 0
      %2402 = vmatmul.mubr.bf16.gmra.mxu0 %v2261
      %v2403 = vpop.f32.mrf.mxu0
      %v2404 = vadd.f32 0.0, %v2403
      %v2405 = vpop.f32.mrf.mxu0
      %v2406 = vpop.f32.mrf.mxu0
      %v2407 = vadd.f32 0.0, %v2406
      %v2408 = vpop.f32.mrf.mxu0
      %2409 = vmatprep.mubr.bf16.mxu0 0
      %2410 = vmatmul.mubr.bf16.gmra.mxu0 %v2264
      %v2411 = vpop.f32.mrf.mxu0
      %v2412 = vadd.f32 0.0, %v2411
      %v2413 = vpop.f32.mrf.mxu0
      %v2414 = vpop.f32.mrf.mxu0
      %v2415 = vadd.f32 0.0, %v2414
      %v2416 = vpop.f32.mrf.mxu0
      %2417 = vmatprep.mubr.bf16.mxu0 0
      %2418 = vmatmul.mubr.bf16.gmra.mxu0 %v2267
      %v2419 = vpop.f32.mrf.mxu0
      %v2420 = vadd.f32 0.0, %v2419
      %v2421 = vpop.f32.mrf.mxu0
      %v2422 = vpop.f32.mrf.mxu0
      %v2423 = vadd.f32 0.0, %v2422
      %v2424 = vpop.f32.mrf.mxu0
      %2425 = vmatprep.mubr.bf16.mxu0 0
      %2426 = vmatmul.mubr.bf16.gmra.mxu0 %v2270
      %v2427 = vpop.f32.mrf.mxu0
      %v2428 = vadd.f32 0.0, %v2427
      %v2429 = vpop.f32.mrf.mxu0
      %v2430 = vpop.f32.mrf.mxu0
      %v2431 = vadd.f32 0.0, %v2430
      %v2432 = vpop.f32.mrf.mxu0
      %2433 = vmatprep.mubr.bf16.mxu0 0
      %2434 = vmatmul.mubr.bf16.gmra.mxu0 %v2273
      %v2435 = vpop.f32.mrf.mxu0
      %v2436 = vadd.f32 0.0, %v2435
      %v2437 = vpop.f32.mrf.mxu0
      %v2438 = vpop.f32.mrf.mxu0
      %v2439 = vadd.f32 0.0, %v2438
      %v2440 = vpop.f32.mrf.mxu0
      %2441 = vmatprep.mubr.bf16.mxu0 0
      %2442 = vmatmul.mubr.bf16.gmra.mxu0 %v2276
      %v2443 = vpop.f32.mrf.mxu0
      %v2444 = vadd.f32 0.0, %v2443
      %v2445 = vpop.f32.mrf.mxu0
      %v2446 = vpop.f32.mrf.mxu0
      %v2447 = vadd.f32 0.0, %v2446
      %v2448 = vpop.f32.mrf.mxu0
      %2449 = vmatprep.mubr.bf16.mxu0 0
      %2450 = vmatmul.mubr.bf16.gmra.mxu0 %v2279
      %v2451 = vpop.f32.mrf.mxu0
      %v2452 = vadd.f32 0.0, %v2451
      %v2453 = vpop.f32.mrf.mxu0
      %v2454 = vpop.f32.mrf.mxu0
      %v2455 = vadd.f32 0.0, %v2454
      %v2456 = vpop.f32.mrf.mxu0
      %2457 = vdwg.mxu0
      %v2458 = vadd.f32 %v2140, %v2316
      %v2459 = vadd.f32 %v2141, %v2319
      %v2460 = vadd.f32 %v2142, %v2324
      %v2461 = vadd.f32 %v2143, %v2327
      %v2462 = vadd.f32 %v2144, %v2332
      %v2463 = vadd.f32 %v2145, %v2335
      %v2464 = vadd.f32 %v2146, %v2340
      %v2465 = vadd.f32 %v2147, %v2343
      %v2466 = vadd.f32 %v2148, %v2348
      %v2467 = vadd.f32 %v2149, %v2351
      %v2468 = vadd.f32 %v2150, %v2356
      %v2469 = vadd.f32 %v2151, %v2359
      %v2470 = vadd.f32 %v2152, %v2364
      %v2471 = vadd.f32 %v2153, %v2367
      %v2472 = vadd.f32 %v2154, %v2372
      %v2473 = vadd.f32 %v2155, %v2375
      %v2474 = vadd.f32 %v2156, %v2380
      %v2475 = vadd.f32 %v2157, %v2383
      %v2476 = vadd.f32 %v2158, %v2388
      %v2477 = vadd.f32 %v2159, %v2391
      %v2478 = vadd.f32 %v2160, %v2396
      %v2479 = vadd.f32 %v2161, %v2399
      %v2480 = vadd.f32 %v2162, %v2404
      %v2481 = vadd.f32 %v2163, %v2407
      %v2482 = vadd.f32 %v2164, %v2412
      %v2483 = vadd.f32 %v2165, %v2415
      %v2484 = vadd.f32 %v2166, %v2420
      %v2485 = vadd.f32 %v2167, %v2423
      %v2486 = vadd.f32 %v2168, %v2428
      %v2487 = vadd.f32 %v2169, %v2431
      %v2488 = vadd.f32 %v2170, %v2436
      %v2489 = vadd.f32 %v2171, %v2439
      %v2490 = vadd.f32 %v2172, %v2444
      %v2491 = vadd.f32 %v2173, %v2447
      %v2492 = vadd.f32 %v2174, %v2452
      %v2493 = vadd.f32 %v2175, %v2455
      %v2494 = vld [vmem:[%s206 + $0x10] sm:$0xc]
      %v2495 = vld [vmem:[%s206 + $0x14] sm:$0xf]
      %v2496 = vld [vmem:[%s206 + $0x18] sm:$0xf]
      %v2497 = vld [vmem:[%s206 + $0x1c] sm:$0xf]
      %v2498 = vld [vmem:[%s206 + $0x20] sm:$0xf]
      %v2499 = vld [vmem:[%s206 + $0x24] sm:$0xf]
      %v2500 = vld [vmem:[%s206 + $0x28] sm:$0xf]
      %v2501 = vld [vmem:[%s206 + $0x2c] sm:$0xf]
      %v2502 = vld [vmem:[%s206 + $0x30] sm:$0xf]
      %v2503 = vld [vmem:[%s206 + $0x34] sm:$0xf]
      %v2504 = vld [vmem:[%s206 + $0x38] sm:$0xf]
      %v2505 = vld [vmem:[%s206 + $0x3c] sm:$0xf]
      %v2506 = vld [vmem:[%s206 + $0x40] sm:$0xf]
      %v2507 = vld [vmem:[%s206 + $0x44] sm:$0xf]
      %v2508 = vld [vmem:[%s206 + $0x48] sm:$0xf]
      %v2509 = vld [vmem:[%s206 + $0x4c] sm:$0xf]
      %v2510 = vld [vmem:[%s206 + $0x50] sm:$0xf]
      %v2511 = vld [vmem:[%s206 + $0x54] sm:$0xf]
      %v2512 = vld [vmem:[%s206 + $0x58] sm:$0xf]
      %v2513 = vld [vmem:[%s206 + $0x5c] sm:$0xf]
      %v2514 = vld [vmem:[%s206 + $0x60] sm:$0xf]
      %v2515 = vld [vmem:[%s206 + $0x64] sm:$0xf]
      %v2516 = vld [vmem:[%s206 + $0x68] sm:$0xf]
      %v2517 = vld [vmem:[%s206 + $0x6c] sm:$0xf]
      %v2518 = vld [vmem:[%s206 + $0x70] sm:$0xf]
      %v2519 = vld [vmem:[%s206 + $0x74] sm:$0xf]
      %v2520 = vld [vmem:[%s206 + $0x78] sm:$0xf]
      %v2521 = vld [vmem:[%s206 + $0x7c] sm:$0xf]
      %v2522 = vld [vmem:[%s206 + $0x80] sm:$0xf]
      %v2523 = vld [vmem:[%s206 + $0x84] sm:$0xf]
      %v2524 = vld [vmem:[%s206 + $0x88] sm:$0xf]
      %v2525 = vld [vmem:[%s206 + $0x8c] sm:$0xf]
      %v2526 = vld [vmem:[%s206 + $0x90] sm:$0xf]
      %v2527 = vld [vmem:[%s206 + $0x94] sm:$0xf]
      %v2528 = vld [vmem:[%s206 + $0x98] sm:$0xf]
      %v2529 = vld [vmem:[%s206 + $0x9c] sm:$0xf]
      %v2530 = vld [vmem:[%s206 + $0xa0] sm:$0x3]
      %s2531 = scalar_lea.vmem %s210, 48
      %v2532 = vld [vmem:[%s2531] sm:$0xf]
      %v2533 = vld [vmem:[%s2531 + $0x4] sm:$0xf]
      %v2571 = vunpack.c.l.b16 %v2494
      %v2572 = vunpack.c.l.b16 %v2495
      %v2573 = vunpack.c.l.b16 %v2496
      %v2574 = vunpack.c.l.b16 %v2497
      %v2575 = vunpack.c.l.b16 %v2498
      %v2576 = vunpack.c.l.b16 %v2499
      %v2577 = vunpack.c.l.b16 %v2500
      %v2578 = vunpack.c.l.b16 %v2501
      %v2579 = vunpack.c.l.b16 %v2502
      %v2580 = vunpack.c.l.b16 %v2503
      %v2581 = vunpack.c.l.b16 %v2504
      %v2582 = vunpack.c.l.b16 %v2505
      %v2583 = vunpack.c.l.b16 %v2506
      %v2584 = vunpack.c.l.b16 %v2507
      %v2585 = vunpack.c.l.b16 %v2508
      %v2586 = vunpack.c.l.b16 %v2509
      %v2587 = vunpack.c.l.b16 %v2510
      %v2588 = vunpack.c.l.b16 %v2511
      %v2589 = vunpack.c.l.b16 %v2512
      %v2590 = vunpack.c.l.b16 %v2513
      %v2591 = vunpack.c.l.b16 %v2514
      %v2592 = vunpack.c.l.b16 %v2515
      %v2593 = vunpack.c.l.b16 %v2516
      %v2594 = vunpack.c.l.b16 %v2517
      %v2595 = vunpack.c.l.b16 %v2518
      %v2596 = vunpack.c.l.b16 %v2519
      %v2597 = vunpack.c.l.b16 %v2520
      %v2598 = vunpack.c.l.b16 %v2521
      %v2599 = vunpack.c.l.b16 %v2522
      %v2600 = vunpack.c.l.b16 %v2523
      %v2601 = vunpack.c.l.b16 %v2524
      %v2602 = vunpack.c.l.b16 %v2525
      %v2603 = vunpack.c.l.b16 %v2526
      %v2604 = vunpack.c.l.b16 %v2527
      %v2605 = vunpack.c.l.b16 %v2528
      %v2606 = vunpack.c.l.b16 %v2529
      %v2607 = vunpack.c.l.b16 %v2530
      %v2608 = vpack.c.b16 %v2572, %v2571
      %v2609 = vpack.c.b16 %v2574, %v2573
      %v2610 = vpack.c.b16 %v2576, %v2575
      %v2611 = vpack.c.b16 %v2578, %v2577
      %v2612 = vpack.c.b16 %v2580, %v2579
      %v2613 = vpack.c.b16 %v2582, %v2581
      %v2614 = vpack.c.b16 %v2584, %v2583
      %v2615 = vpack.c.b16 %v2586, %v2585
      %v2616 = vpack.c.b16 %v2588, %v2587
      %v2617 = vpack.c.b16 %v2590, %v2589
      %v2618 = vpack.c.b16 %v2592, %v2591
      %v2619 = vpack.c.b16 %v2594, %v2593
      %v2620 = vpack.c.b16 %v2596, %v2595
      %v2621 = vpack.c.b16 %v2598, %v2597
      %v2622 = vpack.c.b16 %v2600, %v2599
      %v2623 = vpack.c.b16 %v2602, %v2601
      %v2624 = vpack.c.b16 %v2604, %v2603
      %v2625 = vpack.c.b16 %v2606, %v2605
      %v2626 = vpack.c.b16 %v2607, %v2607
      %v2627 = vrot.slane %v2608, 2
      %v2628 = vrot.slane %v2609, 2
      %v2629 = vsel %vm2183, %v2627, %v2628
      %v2630 = vrot.slane %v2610, 2
      %v2631 = vsel %vm2183, %v2628, %v2630
      %v2632 = vrot.slane %v2611, 2
      %v2633 = vsel %vm2183, %v2630, %v2632
      %v2634 = vrot.slane %v2612, 2
      %v2635 = vsel %vm2183, %v2632, %v2634
      %v2636 = vrot.slane %v2613, 2
      %v2637 = vsel %vm2183, %v2634, %v2636
      %v2638 = vrot.slane %v2614, 2
      %v2639 = vsel %vm2183, %v2636, %v2638
      %v2640 = vrot.slane %v2615, 2
      %v2641 = vsel %vm2183, %v2638, %v2640
      %v2642 = vrot.slane %v2616, 2
      %v2643 = vsel %vm2183, %v2640, %v2642
      %v2644 = vrot.slane %v2617, 2
      %v2645 = vsel %vm2183, %v2642, %v2644
      %v2646 = vrot.slane %v2618, 2
      %v2647 = vsel %vm2183, %v2644, %v2646
      %v2648 = vrot.slane %v2619, 2
      %v2649 = vsel %vm2183, %v2646, %v2648
      %v2650 = vrot.slane %v2620, 2
      %v2651 = vsel %vm2183, %v2648, %v2650
      %v2652 = vrot.slane %v2621, 2
      %v2653 = vsel %vm2183, %v2650, %v2652
      %v2654 = vrot.slane %v2622, 2
      %v2655 = vsel %vm2183, %v2652, %v2654
      %v2656 = vrot.slane %v2623, 2
      %v2657 = vsel %vm2183, %v2654, %v2656
      %v2658 = vrot.slane %v2624, 2
      %v2659 = vsel %vm2183, %v2656, %v2658
      %v2660 = vrot.slane %v2625, 2
      %v2661 = vsel %vm2183, %v2658, %v2660
      %v2662 = vrot.slane %v2626, 2
      %v2663 = vsel %vm2183, %v2660, %v2662
      %v2666 = vunpack.c.l.b16 %v2532
      %v2667 = vunpack.c.l.b16 %v2533
      %v2668 = vpack.c.b16 %v2667, %v2666
      %v2671 = vsel %vm513, %v2629, 0
      %v2674 = vsel %vm513, %v2631, 0
      %v2677 = vsel %vm513, %v2633, 0
      %v2680 = vsel %vm513, %v2635, 0
      %v2683 = vsel %vm513, %v2637, 0
      %v2686 = vsel %vm513, %v2639, 0
      %v2689 = vsel %vm513, %v2641, 0
      %v2692 = vsel %vm513, %v2643, 0
      %v2695 = vsel %vm513, %v2645, 0
      %v2698 = vsel %vm513, %v2647, 0
      %v2701 = vsel %vm513, %v2649, 0
      %v2704 = vsel %vm513, %v2651, 0
      %v2707 = vsel %vm513, %v2653, 0
      %v2710 = vsel %vm513, %v2655, 0
      %v2713 = vsel %vm513, %v2657, 0
      %v2716 = vsel %vm513, %v2659, 0
      %v2719 = vsel %vm513, %v2661, 0
      %v2722 = vsel %vm513, %v2663, 0
      %2724 = vmatprep.subr.bf16.mxu0 0
      %2725 = vmatpush1.bf16.msra.mxu0 0
      %2726 = vmatprep.subr.bf16.mxu0 0
      %2727 = vmatpush1.bf16.msra.mxu0 0
      %2728 = vmatprep.subr.bf16.mxu0 0
      %2729 = vmatpush1.bf16.msra.mxu0 0
      %2730 = vmatprep.subr.bf16.mxu0 0
      %2731 = vmatpush1.bf16.msra.mxu0 0
      %2732 = vmatprep.subr.bf16.mxu0 0
      %2733 = vmatpush1.bf16.msra.mxu0 0
      %2734 = vmatprep.subr.bf16.mxu0 0
      %2735 = vmatpush1.bf16.msra.mxu0 0
      %2736 = vmatprep.subr.bf16.mxu0 0
      %2737 = vmatpush1.bf16.msra.mxu0 0
      %2738 = vmatprep.subr.bf16.mxu0 0
      %2739 = vmatpush1.bf16.msra.mxu0 %v2668
      %2740 = vmatprep.subr.bf16.mxu0 0
      %2741 = vmatpush2.bf16.msra.mxu0 0
      %2742 = vmatprep.subr.bf16.mxu0 0
      %2743 = vmatpush2.bf16.msra.mxu0 0
      %2744 = vmatprep.subr.bf16.mxu0 0
      %2745 = vmatpush2.bf16.msra.mxu0 0
      %2746 = vmatprep.subr.bf16.mxu0 0
      %2747 = vmatpush2.bf16.msra.mxu0 0
      %2748 = vmatprep.subr.bf16.mxu0 0
      %2749 = vmatpush2.bf16.msra.mxu0 0
      %2750 = vmatprep.subr.bf16.mxu0 0
      %2751 = vmatpush2.bf16.msra.mxu0 0
      %2752 = vmatprep.subr.bf16.mxu0 0
      %2753 = vmatpush2.bf16.msra.mxu0 0
      %2754 = vmatprep.subr.bf16.mxu0 0
      %2755 = vmatpush2.bf16.msra.mxu0 0
      %2756 = vmatprep.mubr.bf16.mxu0 0
      %2757 = vmatmul.mubr.bf16.gmra.mxu0 %v2671
      %v2758 = vpop.f32.mrf.mxu0
      %v2759 = vadd.f32 0.0, %v2758
      %v2760 = vpop.f32.mrf.mxu0
      %v2761 = vpop.f32.mrf.mxu0
      %v2762 = vadd.f32 0.0, %v2761
      %v2763 = vpop.f32.mrf.mxu0
      %2764 = vmatprep.mubr.bf16.mxu0 0
      %2765 = vmatmul.mubr.bf16.gmra.mxu0 %v2674
      %v2766 = vpop.f32.mrf.mxu0
      %v2767 = vadd.f32 0.0, %v2766
      %v2768 = vpop.f32.mrf.mxu0
      %v2769 = vpop.f32.mrf.mxu0
      %v2770 = vadd.f32 0.0, %v2769
      %v2771 = vpop.f32.mrf.mxu0
      %2772 = vmatprep.mubr.bf16.mxu0 0
      %2773 = vmatmul.mubr.bf16.gmra.mxu0 %v2677
      %v2774 = vpop.f32.mrf.mxu0
      %v2775 = vadd.f32 0.0, %v2774
      %v2776 = vpop.f32.mrf.mxu0
      %v2777 = vpop.f32.mrf.mxu0
      %v2778 = vadd.f32 0.0, %v2777
      %v2779 = vpop.f32.mrf.mxu0
      %2780 = vmatprep.mubr.bf16.mxu0 0
      %2781 = vmatmul.mubr.bf16.gmra.mxu0 %v2680
      %v2782 = vpop.f32.mrf.mxu0
      %v2783 = vadd.f32 0.0, %v2782
      %v2784 = vpop.f32.mrf.mxu0
      %v2785 = vpop.f32.mrf.mxu0
      %v2786 = vadd.f32 0.0, %v2785
      %v2787 = vpop.f32.mrf.mxu0
      %2788 = vmatprep.mubr.bf16.mxu0 0
      %2789 = vmatmul.mubr.bf16.gmra.mxu0 %v2683
      %v2790 = vpop.f32.mrf.mxu0
      %v2791 = vadd.f32 0.0, %v2790
      %v2792 = vpop.f32.mrf.mxu0
      %v2793 = vpop.f32.mrf.mxu0
      %v2794 = vadd.f32 0.0, %v2793
      %v2795 = vpop.f32.mrf.mxu0
      %2796 = vmatprep.mubr.bf16.mxu0 0
      %2797 = vmatmul.mubr.bf16.gmra.mxu0 %v2686
      %v2798 = vpop.f32.mrf.mxu0
      %v2799 = vadd.f32 0.0, %v2798
      %v2800 = vpop.f32.mrf.mxu0
      %v2801 = vpop.f32.mrf.mxu0
      %v2802 = vadd.f32 0.0, %v2801
      %v2803 = vpop.f32.mrf.mxu0
      %2804 = vmatprep.mubr.bf16.mxu0 0
      %2805 = vmatmul.mubr.bf16.gmra.mxu0 %v2689
      %v2806 = vpop.f32.mrf.mxu0
      %v2807 = vadd.f32 0.0, %v2806
      %v2808 = vpop.f32.mrf.mxu0
      %v2809 = vpop.f32.mrf.mxu0
      %v2810 = vadd.f32 0.0, %v2809
      %v2811 = vpop.f32.mrf.mxu0
      %2812 = vmatprep.mubr.bf16.mxu0 0
      %2813 = vmatmul.mubr.bf16.gmra.mxu0 %v2692
      %v2814 = vpop.f32.mrf.mxu0
      %v2815 = vadd.f32 0.0, %v2814
      %v2816 = vpop.f32.mrf.mxu0
      %v2817 = vpop.f32.mrf.mxu0
      %v2818 = vadd.f32 0.0, %v2817
      %v2819 = vpop.f32.mrf.mxu0
      %2820 = vmatprep.mubr.bf16.mxu0 0
      %2821 = vmatmul.mubr.bf16.gmra.mxu0 %v2695
      %v2822 = vpop.f32.mrf.mxu0
      %v2823 = vadd.f32 0.0, %v2822
      %v2824 = vpop.f32.mrf.mxu0
      %v2825 = vpop.f32.mrf.mxu0
      %v2826 = vadd.f32 0.0, %v2825
      %v2827 = vpop.f32.mrf.mxu0
      %2828 = vmatprep.mubr.bf16.mxu0 0
      %2829 = vmatmul.mubr.bf16.gmra.mxu0 %v2698
      %v2830 = vpop.f32.mrf.mxu0
      %v2831 = vadd.f32 0.0, %v2830
      %v2832 = vpop.f32.mrf.mxu0
      %v2833 = vpop.f32.mrf.mxu0
      %v2834 = vadd.f32 0.0, %v2833
      %v2835 = vpop.f32.mrf.mxu0
      %2836 = vmatprep.mubr.bf16.mxu0 0
      %2837 = vmatmul.mubr.bf16.gmra.mxu0 %v2701
      %v2838 = vpop.f32.mrf.mxu0
      %v2839 = vadd.f32 0.0, %v2838
      %v2840 = vpop.f32.mrf.mxu0
      %v2841 = vpop.f32.mrf.mxu0
      %v2842 = vadd.f32 0.0, %v2841
      %v2843 = vpop.f32.mrf.mxu0
      %2844 = vmatprep.mubr.bf16.mxu0 0
      %2845 = vmatmul.mubr.bf16.gmra.mxu0 %v2704
      %v2846 = vpop.f32.mrf.mxu0
      %v2847 = vadd.f32 0.0, %v2846
      %v2848 = vpop.f32.mrf.mxu0
      %v2849 = vpop.f32.mrf.mxu0
      %v2850 = vadd.f32 0.0, %v2849
      %v2851 = vpop.f32.mrf.mxu0
      %2852 = vmatprep.mubr.bf16.mxu0 0
      %2853 = vmatmul.mubr.bf16.gmra.mxu0 %v2707
      %v2854 = vpop.f32.mrf.mxu0
      %v2855 = vadd.f32 0.0, %v2854
      %v2856 = vpop.f32.mrf.mxu0
      %v2857 = vpop.f32.mrf.mxu0
      %v2858 = vadd.f32 0.0, %v2857
      %v2859 = vpop.f32.mrf.mxu0
      %2860 = vmatprep.mubr.bf16.mxu0 0
      %2861 = vmatmul.mubr.bf16.gmra.mxu0 %v2710
      %v2862 = vpop.f32.mrf.mxu0
      %v2863 = vadd.f32 0.0, %v2862
      %v2864 = vpop.f32.mrf.mxu0
      %v2865 = vpop.f32.mrf.mxu0
      %v2866 = vadd.f32 0.0, %v2865
      %v2867 = vpop.f32.mrf.mxu0
      %2868 = vmatprep.mubr.bf16.mxu0 0
      %2869 = vmatmul.mubr.bf16.gmra.mxu0 %v2713
      %v2870 = vpop.f32.mrf.mxu0
      %v2871 = vadd.f32 0.0, %v2870
      %v2872 = vpop.f32.mrf.mxu0
      %v2873 = vpop.f32.mrf.mxu0
      %v2874 = vadd.f32 0.0, %v2873
      %v2875 = vpop.f32.mrf.mxu0
      %2876 = vmatprep.mubr.bf16.mxu0 0
      %2877 = vmatmul.mubr.bf16.gmra.mxu0 %v2716
      %v2878 = vpop.f32.mrf.mxu0
      %v2879 = vadd.f32 0.0, %v2878
      %v2880 = vpop.f32.mrf.mxu0
      %v2881 = vpop.f32.mrf.mxu0
      %v2882 = vadd.f32 0.0, %v2881
      %v2883 = vpop.f32.mrf.mxu0
      %2884 = vmatprep.mubr.bf16.mxu0 0
      %2885 = vmatmul.mubr.bf16.gmra.mxu0 %v2719
      %v2886 = vpop.f32.mrf.mxu0
      %v2887 = vadd.f32 0.0, %v2886
      %v2888 = vpop.f32.mrf.mxu0
      %v2889 = vpop.f32.mrf.mxu0
      %v2890 = vadd.f32 0.0, %v2889
      %v2891 = vpop.f32.mrf.mxu0
      %2892 = vmatprep.mubr.bf16.mxu0 0
      %2893 = vmatmul.mubr.bf16.gmra.mxu0 %v2722
      %v2894 = vpop.f32.mrf.mxu0
      %v2895 = vadd.f32 0.0, %v2894
      %v2896 = vpop.f32.mrf.mxu0
      %v2897 = vpop.f32.mrf.mxu0
      %v2898 = vadd.f32 0.0, %v2897
      %v2899 = vpop.f32.mrf.mxu0
      %2900 = vdwg.mxu0
      %v2901 = vadd.f32 %v2458, %v2759
      %v2902 = vadd.f32 %v2459, %v2762
      %v2903 = vadd.f32 %v2460, %v2767
      %v2904 = vadd.f32 %v2461, %v2770
      %v2905 = vadd.f32 %v2462, %v2775
      %v2906 = vadd.f32 %v2463, %v2778
      %v2907 = vadd.f32 %v2464, %v2783
      %v2908 = vadd.f32 %v2465, %v2786
      %v2909 = vadd.f32 %v2466, %v2791
      %v2910 = vadd.f32 %v2467, %v2794
      %v2911 = vadd.f32 %v2468, %v2799
      %v2912 = vadd.f32 %v2469, %v2802
      %v2913 = vadd.f32 %v2470, %v2807
      %v2914 = vadd.f32 %v2471, %v2810
      %v2915 = vadd.f32 %v2472, %v2815
      %v2916 = vadd.f32 %v2473, %v2818
      %v2917 = vadd.f32 %v2474, %v2823
      %v2918 = vadd.f32 %v2475, %v2826
      %v2919 = vadd.f32 %v2476, %v2831
      %v2920 = vadd.f32 %v2477, %v2834
      %v2921 = vadd.f32 %v2478, %v2839
      %v2922 = vadd.f32 %v2479, %v2842
      %v2923 = vadd.f32 %v2480, %v2847
      %v2924 = vadd.f32 %v2481, %v2850
      %v2925 = vadd.f32 %v2482, %v2855
      %v2926 = vadd.f32 %v2483, %v2858
      %v2927 = vadd.f32 %v2484, %v2863
      %v2928 = vadd.f32 %v2485, %v2866
      %v2929 = vadd.f32 %v2486, %v2871
      %v2930 = vadd.f32 %v2487, %v2874
      %v2931 = vadd.f32 %v2488, %v2879
      %v2932 = vadd.f32 %v2489, %v2882
      %v2933 = vadd.f32 %v2490, %v2887
      %v2934 = vadd.f32 %v2491, %v2890
      %v2935 = vadd.f32 %v2492, %v2895
      %v2936 = vadd.f32 %v2493, %v2898
      %v2937 = vld [vmem:[%s206 + $0xa0] sm:$0x7]
      %s2938 = scalar_lea.vmem %s210, 56
      %v2939 = vld [vmem:[%s2938] sm:$0xf]
      %v2940 = vld [vmem:[%s2938 + $0x4] sm:$0xf]
      %v2942 = vunpack.c.l.b16 %v2937
      %v2943 = vpack.c.b16 %v2942, %v2942
      %vm2944 = vsmask.f32 5376
      %v2946 = vshrl.u32 %v2608, 16
      %v2948 = vrot.slane %v2946, 2
      %v2949 = vshll.u32 %v2608, 16
      %v2951 = vrot.slane %v2949, 3
      %v2952 = vor.u32 %v2948, %v2951
      %v2954 = vshrl.u32 %v2609, 16
      %v2956 = vrot.slane %v2954, 2
      %v2957 = vshll.u32 %v2609, 16
      %v2959 = vrot.slane %v2957, 3
      %v2960 = vor.u32 %v2956, %v2959
      %v2961 = vsel %vm2944, %v2952, %v2960
      %v2963 = vshrl.u32 %v2610, 16
      %v2965 = vrot.slane %v2963, 2
      %v2966 = vshll.u32 %v2610, 16
      %v2968 = vrot.slane %v2966, 3
      %v2969 = vor.u32 %v2965, %v2968
      %v2970 = vsel %vm2944, %v2960, %v2969
      %v2972 = vshrl.u32 %v2611, 16
      %v2974 = vrot.slane %v2972, 2
      %v2975 = vshll.u32 %v2611, 16
      %v2977 = vrot.slane %v2975, 3
      %v2978 = vor.u32 %v2974, %v2977
      %v2979 = vsel %vm2944, %v2969, %v2978
      %v2981 = vshrl.u32 %v2612, 16
      %v2983 = vrot.slane %v2981, 2
      %v2984 = vshll.u32 %v2612, 16
      %v2986 = vrot.slane %v2984, 3
      %v2987 = vor.u32 %v2983, %v2986
      %v2988 = vsel %vm2944, %v2978, %v2987
      %v2990 = vshrl.u32 %v2613, 16
      %v2992 = vrot.slane %v2990, 2
      %v2993 = vshll.u32 %v2613, 16
      %v2995 = vrot.slane %v2993, 3
      %v2996 = vor.u32 %v2992, %v2995
      %v2997 = vsel %vm2944, %v2987, %v2996
      %v2999 = vshrl.u32 %v2614, 16
      %v3001 = vrot.slane %v2999, 2
      %v3002 = vshll.u32 %v2614, 16
      %v3004 = vrot.slane %v3002, 3
      %v3005 = vor.u32 %v3001, %v3004
      %v3006 = vsel %vm2944, %v2996, %v3005
      %v3008 = vshrl.u32 %v2615, 16
      %v3010 = vrot.slane %v3008, 2
      %v3011 = vshll.u32 %v2615, 16
      %v3013 = vrot.slane %v3011, 3
      %v3014 = vor.u32 %v3010, %v3013
      %v3015 = vsel %vm2944, %v3005, %v3014
      %v3017 = vshrl.u32 %v2616, 16
      %v3019 = vrot.slane %v3017, 2
      %v3020 = vshll.u32 %v2616, 16
      %v3022 = vrot.slane %v3020, 3
      %v3023 = vor.u32 %v3019, %v3022
      %v3024 = vsel %vm2944, %v3014, %v3023
      %v3026 = vshrl.u32 %v2617, 16
      %v3028 = vrot.slane %v3026, 2
      %v3029 = vshll.u32 %v2617, 16
      %v3031 = vrot.slane %v3029, 3
      %v3032 = vor.u32 %v3028, %v3031
      %v3033 = vsel %vm2944, %v3023, %v3032
      %v3035 = vshrl.u32 %v2618, 16
      %v3037 = vrot.slane %v3035, 2
      %v3038 = vshll.u32 %v2618, 16
      %v3040 = vrot.slane %v3038, 3
      %v3041 = vor.u32 %v3037, %v3040
      %v3042 = vsel %vm2944, %v3032, %v3041
      %v3044 = vshrl.u32 %v2619, 16
      %v3046 = vrot.slane %v3044, 2
      %v3047 = vshll.u32 %v2619, 16
      %v3049 = vrot.slane %v3047, 3
      %v3050 = vor.u32 %v3046, %v3049
      %v3051 = vsel %vm2944, %v3041, %v3050
      %v3053 = vshrl.u32 %v2620, 16
      %v3055 = vrot.slane %v3053, 2
      %v3056 = vshll.u32 %v2620, 16
      %v3058 = vrot.slane %v3056, 3
      %v3059 = vor.u32 %v3055, %v3058
      %v3060 = vsel %vm2944, %v3050, %v3059
      %v3062 = vshrl.u32 %v2621, 16
      %v3064 = vrot.slane %v3062, 2
      %v3065 = vshll.u32 %v2621, 16
      %v3067 = vrot.slane %v3065, 3
      %v3068 = vor.u32 %v3064, %v3067
      %v3069 = vsel %vm2944, %v3059, %v3068
      %v3071 = vshrl.u32 %v2622, 16
      %v3073 = vrot.slane %v3071, 2
      %v3074 = vshll.u32 %v2622, 16
      %v3076 = vrot.slane %v3074, 3
      %v3077 = vor.u32 %v3073, %v3076
      %v3078 = vsel %vm2944, %v3068, %v3077
      %v3080 = vshrl.u32 %v2623, 16
      %v3082 = vrot.slane %v3080, 2
      %v3083 = vshll.u32 %v2623, 16
      %v3085 = vrot.slane %v3083, 3
      %v3086 = vor.u32 %v3082, %v3085
      %v3087 = vsel %vm2944, %v3077, %v3086
      %v3089 = vshrl.u32 %v2624, 16
      %v3091 = vrot.slane %v3089, 2
      %v3092 = vshll.u32 %v2624, 16
      %v3094 = vrot.slane %v3092, 3
      %v3095 = vor.u32 %v3091, %v3094
      %v3096 = vsel %vm2944, %v3086, %v3095
      %v3098 = vshrl.u32 %v2625, 16
      %v3100 = vrot.slane %v3098, 2
      %v3101 = vshll.u32 %v2625, 16
      %v3103 = vrot.slane %v3101, 3
      %v3104 = vor.u32 %v3100, %v3103
      %v3105 = vsel %vm2944, %v3095, %v3104
      %v3107 = vshrl.u32 %v2943, 16
      %v3109 = vrot.slane %v3107, 2
      %v3110 = vshll.u32 %v2943, 16
      %v3112 = vrot.slane %v3110, 3
      %v3113 = vor.u32 %v3109, %v3112
      %v3114 = vsel %vm2944, %v3104, %v3113
      %v3117 = vunpack.c.l.b16 %v2939
      %v3118 = vunpack.c.l.b16 %v2940
      %v3119 = vpack.c.b16 %v3118, %v3117
      %v3122 = vsel %vm513, %v2961, 0
      %v3125 = vsel %vm513, %v2970, 0
      %v3128 = vsel %vm513, %v2979, 0
      %v3131 = vsel %vm513, %v2988, 0
      %v3134 = vsel %vm513, %v2997, 0
      %v3137 = vsel %vm513, %v3006, 0
      %v3140 = vsel %vm513, %v3015, 0
      %v3143 = vsel %vm513, %v3024, 0
      %v3146 = vsel %vm513, %v3033, 0
      %v3149 = vsel %vm513, %v3042, 0
      %v3152 = vsel %vm513, %v3051, 0
      %v3155 = vsel %vm513, %v3060, 0
      %v3158 = vsel %vm513, %v3069, 0
      %v3161 = vsel %vm513, %v3078, 0
      %v3164 = vsel %vm513, %v3087, 0
      %v3167 = vsel %vm513, %v3096, 0
      %v3170 = vsel %vm513, %v3105, 0
      %v3173 = vsel %vm513, %v3114, 0
      %3175 = vmatprep.subr.bf16.mxu0 0
      %3176 = vmatpush1.bf16.msra.mxu0 0
      %3177 = vmatprep.subr.bf16.mxu0 0
      %3178 = vmatpush1.bf16.msra.mxu0 0
      %3179 = vmatprep.subr.bf16.mxu0 0
      %3180 = vmatpush1.bf16.msra.mxu0 0
      %3181 = vmatprep.subr.bf16.mxu0 0
      %3182 = vmatpush1.bf16.msra.mxu0 0
      %3183 = vmatprep.subr.bf16.mxu0 0
      %3184 = vmatpush1.bf16.msra.mxu0 0
      %3185 = vmatprep.subr.bf16.mxu0 0
      %3186 = vmatpush1.bf16.msra.mxu0 0
      %3187 = vmatprep.subr.bf16.mxu0 0
      %3188 = vmatpush1.bf16.msra.mxu0 0
      %3189 = vmatprep.subr.bf16.mxu0 0
      %3190 = vmatpush1.bf16.msra.mxu0 %v3119
      %3191 = vmatprep.subr.bf16.mxu0 0
      %3192 = vmatpush2.bf16.msra.mxu0 0
      %3193 = vmatprep.subr.bf16.mxu0 0
      %3194 = vmatpush2.bf16.msra.mxu0 0
      %3195 = vmatprep.subr.bf16.mxu0 0
      %3196 = vmatpush2.bf16.msra.mxu0 0
      %3197 = vmatprep.subr.bf16.mxu0 0
      %3198 = vmatpush2.bf16.msra.mxu0 0
      %3199 = vmatprep.subr.bf16.mxu0 0
      %3200 = vmatpush2.bf16.msra.mxu0 0
      %3201 = vmatprep.subr.bf16.mxu0 0
      %3202 = vmatpush2.bf16.msra.mxu0 0
      %3203 = vmatprep.subr.bf16.mxu0 0
      %3204 = vmatpush2.bf16.msra.mxu0 0
      %3205 = vmatprep.subr.bf16.mxu0 0
      %3206 = vmatpush2.bf16.msra.mxu0 0
      %3207 = vmatprep.mubr.bf16.mxu0 0
      %3208 = vmatmul.mubr.bf16.gmra.mxu0 %v3122
      %v3209 = vpop.f32.mrf.mxu0
      %v3210 = vadd.f32 0.0, %v3209
      %v3211 = vpop.f32.mrf.mxu0
      %v3212 = vpop.f32.mrf.mxu0
      %v3213 = vadd.f32 0.0, %v3212
      %v3214 = vpop.f32.mrf.mxu0
      %3215 = vmatprep.mubr.bf16.mxu0 0
      %3216 = vmatmul.mubr.bf16.gmra.mxu0 %v3125
      %v3217 = vpop.f32.mrf.mxu0
      %v3218 = vadd.f32 0.0, %v3217
      %v3219 = vpop.f32.mrf.mxu0
      %v3220 = vpop.f32.mrf.mxu0
      %v3221 = vadd.f32 0.0, %v3220
      %v3222 = vpop.f32.mrf.mxu0
      %3223 = vmatprep.mubr.bf16.mxu0 0
      %3224 = vmatmul.mubr.bf16.gmra.mxu0 %v3128
      %v3225 = vpop.f32.mrf.mxu0
      %v3226 = vadd.f32 0.0, %v3225
      %v3227 = vpop.f32.mrf.mxu0
      %v3228 = vpop.f32.mrf.mxu0
      %v3229 = vadd.f32 0.0, %v3228
      %v3230 = vpop.f32.mrf.mxu0
      %3231 = vmatprep.mubr.bf16.mxu0 0
      %3232 = vmatmul.mubr.bf16.gmra.mxu0 %v3131
      %v3233 = vpop.f32.mrf.mxu0
      %v3234 = vadd.f32 0.0, %v3233
      %v3235 = vpop.f32.mrf.mxu0
      %v3236 = vpop.f32.mrf.mxu0
      %v3237 = vadd.f32 0.0, %v3236
      %v3238 = vpop.f32.mrf.mxu0
      %3239 = vmatprep.mubr.bf16.mxu0 0
      %3240 = vmatmul.mubr.bf16.gmra.mxu0 %v3134
      %v3241 = vpop.f32.mrf.mxu0
      %v3242 = vadd.f32 0.0, %v3241
      %v3243 = vpop.f32.mrf.mxu0
      %v3244 = vpop.f32.mrf.mxu0
      %v3245 = vadd.f32 0.0, %v3244
      %v3246 = vpop.f32.mrf.mxu0
      %3247 = vmatprep.mubr.bf16.mxu0 0
      %3248 = vmatmul.mubr.bf16.gmra.mxu0 %v3137
      %v3249 = vpop.f32.mrf.mxu0
      %v3250 = vadd.f32 0.0, %v3249
      %v3251 = vpop.f32.mrf.mxu0
      %v3252 = vpop.f32.mrf.mxu0
      %v3253 = vadd.f32 0.0, %v3252
      %v3254 = vpop.f32.mrf.mxu0
      %3255 = vmatprep.mubr.bf16.mxu0 0
      %3256 = vmatmul.mubr.bf16.gmra.mxu0 %v3140
      %v3257 = vpop.f32.mrf.mxu0
      %v3258 = vadd.f32 0.0, %v3257
      %v3259 = vpop.f32.mrf.mxu0
      %v3260 = vpop.f32.mrf.mxu0
      %v3261 = vadd.f32 0.0, %v3260
      %v3262 = vpop.f32.mrf.mxu0
      %3263 = vmatprep.mubr.bf16.mxu0 0
      %3264 = vmatmul.mubr.bf16.gmra.mxu0 %v3143
      %v3265 = vpop.f32.mrf.mxu0
      %v3266 = vadd.f32 0.0, %v3265
      %v3267 = vpop.f32.mrf.mxu0
      %v3268 = vpop.f32.mrf.mxu0
      %v3269 = vadd.f32 0.0, %v3268
      %v3270 = vpop.f32.mrf.mxu0
      %3271 = vmatprep.mubr.bf16.mxu0 0
      %3272 = vmatmul.mubr.bf16.gmra.mxu0 %v3146
      %v3273 = vpop.f32.mrf.mxu0
      %v3274 = vadd.f32 0.0, %v3273
      %v3275 = vpop.f32.mrf.mxu0
      %v3276 = vpop.f32.mrf.mxu0
      %v3277 = vadd.f32 0.0, %v3276
      %v3278 = vpop.f32.mrf.mxu0
      %3279 = vmatprep.mubr.bf16.mxu0 0
      %3280 = vmatmul.mubr.bf16.gmra.mxu0 %v3149
      %v3281 = vpop.f32.mrf.mxu0
      %v3282 = vadd.f32 0.0, %v3281
      %v3283 = vpop.f32.mrf.mxu0
      %v3284 = vpop.f32.mrf.mxu0
      %v3285 = vadd.f32 0.0, %v3284
      %v3286 = vpop.f32.mrf.mxu0
      %3287 = vmatprep.mubr.bf16.mxu0 0
      %3288 = vmatmul.mubr.bf16.gmra.mxu0 %v3152
      %v3289 = vpop.f32.mrf.mxu0
      %v3290 = vadd.f32 0.0, %v3289
      %v3291 = vpop.f32.mrf.mxu0
      %v3292 = vpop.f32.mrf.mxu0
      %v3293 = vadd.f32 0.0, %v3292
      %v3294 = vpop.f32.mrf.mxu0
      %3295 = vmatprep.mubr.bf16.mxu0 0
      %3296 = vmatmul.mubr.bf16.gmra.mxu0 %v3155
      %v3297 = vpop.f32.mrf.mxu0
      %v3298 = vadd.f32 0.0, %v3297
      %v3299 = vpop.f32.mrf.mxu0
      %v3300 = vpop.f32.mrf.mxu0
      %v3301 = vadd.f32 0.0, %v3300
      %v3302 = vpop.f32.mrf.mxu0
      %3303 = vmatprep.mubr.bf16.mxu0 0
      %3304 = vmatmul.mubr.bf16.gmra.mxu0 %v3158
      %v3305 = vpop.f32.mrf.mxu0
      %v3306 = vadd.f32 0.0, %v3305
      %v3307 = vpop.f32.mrf.mxu0
      %v3308 = vpop.f32.mrf.mxu0
      %v3309 = vadd.f32 0.0, %v3308
      %v3310 = vpop.f32.mrf.mxu0
      %3311 = vmatprep.mubr.bf16.mxu0 0
      %3312 = vmatmul.mubr.bf16.gmra.mxu0 %v3161
      %v3313 = vpop.f32.mrf.mxu0
      %v3314 = vadd.f32 0.0, %v3313
      %v3315 = vpop.f32.mrf.mxu0
      %v3316 = vpop.f32.mrf.mxu0
      %v3317 = vadd.f32 0.0, %v3316
      %v3318 = vpop.f32.mrf.mxu0
      %3319 = vmatprep.mubr.bf16.mxu0 0
      %3320 = vmatmul.mubr.bf16.gmra.mxu0 %v3164
      %v3321 = vpop.f32.mrf.mxu0
      %v3322 = vadd.f32 0.0, %v3321
      %v3323 = vpop.f32.mrf.mxu0
      %v3324 = vpop.f32.mrf.mxu0
      %v3325 = vadd.f32 0.0, %v3324
      %v3326 = vpop.f32.mrf.mxu0
      %3327 = vmatprep.mubr.bf16.mxu0 0
      %3328 = vmatmul.mubr.bf16.gmra.mxu0 %v3167
      %v3329 = vpop.f32.mrf.mxu0
      %v3330 = vadd.f32 0.0, %v3329
      %v3331 = vpop.f32.mrf.mxu0
      %v3332 = vpop.f32.mrf.mxu0
      %v3333 = vadd.f32 0.0, %v3332
      %v3334 = vpop.f32.mrf.mxu0
      %3335 = vmatprep.mubr.bf16.mxu0 0
      %3336 = vmatmul.mubr.bf16.gmra.mxu0 %v3170
      %v3337 = vpop.f32.mrf.mxu0
      %v3338 = vadd.f32 0.0, %v3337
      %v3339 = vpop.f32.mrf.mxu0
      %v3340 = vpop.f32.mrf.mxu0
      %v3341 = vadd.f32 0.0, %v3340
      %v3342 = vpop.f32.mrf.mxu0
      %3343 = vmatprep.mubr.bf16.mxu0 0
      %3344 = vmatmul.mubr.bf16.gmra.mxu0 %v3173
      %v3345 = vpop.f32.mrf.mxu0
      %v3346 = vadd.f32 0.0, %v3345
      %v3347 = vpop.f32.mrf.mxu0
      %v3348 = vpop.f32.mrf.mxu0
      %v3349 = vadd.f32 0.0, %v3348
      %v3350 = vpop.f32.mrf.mxu0
      %3351 = vdwg.mxu0
      %v3352 = vadd.f32 %v2901, %v3210
      %v3353 = vadd.f32 %v2902, %v3213
      %v3354 = vadd.f32 %v2903, %v3218
      %v3355 = vadd.f32 %v2904, %v3221
      %v3356 = vadd.f32 %v2905, %v3226
      %v3357 = vadd.f32 %v2906, %v3229
      %v3358 = vadd.f32 %v2907, %v3234
      %v3359 = vadd.f32 %v2908, %v3237
      %v3360 = vadd.f32 %v2909, %v3242
      %v3361 = vadd.f32 %v2910, %v3245
      %v3362 = vadd.f32 %v2911, %v3250
      %v3363 = vadd.f32 %v2912, %v3253
      %v3364 = vadd.f32 %v2913, %v3258
      %v3365 = vadd.f32 %v2914, %v3261
      %v3366 = vadd.f32 %v2915, %v3266
      %v3367 = vadd.f32 %v2916, %v3269
      %v3368 = vadd.f32 %v2917, %v3274
      %v3369 = vadd.f32 %v2918, %v3277
      %v3370 = vadd.f32 %v2919, %v3282
      %v3371 = vadd.f32 %v2920, %v3285
      %v3372 = vadd.f32 %v2921, %v3290
      %v3373 = vadd.f32 %v2922, %v3293
      %v3374 = vadd.f32 %v2923, %v3298
      %v3375 = vadd.f32 %v2924, %v3301
      %v3376 = vadd.f32 %v2925, %v3306
      %v3377 = vadd.f32 %v2926, %v3309
      %v3378 = vadd.f32 %v2927, %v3314
      %v3379 = vadd.f32 %v2928, %v3317
      %v3380 = vadd.f32 %v2929, %v3322
      %v3381 = vadd.f32 %v2930, %v3325
      %v3382 = vadd.f32 %v2931, %v3330
      %v3383 = vadd.f32 %v2932, %v3333
      %v3384 = vadd.f32 %v2933, %v3338
      %v3385 = vadd.f32 %v2934, %v3341
      %v3386 = vadd.f32 %v2935, %v3346
      %v3387 = vadd.f32 %v2936, %v3349
      %v3388 = vld [vmem:[%s206 + $0x10] sm:$0x8]
      %s3389 = scalar_lea.vmem %s210, 64
      %v3390 = vld [vmem:[%s3389] sm:$0xf]
      %v3391 = vld [vmem:[%s3389 + $0x4] sm:$0xf]
      %v3393 = vunpack.c.l.b16 %v3388
      %v3394 = vpack.c.b16 %v2572, %v3393
      %vm3395 = vcmask 1044480
      %v3396 = vrot.slane %v3394, 3
      %v3397 = vrot.slane %v2609, 3
      %v3398 = vsel %vm3395, %v3396, %v3397
      %v3399 = vrot.slane %v2610, 3
      %v3400 = vsel %vm3395, %v3397, %v3399
      %v3401 = vrot.slane %v2611, 3
      %v3402 = vsel %vm3395, %v3399, %v3401
      %v3403 = vrot.slane %v2612, 3
      %v3404 = vsel %vm3395, %v3401, %v3403
      %v3405 = vrot.slane %v2613, 3
      %v3406 = vsel %vm3395, %v3403, %v3405
      %v3407 = vrot.slane %v2614, 3
      %v3408 = vsel %vm3395, %v3405, %v3407
      %v3409 = vrot.slane %v2615, 3
      %v3410 = vsel %vm3395, %v3407, %v3409
      %v3411 = vrot.slane %v2616, 3
      %v3412 = vsel %vm3395, %v3409, %v3411
      %v3413 = vrot.slane %v2617, 3
      %v3414 = vsel %vm3395, %v3411, %v3413
      %v3415 = vrot.slane %v2618, 3
      %v3416 = vsel %vm3395, %v3413, %v3415
      %v3417 = vrot.slane %v2619, 3
      %v3418 = vsel %vm3395, %v3415, %v3417
      %v3419 = vrot.slane %v2620, 3
      %v3420 = vsel %vm3395, %v3417, %v3419
      %v3421 = vrot.slane %v2621, 3
      %v3422 = vsel %vm3395, %v3419, %v3421
      %v3423 = vrot.slane %v2622, 3
      %v3424 = vsel %vm3395, %v3421, %v3423
      %v3425 = vrot.slane %v2623, 3
      %v3426 = vsel %vm3395, %v3423, %v3425
      %v3427 = vrot.slane %v2624, 3
      %v3428 = vsel %vm3395, %v3425, %v3427
      %v3429 = vrot.slane %v2625, 3
      %v3430 = vsel %vm3395, %v3427, %v3429
      %v3431 = vrot.slane %v2943, 3
      %v3432 = vsel %vm3395, %v3429, %v3431
      %v3435 = vunpack.c.l.b16 %v3390
      %v3436 = vunpack.c.l.b16 %v3391
      %v3437 = vpack.c.b16 %v3436, %v3435
      %v3440 = vsel %vm513, %v3398, 0
      %v3443 = vsel %vm513, %v3400, 0
      %v3446 = vsel %vm513, %v3402, 0
      %v3449 = vsel %vm513, %v3404, 0
      %v3452 = vsel %vm513, %v3406, 0
      %v3455 = vsel %vm513, %v3408, 0
      %v3458 = vsel %vm513, %v3410, 0
      %v3461 = vsel %vm513, %v3412, 0
      %v3464 = vsel %vm513, %v3414, 0
      %v3467 = vsel %vm513, %v3416, 0
      %v3470 = vsel %vm513, %v3418, 0
      %v3473 = vsel %vm513, %v3420, 0
      %v3476 = vsel %vm513, %v3422, 0
      %v3479 = vsel %vm513, %v3424, 0
      %v3482 = vsel %vm513, %v3426, 0
      %v3485 = vsel %vm513, %v3428, 0
      %v3488 = vsel %vm513, %v3430, 0
      %v3491 = vsel %vm513, %v3432, 0
      %3493 = vmatprep.subr.bf16.mxu0 0
      %3494 = vmatpush1.bf16.msra.mxu0 0
      %3495 = vmatprep.subr.bf16.mxu0 0
      %3496 = vmatpush1.bf16.msra.mxu0 0
      %3497 = vmatprep.subr.bf16.mxu0 0
      %3498 = vmatpush1.bf16.msra.mxu0 0
      %3499 = vmatprep.subr.bf16.mxu0 0
      %3500 = vmatpush1.bf16.msra.mxu0 0
      %3501 = vmatprep.subr.bf16.mxu0 0
      %3502 = vmatpush1.bf16.msra.mxu0 0
      %3503 = vmatprep.subr.bf16.mxu0 0
      %3504 = vmatpush1.bf16.msra.mxu0 0
      %3505 = vmatprep.subr.bf16.mxu0 0
      %3506 = vmatpush1.bf16.msra.mxu0 0
      %3507 = vmatprep.subr.bf16.mxu0 0
      %3508 = vmatpush1.bf16.msra.mxu0 %v3437
      %3509 = vmatprep.subr.bf16.mxu0 0
      %3510 = vmatpush2.bf16.msra.mxu0 0
      %3511 = vmatprep.subr.bf16.mxu0 0
      %3512 = vmatpush2.bf16.msra.mxu0 0
      %3513 = vmatprep.subr.bf16.mxu0 0
      %3514 = vmatpush2.bf16.msra.mxu0 0
      %3515 = vmatprep.subr.bf16.mxu0 0
      %3516 = vmatpush2.bf16.msra.mxu0 0
      %3517 = vmatprep.subr.bf16.mxu0 0
      %3518 = vmatpush2.bf16.msra.mxu0 0
      %3519 = vmatprep.subr.bf16.mxu0 0
      %3520 = vmatpush2.bf16.msra.mxu0 0
      %3521 = vmatprep.subr.bf16.mxu0 0
      %3522 = vmatpush2.bf16.msra.mxu0 0
      %3523 = vmatprep.subr.bf16.mxu0 0
      %3524 = vmatpush2.bf16.msra.mxu0 0
      %3525 = vmatprep.mubr.bf16.mxu0 0
      %3526 = vmatmul.mubr.bf16.gmra.mxu0 %v3440
      %v3527 = vpop.f32.mrf.mxu0
      %v3528 = vadd.f32 0.0, %v3527
      %v3529 = vpop.f32.mrf.mxu0
      %v3530 = vpop.f32.mrf.mxu0
      %v3531 = vadd.f32 0.0, %v3530
      %v3532 = vpop.f32.mrf.mxu0
      %3533 = vmatprep.mubr.bf16.mxu0 0
      %3534 = vmatmul.mubr.bf16.gmra.mxu0 %v3443
      %v3535 = vpop.f32.mrf.mxu0
      %v3536 = vadd.f32 0.0, %v3535
      %v3537 = vpop.f32.mrf.mxu0
      %v3538 = vpop.f32.mrf.mxu0
      %v3539 = vadd.f32 0.0, %v3538
      %v3540 = vpop.f32.mrf.mxu0
      %3541 = vmatprep.mubr.bf16.mxu0 0
      %3542 = vmatmul.mubr.bf16.gmra.mxu0 %v3446
      %v3543 = vpop.f32.mrf.mxu0
      %v3544 = vadd.f32 0.0, %v3543
      %v3545 = vpop.f32.mrf.mxu0
      %v3546 = vpop.f32.mrf.mxu0
      %v3547 = vadd.f32 0.0, %v3546
      %v3548 = vpop.f32.mrf.mxu0
      %3549 = vmatprep.mubr.bf16.mxu0 0
      %3550 = vmatmul.mubr.bf16.gmra.mxu0 %v3449
      %v3551 = vpop.f32.mrf.mxu0
      %v3552 = vadd.f32 0.0, %v3551
      %v3553 = vpop.f32.mrf.mxu0
      %v3554 = vpop.f32.mrf.mxu0
      %v3555 = vadd.f32 0.0, %v3554
      %v3556 = vpop.f32.mrf.mxu0
      %3557 = vmatprep.mubr.bf16.mxu0 0
      %3558 = vmatmul.mubr.bf16.gmra.mxu0 %v3452
      %v3559 = vpop.f32.mrf.mxu0
      %v3560 = vadd.f32 0.0, %v3559
      %v3561 = vpop.f32.mrf.mxu0
      %v3562 = vpop.f32.mrf.mxu0
      %v3563 = vadd.f32 0.0, %v3562
      %v3564 = vpop.f32.mrf.mxu0
      %3565 = vmatprep.mubr.bf16.mxu0 0
      %3566 = vmatmul.mubr.bf16.gmra.mxu0 %v3455
      %v3567 = vpop.f32.mrf.mxu0
      %v3568 = vadd.f32 0.0, %v3567
      %v3569 = vpop.f32.mrf.mxu0
      %v3570 = vpop.f32.mrf.mxu0
      %v3571 = vadd.f32 0.0, %v3570
      %v3572 = vpop.f32.mrf.mxu0
      %3573 = vmatprep.mubr.bf16.mxu0 0
      %3574 = vmatmul.mubr.bf16.gmra.mxu0 %v3458
      %v3575 = vpop.f32.mrf.mxu0
      %v3576 = vadd.f32 0.0, %v3575
      %v3577 = vpop.f32.mrf.mxu0
      %v3578 = vpop.f32.mrf.mxu0
      %v3579 = vadd.f32 0.0, %v3578
      %v3580 = vpop.f32.mrf.mxu0
      %3581 = vmatprep.mubr.bf16.mxu0 0
      %3582 = vmatmul.mubr.bf16.gmra.mxu0 %v3461
      %v3583 = vpop.f32.mrf.mxu0
      %v3584 = vadd.f32 0.0, %v3583
      %v3585 = vpop.f32.mrf.mxu0
      %v3586 = vpop.f32.mrf.mxu0
      %v3587 = vadd.f32 0.0, %v3586
      %v3588 = vpop.f32.mrf.mxu0
      %3589 = vmatprep.mubr.bf16.mxu0 0
      %3590 = vmatmul.mubr.bf16.gmra.mxu0 %v3464
      %v3591 = vpop.f32.mrf.mxu0
      %v3592 = vadd.f32 0.0, %v3591
      %v3593 = vpop.f32.mrf.mxu0
      %v3594 = vpop.f32.mrf.mxu0
      %v3595 = vadd.f32 0.0, %v3594
      %v3596 = vpop.f32.mrf.mxu0
      %3597 = vmatprep.mubr.bf16.mxu0 0
      %3598 = vmatmul.mubr.bf16.gmra.mxu0 %v3467
      %v3599 = vpop.f32.mrf.mxu0
      %v3600 = vadd.f32 0.0, %v3599
      %v3601 = vpop.f32.mrf.mxu0
      %v3602 = vpop.f32.mrf.mxu0
      %v3603 = vadd.f32 0.0, %v3602
      %v3604 = vpop.f32.mrf.mxu0
      %3605 = vmatprep.mubr.bf16.mxu0 0
      %3606 = vmatmul.mubr.bf16.gmra.mxu0 %v3470
      %v3607 = vpop.f32.mrf.mxu0
      %v3608 = vadd.f32 0.0, %v3607
      %v3609 = vpop.f32.mrf.mxu0
      %v3610 = vpop.f32.mrf.mxu0
      %v3611 = vadd.f32 0.0, %v3610
      %v3612 = vpop.f32.mrf.mxu0
      %3613 = vmatprep.mubr.bf16.mxu0 0
      %3614 = vmatmul.mubr.bf16.gmra.mxu0 %v3473
      %v3615 = vpop.f32.mrf.mxu0
      %v3616 = vadd.f32 0.0, %v3615
      %v3617 = vpop.f32.mrf.mxu0
      %v3618 = vpop.f32.mrf.mxu0
      %v3619 = vadd.f32 0.0, %v3618
      %v3620 = vpop.f32.mrf.mxu0
      %3621 = vmatprep.mubr.bf16.mxu0 0
      %3622 = vmatmul.mubr.bf16.gmra.mxu0 %v3476
      %v3623 = vpop.f32.mrf.mxu0
      %v3624 = vadd.f32 0.0, %v3623
      %v3625 = vpop.f32.mrf.mxu0
      %v3626 = vpop.f32.mrf.mxu0
      %v3627 = vadd.f32 0.0, %v3626
      %v3628 = vpop.f32.mrf.mxu0
      %3629 = vmatprep.mubr.bf16.mxu0 0
      %3630 = vmatmul.mubr.bf16.gmra.mxu0 %v3479
      %v3631 = vpop.f32.mrf.mxu0
      %v3632 = vadd.f32 0.0, %v3631
      %v3633 = vpop.f32.mrf.mxu0
      %v3634 = vpop.f32.mrf.mxu0
      %v3635 = vadd.f32 0.0, %v3634
      %v3636 = vpop.f32.mrf.mxu0
      %3637 = vmatprep.mubr.bf16.mxu0 0
      %3638 = vmatmul.mubr.bf16.gmra.mxu0 %v3482
      %v3639 = vpop.f32.mrf.mxu0
      %v3640 = vadd.f32 0.0, %v3639
      %v3641 = vpop.f32.mrf.mxu0
      %v3642 = vpop.f32.mrf.mxu0
      %v3643 = vadd.f32 0.0, %v3642
      %v3644 = vpop.f32.mrf.mxu0
      %3645 = vmatprep.mubr.bf16.mxu0 0
      %3646 = vmatmul.mubr.bf16.gmra.mxu0 %v3485
      %v3647 = vpop.f32.mrf.mxu0
      %v3648 = vadd.f32 0.0, %v3647
      %v3649 = vpop.f32.mrf.mxu0
      %v3650 = vpop.f32.mrf.mxu0
      %v3651 = vadd.f32 0.0, %v3650
      %v3652 = vpop.f32.mrf.mxu0
      %3653 = vmatprep.mubr.bf16.mxu0 0
      %3654 = vmatmul.mubr.bf16.gmra.mxu0 %v3488
      %v3655 = vpop.f32.mrf.mxu0
      %v3656 = vadd.f32 0.0, %v3655
      %v3657 = vpop.f32.mrf.mxu0
      %v3658 = vpop.f32.mrf.mxu0
      %v3659 = vadd.f32 0.0, %v3658
      %v3660 = vpop.f32.mrf.mxu0
      %3661 = vmatprep.mubr.bf16.mxu0 0
      %3662 = vmatmul.mubr.bf16.gmra.mxu0 %v3491
      %v3663 = vpop.f32.mrf.mxu0
      %v3664 = vadd.f32 0.0, %v3663
      %v3665 = vpop.f32.mrf.mxu0
      %v3666 = vpop.f32.mrf.mxu0
      %v3667 = vadd.f32 0.0, %v3666
      %v3668 = vpop.f32.mrf.mxu0
      %3669 = vdwg.mxu0
      %v3670 = vadd.f32 %v3352, %v3528
      %v3671 = vadd.f32 %v3353, %v3531
      %v3672 = vadd.f32 %v3354, %v3536
      %v3673 = vadd.f32 %v3355, %v3539
      %v3674 = vadd.f32 %v3356, %v3544
      %v3675 = vadd.f32 %v3357, %v3547
      %v3676 = vadd.f32 %v3358, %v3552
      %v3677 = vadd.f32 %v3359, %v3555
      %v3678 = vadd.f32 %v3360, %v3560
      %v3679 = vadd.f32 %v3361, %v3563
      %v3680 = vadd.f32 %v3362, %v3568
      %v3681 = vadd.f32 %v3363, %v3571
      %v3682 = vadd.f32 %v3364, %v3576
      %v3683 = vadd.f32 %v3365, %v3579
      %v3684 = vadd.f32 %v3366, %v3584
      %v3685 = vadd.f32 %v3367, %v3587
      %v3686 = vadd.f32 %v3368, %v3592
      %v3687 = vadd.f32 %v3369, %v3595
      %v3688 = vadd.f32 %v3370, %v3600
      %v3689 = vadd.f32 %v3371, %v3603
      %v3690 = vadd.f32 %v3372, %v3608
      %v3691 = vadd.f32 %v3373, %v3611
      %v3692 = vadd.f32 %v3374, %v3616
      %v3693 = vadd.f32 %v3375, %v3619
      %v3694 = vadd.f32 %v3376, %v3624
      %v3695 = vadd.f32 %v3377, %v3627
      %v3696 = vadd.f32 %v3378, %v3632
      %v3697 = vadd.f32 %v3379, %v3635
      %v3698 = vadd.f32 %v3380, %v3640
      %v3699 = vadd.f32 %v3381, %v3643
      %v3700 = vadd.f32 %v3382, %v3648
      %v3701 = vadd.f32 %v3383, %v3651
      %v3702 = vadd.f32 %v3384, %v3656
      %v3703 = vadd.f32 %v3385, %v3659
      %v3704 = vadd.f32 %v3386, %v3664
      %v3705 = vadd.f32 %v3387, %v3667
      %v3706 = vld [vmem:[%s213] sm:$0x1]
      %v3708 = vlaneseq
      %v3709 = vshrl.u32 %v3708, 7
      %v3710 = vsub.s32 0, %v3709
      %v3711 = vrot.slane %v3706, %v3710
      %v3713 = vadd.f32 %v3670, %v3711
      %v3714 = vadd.f32 %v3671, %v3711
      %v3715 = vadd.f32 %v3672, %v3711
      %v3716 = vadd.f32 %v3673, %v3711
      %v3717 = vadd.f32 %v3674, %v3711
      %v3718 = vadd.f32 %v3675, %v3711
      %v3719 = vadd.f32 %v3676, %v3711
      %v3720 = vadd.f32 %v3677, %v3711
      %v3721 = vadd.f32 %v3678, %v3711
      %v3722 = vadd.f32 %v3679, %v3711
      %v3723 = vadd.f32 %v3680, %v3711
      %v3724 = vadd.f32 %v3681, %v3711
      %v3725 = vadd.f32 %v3682, %v3711
      %v3726 = vadd.f32 %v3683, %v3711
      %v3727 = vadd.f32 %v3684, %v3711
      %v3728 = vadd.f32 %v3685, %v3711
      %v3729 = vadd.f32 %v3686, %v3711
      %v3730 = vadd.f32 %v3687, %v3711
      %v3731 = vadd.f32 %v3688, %v3711
      %v3732 = vadd.f32 %v3689, %v3711
      %v3733 = vadd.f32 %v3690, %v3711
      %v3734 = vadd.f32 %v3691, %v3711
      %v3735 = vadd.f32 %v3692, %v3711
      %v3736 = vadd.f32 %v3693, %v3711
      %v3737 = vadd.f32 %v3694, %v3711
      %v3738 = vadd.f32 %v3695, %v3711
      %v3739 = vadd.f32 %v3696, %v3711
      %v3740 = vadd.f32 %v3697, %v3711
      %v3741 = vadd.f32 %v3698, %v3711
      %v3742 = vadd.f32 %v3699, %v3711
      %v3743 = vadd.f32 %v3700, %v3711
      %v3744 = vadd.f32 %v3701, %v3711
      %v3745 = vadd.f32 %v3702, %v3711
      %v3746 = vadd.f32 %v3703, %v3711
      %v3747 = vadd.f32 %v3704, %v3711
      %v3748 = vadd.f32 %v3705, %v3711
      %3749 = vst [vmem:[%s221] sm:$0xff] %v3713
      %3750 = vst [vmem:[%s221 + $0x8] sm:$0xff] %v3714
      %3751 = vst [vmem:[%s221 + $0x10] sm:$0xff] %v3715
      %3752 = vst [vmem:[%s221 + $0x18] sm:$0xff] %v3716
      %3753 = vst [vmem:[%s221 + $0x20] sm:$0xff] %v3717
      %3754 = vst [vmem:[%s221 + $0x28] sm:$0xff] %v3718
      %3755 = vst [vmem:[%s221 + $0x30] sm:$0xff] %v3719
      %3756 = vst [vmem:[%s221 + $0x38] sm:$0xff] %v3720
      %3757 = vst [vmem:[%s221 + $0x40] sm:$0xff] %v3721
      %3758 = vst [vmem:[%s221 + $0x48] sm:$0xff] %v3722
      %3759 = vst [vmem:[%s221 + $0x50] sm:$0xff] %v3723
      %3760 = vst [vmem:[%s221 + $0x58] sm:$0xff] %v3724
      %3761 = vst [vmem:[%s221 + $0x60] sm:$0xff] %v3725
      %3762 = vst [vmem:[%s221 + $0x68] sm:$0xff] %v3726
      %3763 = vst [vmem:[%s221 + $0x70] sm:$0xff] %v3727
      %3764 = vst [vmem:[%s221 + $0x78] sm:$0xff] %v3728
      %3765 = vst [vmem:[%s221 + $0x80] sm:$0xff] %v3729
      %3766 = vst [vmem:[%s221 + $0x88] sm:$0xff] %v3730
      %3767 = vst [vmem:[%s221 + $0x90] sm:$0xff] %v3731
      %3768 = vst [vmem:[%s221 + $0x98] sm:$0xff] %v3732
      %3769 = vst [vmem:[%s221 + $0xa0] sm:$0xff] %v3733
      %3770 = vst [vmem:[%s221 + $0xa8] sm:$0xff] %v3734
      %3771 = vst [vmem:[%s221 + $0xb0] sm:$0xff] %v3735
      %3772 = vst [vmem:[%s221 + $0xb8] sm:$0xff] %v3736
      %3773 = vst [vmem:[%s221 + $0xc0] sm:$0xff] %v3737
      %3774 = vst [vmem:[%s221 + $0xc8] sm:$0xff] %v3738
      %3775 = vst [vmem:[%s221 + $0xd0] sm:$0xff] %v3739
      %3776 = vst [vmem:[%s221 + $0xd8] sm:$0xff] %v3740
      %3777 = vst [vmem:[%s221 + $0xe0] sm:$0xff] %v3741
      %3778 = vst [vmem:[%s221 + $0xe8] sm:$0xff] %v3742
      %3779 = vst [vmem:[%s221 + $0xf0] sm:$0xff] %v3743
      %3780 = vst [vmem:[%s221 + $0xf8] sm:$0xff] %v3744
      %3781 = vst [vmem:[%s221 + $0x100] sm:$0xff] %v3745
      %3782 = vst [vmem:[%s221 + $0x108] sm:$0xff] %v3746
      %3783 = vst [vmem:[%s221 + $0x110] sm:$0xff] %v3747
      %3784 = vst [vmem:[%s221 + $0x118] sm:$0xff] %v3748
      %p3785 = scmp.lt.s32.totalorder %s19, 1
      %s3786 = scalar_select %p3785, %s19, 1
      %p3787 = scmp.lt.s32.totalorder %s18, 0
      %s3788 = scalar_select %p3787, %s18, 0
      %s3789 = smul.addr %s3786, 36
      %s3790 = sadd.s32 %s3788, %s3789
      %s3791 = smul.addr %s3790, 8
      %s3792 = scalar_lea.vmem %s3, %s3791
      // Predicated region
      $region33: #{convbn_apply.1} parent=31 // pred_check
        %p3793 = pneg %p124
      $region34: #{convbn_apply.1} parent=31 // pred_check_branch
        %3795 = sbr.rel (%p3793) target = $region36
      $region35: #{convbn_apply.1} parent=31 // pred_region
        _
      $region36: #{convbn_apply.1} parent=31 // pred_fallthru
        _
    $region32: #{convbn_apply.1} parent=5 // pred_fallthru
      _
    %p3796 = scmp.le.s32.totalorder 2, %s9
    // Predicated region
    $region37: #{convbn_apply.1} parent=5 // pred_check
      %p3797 = pneg %p3796
    $region38: #{convbn_apply.1} parent=5 // pred_check_branch
      %3799 = sbr.rel (%p3797) target = $region40
    $region39: #{convbn_apply.1} parent=5 // pred_region
      %s3800 = ssub.s32 %s9, 2
      // Predicated region
      $region41: #{convbn_apply.1} parent=39 // pred_check
        %p3801 = pneg %p130
      $region42: #{convbn_apply.1} parent=39 // pred_check_branch
        %3803 = sbr.rel (%p3801) target = $region44
      $region43: #{convbn_apply.1} parent=39 // pred_region
        %p3804 = scmp.lt.s32.totalorder %s21, 1
        %s3805 = scalar_select %p3804, %s21, 1
        %p3806 = scmp.lt.s32.totalorder %s20, 0
        %s3807 = scalar_select %p3806, %s20, 0
        %s3808 = smul.addr %s3805, 36
        %s3809 = sadd.s32 %s3807, %s3808
        %s3810 = smul.addr %s3809, 8
        %s3811 = scalar_lea.vmem %s3, %s3810
      $region44: #{convbn_apply.1} parent=39 // pred_fallthru
        _
    $region40: #{convbn_apply.1} parent=5 // pred_fallthru
      _
  $region6: #{convbn_apply.1} parent=0 // loop_footer
    %s13 = sadd.s32 1, %s9
  $region7: #{convbn_apply.1} parent=0 // loop_footer_branch
    %8 = sbr.rel target = $region3
  $region8: #{convbn_apply.1} parent=0 // loop_exit
    _

</llo_original>
